<compile_context>
chip_gen: v7x
topology: tpu7x:2x2x1
jax: 0.10.0
libtpu: 0.0.40
codegen_flags: <defaults>
</compile_context>

<pallas_src>
import math

import jax
import jax.numpy as jnp
from jax import lax
from jax.experimental import pallas as pl
from jax.experimental.pallas import tpu as pltpu

IN_DIM = 4
HID_DIM = 300
HID_PAD = 384   # 3 * 128: lane-aligned padding of the hidden dimension
OUT_DIM = 3
CHUNK = 512     # batch columns per fused inner step (multiple of 128)


def _cdiv(a, b):
    return -(-a // b)


def mlp_kernel(x_ref, w1_ref, b1_ref, w2_ref, b2_ref, o_ref):
    """Fused out = W2 @ relu(W1 @ x + b1) + b2 over one batch tile.

    x_ref : [C, IN_DIM, CHUNK]   (batch on lanes)
    w1_ref: [HID_PAD, IN_DIM]    b1_ref: [HID_PAD, 1]
    w2_ref: [HID_PAD, OUT_DIM]   b2_ref: [OUT_DIM, 1]
    o_ref : [C, OUT_DIM, CHUNK]
    """
    n_chunks = x_ref.shape[0]          # static
    chunk = x_ref.shape[2]             # static

    # Hoisted lane-broadcasts of the resident weights: done once per tile and
    # reused by every chunk (JAX does not CSE broadcast_in_dim inside loops).
    w1b = [jnp.broadcast_to(w1_ref[:, k:k + 1], (HID_PAD, chunk))
           for k in range(IN_DIM)]
    b1b = jnp.broadcast_to(b1_ref[...], (HID_PAD, chunk))
    w2b = [jnp.broadcast_to(w2_ref[:, j:j + 1], (HID_PAD, chunk))
           for j in range(OUT_DIM)]
    b2 = b2_ref[...]                   # [OUT_DIM, 1]

    def body(c, carry):
        xc = x_ref[c]                                   # [IN_DIM, chunk]
        # ---- Layer 1 on the VPU: 4 broadcast FMAs, bias folded into init.
        # x rows broadcast along sublanes (cheap); w1 columns pre-broadcast above.
        h = b1b + w1b[0] * xc[0:1, :]
        for k in range(1, IN_DIM):                      # static unroll, 4 taps
            h = h + w1b[k] * xc[k:k + 1, :]
        h = jnp.maximum(h, 0.0)                         # [HID_PAD, chunk]
        # ---- Layer 2 on the VPU/XLU: 3 weighted sublane reductions (f32).
        rows = [jnp.sum(w2b[j] * h, axis=0, keepdims=True)
                for j in range(OUT_DIM)]                # each [1, chunk]
        o_ref[c] = jnp.concatenate(rows, axis=0) + b2   # [OUT_DIM, chunk]
        return carry

    lax.fori_loop(0, n_chunks, body, 0)


def net_forward(x, w1p, b1p, w2p, b2p, *, tb=4096):
    """x: [B, 4] f32 -> [B, 3] f32. (w1p, b1p, w2p, b2p) from pack_params."""
    B = x.shape[0]

    # ---- adaptive batch tiling: minimize padding waste, keep >=2 grid steps
    # when possible so "parallel" shards across both TensorCores on v7x. ----
    n_chunks_total = max(1, _cdiv(B, CHUNK))
    chunks_per_tile = max(1, min(tb // CHUNK, n_chunks_total))
    n_tiles = _cdiv(n_chunks_total, chunks_per_tile)
    if n_tiles == 1 and n_chunks_total >= 2:
        n_tiles = 2
    chunks_per_tile = _cdiv(n_chunks_total, n_tiles)
    c_total = n_tiles * chunks_per_tile
    b_pad = c_total * CHUNK

    # ---- layout plumbing in XLA: batch onto lanes, chunked leading axis. ----
    xp = jnp.pad(x.astype(jnp.float32), ((0, b_pad - B), (0, 0)))        # [b_pad, 4]
    xc = xp.T.reshape(IN_DIM, c_total, CHUNK).transpose(1, 0, 2)         # [C, 4, CHUNK]

    out = pl.pallas_call(
        mlp_kernel,
        out_shape=jax.ShapeDtypeStruct((c_total, OUT_DIM, CHUNK), jnp.float32),
        grid_spec=pltpu.PrefetchScalarGridSpec(
            num_scalar_prefetch=0,
            grid=(n_tiles,),
            in_specs=[
                pl.BlockSpec((chunks_per_tile, IN_DIM, CHUNK), lambda i: (i, 0, 0)),
                pl.BlockSpec((HID_PAD, IN_DIM), lambda i: (0, 0)),   # w1 resident
                pl.BlockSpec((HID_PAD, 1), lambda i: (0, 0)),        # b1 resident
                pl.BlockSpec((HID_PAD, OUT_DIM), lambda i: (0, 0)),  # w2 resident
                pl.BlockSpec((OUT_DIM, 1), lambda i: (0, 0)),        # b2 resident
            ],
            out_specs=pl.BlockSpec((chunks_per_tile, OUT_DIM, CHUNK),
                                   lambda i: (i, 0, 0)),
        ),
        compiler_params=pltpu.CompilerParams(
            dimension_semantics=("parallel",),       # dual-TC shard on v7x
            vmem_limit_bytes=32 * 1024 * 1024,       # ~12 MiB actual footprint
        ),
    )(xc, w1p, b1p, w2p, b2p)

    # [C, 3, CHUNK] -> [3, b_pad] -> [B, 3]
    out = out.transpose(1, 0, 2).reshape(OUT_DIM, b_pad)
    return out[:, :B].T


def init_params(key):
    """Deterministic init matching the PyTorch module's __init__ semantics.

    hid1.weight: xavier_uniform_ (gain=1) over a [300, 4] matrix.
    hid1.bias, oupt.weight, oupt.bias: PyTorch default Linear init,
        uniform(-1/sqrt(fan_in), 1/sqrt(fan_in)).
    Returned in PyTorch layout (unpadded, f32).
    """
    k1, k2, k3, k4 = jax.random.split(key, 4)
    bound1 = math.sqrt(6.0 / (IN_DIM + HID_DIM))
    w1 = jax.random.uniform(k1, (HID_DIM, IN_DIM), jnp.float32,
                            minval=-bound1, maxval=bound1)
    bb1 = 1.0 / math.sqrt(IN_DIM)
    b1 = jax.random.uniform(k2, (HID_DIM,), jnp.float32, minval=-bb1, maxval=bb1)
    bb2 = 1.0 / math.sqrt(HID_DIM)
    w2 = jax.random.uniform(k3, (OUT_DIM, HID_DIM), jnp.float32,
                            minval=-bb2, maxval=bb2)
    b2 = jax.random.uniform(k4, (OUT_DIM,), jnp.float32, minval=-bb2, maxval=bb2)
    return w1, b1, w2, b2


def pack_params(w1, b1, w2, b2):
    """Zero-pad hidden dim 300 -> 384 and lay weights out for the kernel.
    All f32 (no bf16 cast — keeps full accuracy and v5e-friendly VPU math)."""
    pad = HID_PAD - HID_DIM
    w1p = jnp.pad(w1.astype(jnp.float32), ((0, pad), (0, 0)))             # [384, 4]
    b1p = jnp.pad(b1.astype(jnp.float32), (0, pad)).reshape(HID_PAD, 1)   # [384, 1]
    w2p = jnp.pad(w2.T.astype(jnp.float32), ((0, pad), (0, 0)))           # [384, 3]
    b2p = b2.astype(jnp.float32).reshape(OUT_DIM, 1)                      # [3, 1]
    return w1p, b1p, w2p, b2p


def _reference(x, w1, b1, w2, b2):
    hp = jax.lax.Precision.HIGHEST
    h = jnp.maximum(jnp.dot(x, w1.T, precision=hp) + b1, 0.0)
    return jnp.dot(h, w2.T, precision=hp) + b2


if __name__ == "__main__":
    key = jax.random.PRNGKey(0)
    k_x, k_x2, k_p = jax.random.split(key, 3)

    w1, b1, w2, b2 = init_params(k_p)
    packed = pack_params(w1, b1, w2, b2)

    # Small demo batch.
    B = 8
    x = jax.random.normal(k_x, (B, IN_DIM), jnp.float32)
    out = jax.block_until_ready(net_forward(x, *packed))
    ref = _reference(x, w1, b1, w2, b2)
    assert out.shape == (B, OUT_DIM)
    assert jnp.allclose(out, ref, atol=1e-4, rtol=1e-4), \
        float(jnp.max(jnp.abs(out - ref)))

    # Awkward batch size: exercises multi-chunk, multi-tile grid and padding.
    B2 = 1537
    x2 = jax.random.normal(k_x2, (B2, IN_DIM), jnp.float32)
    out2 = jax.block_until_ready(net_forward(x2, *packed))
    ref2 = _reference(x2, w1, b1, w2, b2)
    assert out2.shape == (B2, OUT_DIM)
    assert jnp.allclose(out2, ref2, atol=1e-4, rtol=1e-4), \
        float(jnp.max(jnp.abs(out2 - ref2)))

    print("KERNEL_OK")
</pallas_src>

<mosaic_0001>
module attributes {stable_mosaic.version = 11 : i64} {
  func.func @mlp_kernel(%arg0: i32, %arg1: memref<1x4x512xf32, #tpu.memory_space<vmem>>, %arg2: memref<384x4xf32, #tpu.memory_space<vmem>>, %arg3: memref<384x1xf32, #tpu.memory_space<vmem>>, %arg4: memref<384x3xf32, #tpu.memory_space<vmem>>, %arg5: memref<3x1xf32, #tpu.memory_space<vmem>>, %arg6: memref<1x3x512xf32, #tpu.memory_space<vmem>>) attributes {dimension_semantics = [#tpu.dimension_semantics<parallel>], iteration_bounds = array<i64: 1>, scalar_prefetch = 0 : i64, scratch_operands = 0 : i64, tpu.core_type = #tpu.core_type<tc>, window_params = [{transform_indices = @transform_0, window_bounds = array<i64: 1, 4, 512>}, {pipeline_mode = #tpu.pipeline_mode<synchronous>, transform_indices = @transform_1, window_bounds = array<i64: 384, 4>}, {pipeline_mode = #tpu.pipeline_mode<synchronous>, transform_indices = @transform_2, window_bounds = array<i64: 384, 1>}, {pipeline_mode = #tpu.pipeline_mode<synchronous>, transform_indices = @transform_3, window_bounds = array<i64: 384, 3>}, {pipeline_mode = #tpu.pipeline_mode<synchronous>, transform_indices = @transform_4, window_bounds = array<i64: 3, 1>}, {transform_indices = @transform_5, window_bounds = array<i64: 1, 3, 512>}]} {
    %c0 = arith.constant 0 : index
    %c0_0 = arith.constant 0 : index
    %0 = vector.load %arg2[%c0, %c0_0] : memref<384x4xf32, #tpu.memory_space<vmem>>, vector<384x1xf32>
    %1 = vector.shape_cast %0 : vector<384x1xf32> to vector<384x1xf32>
    %2 = vector.broadcast %1 : vector<384x1xf32> to vector<384x512xf32>
    %c0_1 = arith.constant 0 : index
    %c1 = arith.constant 1 : index
    %3 = vector.load %arg2[%c0_1, %c1] : memref<384x4xf32, #tpu.memory_space<vmem>>, vector<384x1xf32>
    %4 = vector.shape_cast %3 : vector<384x1xf32> to vector<384x1xf32>
    %5 = vector.broadcast %4 : vector<384x1xf32> to vector<384x512xf32>
    %c0_2 = arith.constant 0 : index
    %c2 = arith.constant 2 : index
    %6 = vector.load %arg2[%c0_2, %c2] : memref<384x4xf32, #tpu.memory_space<vmem>>, vector<384x1xf32>
    %7 = vector.shape_cast %6 : vector<384x1xf32> to vector<384x1xf32>
    %8 = vector.broadcast %7 : vector<384x1xf32> to vector<384x512xf32>
    %c0_3 = arith.constant 0 : index
    %c3 = arith.constant 3 : index
    %9 = vector.load %arg2[%c0_3, %c3] : memref<384x4xf32, #tpu.memory_space<vmem>>, vector<384x1xf32>
    %10 = vector.shape_cast %9 : vector<384x1xf32> to vector<384x1xf32>
    %11 = vector.broadcast %10 : vector<384x1xf32> to vector<384x512xf32>
    %c0_4 = arith.constant 0 : index
    %c0_5 = arith.constant 0 : index
    %12 = vector.load %arg3[%c0_4, %c0_5] : memref<384x1xf32, #tpu.memory_space<vmem>>, vector<384x1xf32>
    %13 = vector.shape_cast %12 : vector<384x1xf32> to vector<384x1xf32>
    %14 = vector.broadcast %13 : vector<384x1xf32> to vector<384x512xf32>
    %c0_6 = arith.constant 0 : index
    %c0_7 = arith.constant 0 : index
    %15 = vector.load %arg4[%c0_6, %c0_7] : memref<384x3xf32, #tpu.memory_space<vmem>>, vector<384x1xf32>
    %16 = vector.shape_cast %15 : vector<384x1xf32> to vector<384x1xf32>
    %17 = vector.broadcast %16 : vector<384x1xf32> to vector<384x512xf32>
    %c0_8 = arith.constant 0 : index
    %c1_9 = arith.constant 1 : index
    %18 = vector.load %arg4[%c0_8, %c1_9] : memref<384x3xf32, #tpu.memory_space<vmem>>, vector<384x1xf32>
    %19 = vector.shape_cast %18 : vector<384x1xf32> to vector<384x1xf32>
    %20 = vector.broadcast %19 : vector<384x1xf32> to vector<384x512xf32>
    %c0_10 = arith.constant 0 : index
    %c2_11 = arith.constant 2 : index
    %21 = vector.load %arg4[%c0_10, %c2_11] : memref<384x3xf32, #tpu.memory_space<vmem>>, vector<384x1xf32>
    %22 = vector.shape_cast %21 : vector<384x1xf32> to vector<384x1xf32>
    %23 = vector.broadcast %22 : vector<384x1xf32> to vector<384x512xf32>
    %c0_12 = arith.constant 0 : index
    %c0_13 = arith.constant 0 : index
    %24 = vector.load %arg5[%c0_12, %c0_13] : memref<3x1xf32, #tpu.memory_space<vmem>>, vector<3x1xf32>
    %c0_i32 = arith.constant 0 : i32
    %25 = arith.index_cast %c0_i32 : i32 to index
    %c0_14 = arith.constant 0 : index
    %c0_15 = arith.constant 0 : index
    %26 = vector.load %arg1[%25, %c0_14, %c0_15] : memref<1x4x512xf32, #tpu.memory_space<vmem>>, vector<1x4x512xf32>
    %27 = vector.shape_cast %26 : vector<1x4x512xf32> to vector<4x512xf32>
    %28 = vector.extract_strided_slice %27 {offsets = [0, 0], sizes = [1, 512], strides = [1, 1]} : vector<4x512xf32> to vector<1x512xf32>
    %29 = vector.broadcast %28 : vector<1x512xf32> to vector<384x512xf32>
    %30 = arith.mulf %2, %29 : vector<384x512xf32>
    %31 = arith.addf %14, %30 : vector<384x512xf32>
    %32 = vector.extract_strided_slice %27 {offsets = [1, 0], sizes = [1, 512], strides = [1, 1]} : vector<4x512xf32> to vector<1x512xf32>
    %33 = vector.broadcast %32 : vector<1x512xf32> to vector<384x512xf32>
    %34 = arith.mulf %5, %33 : vector<384x512xf32>
    %35 = arith.addf %31, %34 : vector<384x512xf32>
    %36 = vector.extract_strided_slice %27 {offsets = [2, 0], sizes = [1, 512], strides = [1, 1]} : vector<4x512xf32> to vector<1x512xf32>
    %37 = vector.broadcast %36 : vector<1x512xf32> to vector<384x512xf32>
    %38 = arith.mulf %8, %37 : vector<384x512xf32>
    %39 = arith.addf %35, %38 : vector<384x512xf32>
    %40 = vector.extract_strided_slice %27 {offsets = [3, 0], sizes = [1, 512], strides = [1, 1]} : vector<4x512xf32> to vector<1x512xf32>
    %41 = vector.broadcast %40 : vector<1x512xf32> to vector<384x512xf32>
    %42 = arith.mulf %11, %41 : vector<384x512xf32>
    %43 = arith.addf %39, %42 : vector<384x512xf32>
    %cst = arith.constant 0.000000e+00 : f32
    %44 = vector.broadcast %cst : f32 to vector<384x512xf32>
    %45 = arith.maximumf %43, %44 : vector<384x512xf32>
    %46 = arith.mulf %17, %45 : vector<384x512xf32>
    %cst_16 = arith.constant dense<0.000000e+00> : vector<512xf32>
    %47 = vector.multi_reduction <add>, %46, %cst_16 [0] : vector<384x512xf32> to vector<512xf32>
    %48 = vector.shape_cast %47 : vector<512xf32> to vector<1x512xf32>
    %49 = arith.mulf %20, %45 : vector<384x512xf32>
    %cst_17 = arith.constant dense<0.000000e+00> : vector<512xf32>
    %50 = vector.multi_reduction <add>, %49, %cst_17 [0] : vector<384x512xf32> to vector<512xf32>
    %51 = vector.shape_cast %50 : vector<512xf32> to vector<1x512xf32>
    %52 = arith.mulf %23, %45 : vector<384x512xf32>
    %cst_18 = arith.constant dense<0.000000e+00> : vector<512xf32>
    %53 = vector.multi_reduction <add>, %52, %cst_18 [0] : vector<384x512xf32> to vector<512xf32>
    %54 = vector.shape_cast %53 : vector<512xf32> to vector<1x512xf32>
    %55 = tpu.concatenate %48, %51, %54 in 0 : vector<1x512xf32>, vector<1x512xf32>, vector<1x512xf32> -> vector<3x512xf32>
    %56 = vector.broadcast %24 : vector<3x1xf32> to vector<3x512xf32>
    %57 = arith.addf %55, %56 : vector<3x512xf32>
    %58 = arith.index_cast %c0_i32 : i32 to index
    %c0_19 = arith.constant 0 : index
    %c0_20 = arith.constant 0 : index
    %59 = vector.load %arg6[%58, %c0_19, %c0_20] : memref<1x3x512xf32, #tpu.memory_space<vmem>>, vector<1x3x512xf32>
    %60 = vector.shape_cast %59 : vector<1x3x512xf32> to vector<3x512xf32>
    %61 = vector.shape_cast %57 : vector<3x512xf32> to vector<1x3x512xf32>
    tpu.vector_store %arg6[%58, %c0_19, %c0_20], %61 {strides = array<i32>} : memref<1x3x512xf32, #tpu.memory_space<vmem>>, vector<1x3x512xf32>,
    %c1_i32 = arith.constant 1 : i32
    return
  }
  func.func @transform_0(%arg0: i32) -> (i32, i32, i32) {
    %c0_i32 = arith.constant 0 : i32
    %c0_i32_0 = arith.constant 0 : i32
    %c0_i32_1 = arith.constant 0 : i32
    return %arg0, %c0_i32, %c0_i32_0 : i32, i32, i32
  }
  func.func @transform_1(%arg0: i32) -> (i32, i32) {
    %c0_i32 = arith.constant 0 : i32
    %c0_i32_0 = arith.constant 0 : i32
    %c0_i32_1 = arith.constant 0 : i32
    return %c0_i32, %c0_i32_0 : i32, i32
  }
  func.func @transform_2(%arg0: i32) -> (i32, i32) {
    %c0_i32 = arith.constant 0 : i32
    %c0_i32_0 = arith.constant 0 : i32
    %c0_i32_1 = arith.constant 0 : i32
    return %c0_i32, %c0_i32_0 : i32, i32
  }
  func.func @transform_3(%arg0: i32) -> (i32, i32) {
    %c0_i32 = arith.constant 0 : i32
    %c0_i32_0 = arith.constant 0 : i32
    %c0_i32_1 = arith.constant 0 : i32
    return %c0_i32, %c0_i32_0 : i32, i32
  }
  func.func @transform_4(%arg0: i32) -> (i32, i32) {
    %c0_i32 = arith.constant 0 : i32
    %c0_i32_0 = arith.constant 0 : i32
    %c0_i32_1 = arith.constant 0 : i32
    return %c0_i32, %c0_i32_0 : i32, i32
  }
  func.func @transform_5(%arg0: i32) -> (i32, i32, i32) {
    %c0_i32 = arith.constant 0 : i32
    %c0_i32_0 = arith.constant 0 : i32
    %c0_i32_1 = arith.constant 0 : i32
    return %arg0, %c0_i32, %c0_i32_0 : i32, i32, i32
  }
}

</mosaic_0001>

<llo_original>
// kernel: tpu_custom_call.1
$region0: #{tpu_custom_call.1}
  #allocation0 [shape = 'u32[]', space=smem, size = 0x4, offset = 0x4, fixed_abs, tag = 'smem constant byte address 0x4 - core index']
  #allocation1 [shape = 'u32[144,128]{1,0:T(1,128)}', space=vmem, size = 0x12000, scoped, tag = 'internal scratch']
  %s0 = inlined_call_operand.vmem [shape: f32[1,4,512], index: 0, kind: input, shape index: {}]
  %s1 = inlined_call_operand.vmem [shape: f32[384,4], index: 1, kind: input, shape index: {}]
  %s2 = inlined_call_operand.vmem [shape: f32[384,1], index: 2, kind: input, shape index: {}]
  %s3 = inlined_call_operand.vmem [shape: f32[384,3], index: 3, kind: input, shape index: {}]
  %s4 = inlined_call_operand.vmem [shape: f32[3,1], index: 4, kind: input, shape index: {}]
  %s5 = inlined_call_operand.vmem [shape: f32[1,3,512], index: 5, kind: output, shape index: {}]
  %s6 = sld [smem:[#allocation0]]
  $region30: #{tpu_custom_call.1} parent=0
    _
  %s8 = ssub.s32 1, %s6
  %s9 = scalar_select 0, %s8, %s6
  // Predicated region
  $region2: #{tpu_custom_call.1} parent=0 // pred_check
    _
  $region3: #{tpu_custom_call.1} parent=0 // pred_check_branch
    %11 = sbr.rel (0) target = $region5
  $region4: #{tpu_custom_call.1} parent=0 // pred_region
    _
  $region5: #{tpu_custom_call.1} parent=0 // pred_fallthru
    _
  // Predicated region
  $region6: #{tpu_custom_call.1} parent=0 // pred_check
    _
  $region7: #{tpu_custom_call.1} parent=0 // pred_check_branch
    %13 = sbr.rel (0) target = $region9
  $region8: #{tpu_custom_call.1} parent=0 // pred_region
    _
  $region9: #{tpu_custom_call.1} parent=0 // pred_fallthru
    _
  // Predicated region
  $region10: #{tpu_custom_call.1} parent=0 // pred_check
    _
  $region11: #{tpu_custom_call.1} parent=0 // pred_check_branch
    %15 = sbr.rel (0) target = $region13
  $region12: #{tpu_custom_call.1} parent=0 // pred_region
    _
  $region13: #{tpu_custom_call.1} parent=0 // pred_fallthru
    _
  // Predicated region
  $region14: #{tpu_custom_call.1} parent=0 // pred_check
    _
  $region15: #{tpu_custom_call.1} parent=0 // pred_check_branch
    %17 = sbr.rel (0) target = $region17
  $region16: #{tpu_custom_call.1} parent=0 // pred_region
    _
  $region17: #{tpu_custom_call.1} parent=0 // pred_fallthru
    _
  // Predicated region
  $region18: #{tpu_custom_call.1} parent=0 // pred_check
    _
  $region19: #{tpu_custom_call.1} parent=0 // pred_check_branch
    %19 = sbr.rel (0) target = $region21
  $region20: #{tpu_custom_call.1} parent=0 // pred_region
    _
  $region21: #{tpu_custom_call.1} parent=0 // pred_fallthru
    _
  %v20 = vld [vmem:[%s1] sm:$0xff]
  %v21 = vld [vmem:[%s1 + $0x8] sm:$0xff]
  %v22 = vld [vmem:[%s1 + $0x10] sm:$0xff]
  %v23 = vld [vmem:[%s1 + $0x18] sm:$0xff]
  %v24 = vld [vmem:[%s1 + $0x20] sm:$0xff]
  %v25 = vld [vmem:[%s1 + $0x28] sm:$0xff]
  %v26 = vld [vmem:[%s1 + $0x30] sm:$0xff]
  %v27 = vld [vmem:[%s1 + $0x38] sm:$0xff]
  %v28 = vld [vmem:[%s1 + $0x40] sm:$0xff]
  %v29 = vld [vmem:[%s1 + $0x48] sm:$0xff]
  %v30 = vld [vmem:[%s1 + $0x50] sm:$0xff]
  %v31 = vld [vmem:[%s1 + $0x58] sm:$0xff]
  %v32 = vld [vmem:[%s1 + $0x60] sm:$0xff]
  %v33 = vld [vmem:[%s1 + $0x68] sm:$0xff]
  %v34 = vld [vmem:[%s1 + $0x70] sm:$0xff]
  %v35 = vld [vmem:[%s1 + $0x78] sm:$0xff]
  %v36 = vld [vmem:[%s1 + $0x80] sm:$0xff]
  %v37 = vld [vmem:[%s1 + $0x88] sm:$0xff]
  %v38 = vld [vmem:[%s1 + $0x90] sm:$0xff]
  %v39 = vld [vmem:[%s1 + $0x98] sm:$0xff]
  %v40 = vld [vmem:[%s1 + $0xa0] sm:$0xff]
  %v41 = vld [vmem:[%s1 + $0xa8] sm:$0xff]
  %v42 = vld [vmem:[%s1 + $0xb0] sm:$0xff]
  %v43 = vld [vmem:[%s1 + $0xb8] sm:$0xff]
  %v44 = vld [vmem:[%s1 + $0xc0] sm:$0xff]
  %v45 = vld [vmem:[%s1 + $0xc8] sm:$0xff]
  %v46 = vld [vmem:[%s1 + $0xd0] sm:$0xff]
  %v47 = vld [vmem:[%s1 + $0xd8] sm:$0xff]
  %v48 = vld [vmem:[%s1 + $0xe0] sm:$0xff]
  %v49 = vld [vmem:[%s1 + $0xe8] sm:$0xff]
  %v50 = vld [vmem:[%s1 + $0xf0] sm:$0xff]
  %v51 = vld [vmem:[%s1 + $0xf8] sm:$0xff]
  %v52 = vld [vmem:[%s1 + $0x100] sm:$0xff]
  %v53 = vld [vmem:[%s1 + $0x108] sm:$0xff]
  %v54 = vld [vmem:[%s1 + $0x110] sm:$0xff]
  %v55 = vld [vmem:[%s1 + $0x118] sm:$0xff]
  %v56 = vld [vmem:[%s1 + $0x120] sm:$0xff]
  %v57 = vld [vmem:[%s1 + $0x128] sm:$0xff]
  %v58 = vld [vmem:[%s1 + $0x130] sm:$0xff]
  %v59 = vld [vmem:[%s1 + $0x138] sm:$0xff]
  %v60 = vld [vmem:[%s1 + $0x140] sm:$0xff]
  %v61 = vld [vmem:[%s1 + $0x148] sm:$0xff]
  %v62 = vld [vmem:[%s1 + $0x150] sm:$0xff]
  %v63 = vld [vmem:[%s1 + $0x158] sm:$0xff]
  %v64 = vld [vmem:[%s1 + $0x160] sm:$0xff]
  %v65 = vld [vmem:[%s1 + $0x168] sm:$0xff]
  %v66 = vld [vmem:[%s1 + $0x170] sm:$0xff]
  %v67 = vld [vmem:[%s1 + $0x178] sm:$0xff]
  %69 = vset.pattern.permute.xlu0 0
  %70 = vperm.xlu0 %69, %v20
  %v71 = vpop.permute.xlu0 %70
  %74 = vset.pattern.permute.xlu0 0
  %75 = vperm.xlu0 %74, %v21
  %v76 = vpop.permute.xlu0 %75
  %79 = vset.pattern.permute.xlu0 0
  %80 = vperm.xlu0 %79, %v22
  %v81 = vpop.permute.xlu0 %80
  %84 = vset.pattern.permute.xlu0 0
  %85 = vperm.xlu0 %84, %v23
  %v86 = vpop.permute.xlu0 %85
  %89 = vset.pattern.permute.xlu0 0
  %90 = vperm.xlu0 %89, %v24
  %v91 = vpop.permute.xlu0 %90
  %94 = vset.pattern.permute.xlu0 0
  %95 = vperm.xlu0 %94, %v25
  %v96 = vpop.permute.xlu0 %95
  %99 = vset.pattern.permute.xlu0 0
  %100 = vperm.xlu0 %99, %v26
  %v101 = vpop.permute.xlu0 %100
  %104 = vset.pattern.permute.xlu0 0
  %105 = vperm.xlu0 %104, %v27
  %v106 = vpop.permute.xlu0 %105
  %109 = vset.pattern.permute.xlu0 0
  %110 = vperm.xlu0 %109, %v28
  %v111 = vpop.permute.xlu0 %110
  %114 = vset.pattern.permute.xlu0 0
  %115 = vperm.xlu0 %114, %v29
  %v116 = vpop.permute.xlu0 %115
  %119 = vset.pattern.permute.xlu0 0
  %120 = vperm.xlu0 %119, %v30
  %v121 = vpop.permute.xlu0 %120
  %124 = vset.pattern.permute.xlu0 0
  %125 = vperm.xlu0 %124, %v31
  %v126 = vpop.permute.xlu0 %125
  %129 = vset.pattern.permute.xlu0 0
  %130 = vperm.xlu0 %129, %v32
  %v131 = vpop.permute.xlu0 %130
  %134 = vset.pattern.permute.xlu0 0
  %135 = vperm.xlu0 %134, %v33
  %v136 = vpop.permute.xlu0 %135
  %139 = vset.pattern.permute.xlu0 0
  %140 = vperm.xlu0 %139, %v34
  %v141 = vpop.permute.xlu0 %140
  %144 = vset.pattern.permute.xlu0 0
  %145 = vperm.xlu0 %144, %v35
  %v146 = vpop.permute.xlu0 %145
  %149 = vset.pattern.permute.xlu0 0
  %150 = vperm.xlu0 %149, %v36
  %v151 = vpop.permute.xlu0 %150
  %154 = vset.pattern.permute.xlu0 0
  %155 = vperm.xlu0 %154, %v37
  %v156 = vpop.permute.xlu0 %155
  %159 = vset.pattern.permute.xlu0 0
  %160 = vperm.xlu0 %159, %v38
  %v161 = vpop.permute.xlu0 %160
  %164 = vset.pattern.permute.xlu0 0
  %165 = vperm.xlu0 %164, %v39
  %v166 = vpop.permute.xlu0 %165
  %169 = vset.pattern.permute.xlu0 0
  %170 = vperm.xlu0 %169, %v40
  %v171 = vpop.permute.xlu0 %170
  %174 = vset.pattern.permute.xlu0 0
  %175 = vperm.xlu0 %174, %v41
  %v176 = vpop.permute.xlu0 %175
  %179 = vset.pattern.permute.xlu0 0
  %180 = vperm.xlu0 %179, %v42
  %v181 = vpop.permute.xlu0 %180
  %184 = vset.pattern.permute.xlu0 0
  %185 = vperm.xlu0 %184, %v43
  %v186 = vpop.permute.xlu0 %185
  %189 = vset.pattern.permute.xlu0 0
  %190 = vperm.xlu0 %189, %v44
  %v191 = vpop.permute.xlu0 %190
  %194 = vset.pattern.permute.xlu0 0
  %195 = vperm.xlu0 %194, %v45
  %v196 = vpop.permute.xlu0 %195
  %199 = vset.pattern.permute.xlu0 0
  %200 = vperm.xlu0 %199, %v46
  %v201 = vpop.permute.xlu0 %200
  %204 = vset.pattern.permute.xlu0 0
  %205 = vperm.xlu0 %204, %v47
  %v206 = vpop.permute.xlu0 %205
  %209 = vset.pattern.permute.xlu0 0
  %210 = vperm.xlu0 %209, %v48
  %v211 = vpop.permute.xlu0 %210
  %214 = vset.pattern.permute.xlu0 0
  %215 = vperm.xlu0 %214, %v49
  %v216 = vpop.permute.xlu0 %215
  %219 = vset.pattern.permute.xlu0 0
  %220 = vperm.xlu0 %219, %v50
  %v221 = vpop.permute.xlu0 %220
  %224 = vset.pattern.permute.xlu0 0
  %225 = vperm.xlu0 %224, %v51
  %v226 = vpop.permute.xlu0 %225
  %229 = vset.pattern.permute.xlu0 0
  %230 = vperm.xlu0 %229, %v52
  %v231 = vpop.permute.xlu0 %230
  %234 = vset.pattern.permute.xlu0 0
  %235 = vperm.xlu0 %234, %v53
  %v236 = vpop.permute.xlu0 %235
  %239 = vset.pattern.permute.xlu0 0
  %240 = vperm.xlu0 %239, %v54
  %v241 = vpop.permute.xlu0 %240
  %244 = vset.pattern.permute.xlu0 0
  %245 = vperm.xlu0 %244, %v55
  %v246 = vpop.permute.xlu0 %245
  %249 = vset.pattern.permute.xlu0 0
  %250 = vperm.xlu0 %249, %v56
  %v251 = vpop.permute.xlu0 %250
  %254 = vset.pattern.permute.xlu0 0
  %255 = vperm.xlu0 %254, %v57
  %v256 = vpop.permute.xlu0 %255
  %259 = vset.pattern.permute.xlu0 0
  %260 = vperm.xlu0 %259, %v58
  %v261 = vpop.permute.xlu0 %260
  %264 = vset.pattern.permute.xlu0 0
  %265 = vperm.xlu0 %264, %v59
  %v266 = vpop.permute.xlu0 %265
  %269 = vset.pattern.permute.xlu0 0
  %270 = vperm.xlu0 %269, %v60
  %v271 = vpop.permute.xlu0 %270
  %274 = vset.pattern.permute.xlu0 0
  %275 = vperm.xlu0 %274, %v61
  %v276 = vpop.permute.xlu0 %275
  %279 = vset.pattern.permute.xlu0 0
  %280 = vperm.xlu0 %279, %v62
  %v281 = vpop.permute.xlu0 %280
  %284 = vset.pattern.permute.xlu0 0
  %285 = vperm.xlu0 %284, %v63
  %v286 = vpop.permute.xlu0 %285
  %289 = vset.pattern.permute.xlu0 0
  %290 = vperm.xlu0 %289, %v64
  %v291 = vpop.permute.xlu0 %290
  %294 = vset.pattern.permute.xlu0 0
  %295 = vperm.xlu0 %294, %v65
  %v296 = vpop.permute.xlu0 %295
  %299 = vset.pattern.permute.xlu0 0
  %300 = vperm.xlu0 %299, %v66
  %v301 = vpop.permute.xlu0 %300
  %304 = vset.pattern.permute.xlu0 0
  %305 = vperm.xlu0 %304, %v67
  %v306 = vpop.permute.xlu0 %305
  %308 = vset.pattern.permute.xlu0 1
  %309 = vperm.xlu0 %308, %v20
  %v310 = vpop.permute.xlu0 %309
  %312 = vset.pattern.permute.xlu0 1
  %313 = vperm.xlu0 %312, %v21
  %v314 = vpop.permute.xlu0 %313
  %316 = vset.pattern.permute.xlu0 1
  %317 = vperm.xlu0 %316, %v22
  %v318 = vpop.permute.xlu0 %317
  %320 = vset.pattern.permute.xlu0 1
  %321 = vperm.xlu0 %320, %v23
  %v322 = vpop.permute.xlu0 %321
  %324 = vset.pattern.permute.xlu0 1
  %325 = vperm.xlu0 %324, %v24
  %v326 = vpop.permute.xlu0 %325
  %328 = vset.pattern.permute.xlu0 1
  %329 = vperm.xlu0 %328, %v25
  %v330 = vpop.permute.xlu0 %329
  %332 = vset.pattern.permute.xlu0 1
  %333 = vperm.xlu0 %332, %v26
  %v334 = vpop.permute.xlu0 %333
  %336 = vset.pattern.permute.xlu0 1
  %337 = vperm.xlu0 %336, %v27
  %v338 = vpop.permute.xlu0 %337
  %340 = vset.pattern.permute.xlu0 1
  %341 = vperm.xlu0 %340, %v28
  %v342 = vpop.permute.xlu0 %341
  %344 = vset.pattern.permute.xlu0 1
  %345 = vperm.xlu0 %344, %v29
  %v346 = vpop.permute.xlu0 %345
  %348 = vset.pattern.permute.xlu0 1
  %349 = vperm.xlu0 %348, %v30
  %v350 = vpop.permute.xlu0 %349
  %352 = vset.pattern.permute.xlu0 1
  %353 = vperm.xlu0 %352, %v31
  %v354 = vpop.permute.xlu0 %353
  %356 = vset.pattern.permute.xlu0 1
  %357 = vperm.xlu0 %356, %v32
  %v358 = vpop.permute.xlu0 %357
  %360 = vset.pattern.permute.xlu0 1
  %361 = vperm.xlu0 %360, %v33
  %v362 = vpop.permute.xlu0 %361
  %364 = vset.pattern.permute.xlu0 1
  %365 = vperm.xlu0 %364, %v34
  %v366 = vpop.permute.xlu0 %365
  %368 = vset.pattern.permute.xlu0 1
  %369 = vperm.xlu0 %368, %v35
  %v370 = vpop.permute.xlu0 %369
  %372 = vset.pattern.permute.xlu0 1
  %373 = vperm.xlu0 %372, %v36
  %v374 = vpop.permute.xlu0 %373
  %376 = vset.pattern.permute.xlu0 1
  %377 = vperm.xlu0 %376, %v37
  %v378 = vpop.permute.xlu0 %377
  %380 = vset.pattern.permute.xlu0 1
  %381 = vperm.xlu0 %380, %v38
  %v382 = vpop.permute.xlu0 %381
  %384 = vset.pattern.permute.xlu0 1
  %385 = vperm.xlu0 %384, %v39
  %v386 = vpop.permute.xlu0 %385
  %388 = vset.pattern.permute.xlu0 1
  %389 = vperm.xlu0 %388, %v40
  %v390 = vpop.permute.xlu0 %389
  %392 = vset.pattern.permute.xlu0 1
  %393 = vperm.xlu0 %392, %v41
  %v394 = vpop.permute.xlu0 %393
  %396 = vset.pattern.permute.xlu0 1
  %397 = vperm.xlu0 %396, %v42
  %v398 = vpop.permute.xlu0 %397
  %400 = vset.pattern.permute.xlu0 1
  %401 = vperm.xlu0 %400, %v43
  %v402 = vpop.permute.xlu0 %401
  %404 = vset.pattern.permute.xlu0 1
  %405 = vperm.xlu0 %404, %v44
  %v406 = vpop.permute.xlu0 %405
  %408 = vset.pattern.permute.xlu0 1
  %409 = vperm.xlu0 %408, %v45
  %v410 = vpop.permute.xlu0 %409
  %412 = vset.pattern.permute.xlu0 1
  %413 = vperm.xlu0 %412, %v46
  %v414 = vpop.permute.xlu0 %413
  %416 = vset.pattern.permute.xlu0 1
  %417 = vperm.xlu0 %416, %v47
  %v418 = vpop.permute.xlu0 %417
  %420 = vset.pattern.permute.xlu0 1
  %421 = vperm.xlu0 %420, %v48
  %v422 = vpop.permute.xlu0 %421
  %424 = vset.pattern.permute.xlu0 1
  %425 = vperm.xlu0 %424, %v49
  %v426 = vpop.permute.xlu0 %425
  %428 = vset.pattern.permute.xlu0 1
  %429 = vperm.xlu0 %428, %v50
  %v430 = vpop.permute.xlu0 %429
  %432 = vset.pattern.permute.xlu0 1
  %433 = vperm.xlu0 %432, %v51
  %v434 = vpop.permute.xlu0 %433
  %436 = vset.pattern.permute.xlu0 1
  %437 = vperm.xlu0 %436, %v52
  %v438 = vpop.permute.xlu0 %437
  %440 = vset.pattern.permute.xlu0 1
  %441 = vperm.xlu0 %440, %v53
  %v442 = vpop.permute.xlu0 %441
  %444 = vset.pattern.permute.xlu0 1
  %445 = vperm.xlu0 %444, %v54
  %v446 = vpop.permute.xlu0 %445
  %448 = vset.pattern.permute.xlu0 1
  %449 = vperm.xlu0 %448, %v55
  %v450 = vpop.permute.xlu0 %449
  %452 = vset.pattern.permute.xlu0 1
  %453 = vperm.xlu0 %452, %v56
  %v454 = vpop.permute.xlu0 %453
  %456 = vset.pattern.permute.xlu0 1
  %457 = vperm.xlu0 %456, %v57
  %v458 = vpop.permute.xlu0 %457
  %460 = vset.pattern.permute.xlu0 1
  %461 = vperm.xlu0 %460, %v58
  %v462 = vpop.permute.xlu0 %461
  %464 = vset.pattern.permute.xlu0 1
  %465 = vperm.xlu0 %464, %v59
  %v466 = vpop.permute.xlu0 %465
  %468 = vset.pattern.permute.xlu0 1
  %469 = vperm.xlu0 %468, %v60
  %v470 = vpop.permute.xlu0 %469
  %472 = vset.pattern.permute.xlu0 1
  %473 = vperm.xlu0 %472, %v61
  %v474 = vpop.permute.xlu0 %473
  %476 = vset.pattern.permute.xlu0 1
  %477 = vperm.xlu0 %476, %v62
  %v478 = vpop.permute.xlu0 %477
  %480 = vset.pattern.permute.xlu0 1
  %481 = vperm.xlu0 %480, %v63
  %v482 = vpop.permute.xlu0 %481
  %484 = vset.pattern.permute.xlu0 1
  %485 = vperm.xlu0 %484, %v64
  %v486 = vpop.permute.xlu0 %485
  %488 = vset.pattern.permute.xlu0 1
  %489 = vperm.xlu0 %488, %v65
  %v490 = vpop.permute.xlu0 %489
  %492 = vset.pattern.permute.xlu0 1
  %493 = vperm.xlu0 %492, %v66
  %v494 = vpop.permute.xlu0 %493
  %496 = vset.pattern.permute.xlu0 1
  %497 = vperm.xlu0 %496, %v67
  %v498 = vpop.permute.xlu0 %497
  %500 = vset.pattern.permute.xlu0 2
  %501 = vperm.xlu0 %500, %v20
  %v502 = vpop.permute.xlu0 %501
  %504 = vset.pattern.permute.xlu0 2
  %505 = vperm.xlu0 %504, %v21
  %v506 = vpop.permute.xlu0 %505
  %508 = vset.pattern.permute.xlu0 2
  %509 = vperm.xlu0 %508, %v22
  %v510 = vpop.permute.xlu0 %509
  %512 = vset.pattern.permute.xlu0 2
  %513 = vperm.xlu0 %512, %v23
  %v514 = vpop.permute.xlu0 %513
  %516 = vset.pattern.permute.xlu0 2
  %517 = vperm.xlu0 %516, %v24
  %v518 = vpop.permute.xlu0 %517
  %520 = vset.pattern.permute.xlu0 2
  %521 = vperm.xlu0 %520, %v25
  %v522 = vpop.permute.xlu0 %521
  %524 = vset.pattern.permute.xlu0 2
  %525 = vperm.xlu0 %524, %v26
  %v526 = vpop.permute.xlu0 %525
  %528 = vset.pattern.permute.xlu0 2
  %529 = vperm.xlu0 %528, %v27
  %v530 = vpop.permute.xlu0 %529
  %532 = vset.pattern.permute.xlu0 2
  %533 = vperm.xlu0 %532, %v28
  %v534 = vpop.permute.xlu0 %533
  %536 = vset.pattern.permute.xlu0 2
  %537 = vperm.xlu0 %536, %v29
  %v538 = vpop.permute.xlu0 %537
  %540 = vset.pattern.permute.xlu0 2
  %541 = vperm.xlu0 %540, %v30
  %v542 = vpop.permute.xlu0 %541
  %544 = vset.pattern.permute.xlu0 2
  %545 = vperm.xlu0 %544, %v31
  %v546 = vpop.permute.xlu0 %545
  %548 = vset.pattern.permute.xlu0 2
  %549 = vperm.xlu0 %548, %v32
  %v550 = vpop.permute.xlu0 %549
  %552 = vset.pattern.permute.xlu0 2
  %553 = vperm.xlu0 %552, %v33
  %v554 = vpop.permute.xlu0 %553
  %556 = vset.pattern.permute.xlu0 2
  %557 = vperm.xlu0 %556, %v34
  %v558 = vpop.permute.xlu0 %557
  %560 = vset.pattern.permute.xlu0 2
  %561 = vperm.xlu0 %560, %v35
  %v562 = vpop.permute.xlu0 %561
  %564 = vset.pattern.permute.xlu0 2
  %565 = vperm.xlu0 %564, %v36
  %v566 = vpop.permute.xlu0 %565
  %568 = vset.pattern.permute.xlu0 2
  %569 = vperm.xlu0 %568, %v37
  %v570 = vpop.permute.xlu0 %569
  %572 = vset.pattern.permute.xlu0 2
  %573 = vperm.xlu0 %572, %v38
  %v574 = vpop.permute.xlu0 %573
  %576 = vset.pattern.permute.xlu0 2
  %577 = vperm.xlu0 %576, %v39
  %v578 = vpop.permute.xlu0 %577
  %580 = vset.pattern.permute.xlu0 2
  %581 = vperm.xlu0 %580, %v40
  %v582 = vpop.permute.xlu0 %581
  %584 = vset.pattern.permute.xlu0 2
  %585 = vperm.xlu0 %584, %v41
  %v586 = vpop.permute.xlu0 %585
  %588 = vset.pattern.permute.xlu0 2
  %589 = vperm.xlu0 %588, %v42
  %v590 = vpop.permute.xlu0 %589
  %592 = vset.pattern.permute.xlu0 2
  %593 = vperm.xlu0 %592, %v43
  %v594 = vpop.permute.xlu0 %593
  %596 = vset.pattern.permute.xlu0 2
  %597 = vperm.xlu0 %596, %v44
  %v598 = vpop.permute.xlu0 %597
  %600 = vset.pattern.permute.xlu0 2
  %601 = vperm.xlu0 %600, %v45
  %v602 = vpop.permute.xlu0 %601
  %604 = vset.pattern.permute.xlu0 2
  %605 = vperm.xlu0 %604, %v46
  %v606 = vpop.permute.xlu0 %605
  %608 = vset.pattern.permute.xlu0 2
  %609 = vperm.xlu0 %608, %v47
  %v610 = vpop.permute.xlu0 %609
  %612 = vset.pattern.permute.xlu0 2
  %613 = vperm.xlu0 %612, %v48
  %v614 = vpop.permute.xlu0 %613
  %616 = vset.pattern.permute.xlu0 2
  %617 = vperm.xlu0 %616, %v49
  %v618 = vpop.permute.xlu0 %617
  %620 = vset.pattern.permute.xlu0 2
  %621 = vperm.xlu0 %620, %v50
  %v622 = vpop.permute.xlu0 %621
  %624 = vset.pattern.permute.xlu0 2
  %625 = vperm.xlu0 %624, %v51
  %v626 = vpop.permute.xlu0 %625
  %628 = vset.pattern.permute.xlu0 2
  %629 = vperm.xlu0 %628, %v52
  %v630 = vpop.permute.xlu0 %629
  %632 = vset.pattern.permute.xlu0 2
  %633 = vperm.xlu0 %632, %v53
  %v634 = vpop.permute.xlu0 %633
  %636 = vset.pattern.permute.xlu0 2
  %637 = vperm.xlu0 %636, %v54
  %v638 = vpop.permute.xlu0 %637
  %640 = vset.pattern.permute.xlu0 2
  %641 = vperm.xlu0 %640, %v55
  %v642 = vpop.permute.xlu0 %641
  %644 = vset.pattern.permute.xlu0 2
  %645 = vperm.xlu0 %644, %v56
  %v646 = vpop.permute.xlu0 %645
  %648 = vset.pattern.permute.xlu0 2
  %649 = vperm.xlu0 %648, %v57
  %v650 = vpop.permute.xlu0 %649
  %652 = vset.pattern.permute.xlu0 2
  %653 = vperm.xlu0 %652, %v58
  %v654 = vpop.permute.xlu0 %653
  %656 = vset.pattern.permute.xlu0 2
  %657 = vperm.xlu0 %656, %v59
  %v658 = vpop.permute.xlu0 %657
  %660 = vset.pattern.permute.xlu0 2
  %661 = vperm.xlu0 %660, %v60
  %v662 = vpop.permute.xlu0 %661
  %664 = vset.pattern.permute.xlu0 2
  %665 = vperm.xlu0 %664, %v61
  %v666 = vpop.permute.xlu0 %665
  %668 = vset.pattern.permute.xlu0 2
  %669 = vperm.xlu0 %668, %v62
  %v670 = vpop.permute.xlu0 %669
  %672 = vset.pattern.permute.xlu0 2
  %673 = vperm.xlu0 %672, %v63
  %v674 = vpop.permute.xlu0 %673
  %676 = vset.pattern.permute.xlu0 2
  %677 = vperm.xlu0 %676, %v64
  %v678 = vpop.permute.xlu0 %677
  %680 = vset.pattern.permute.xlu0 2
  %681 = vperm.xlu0 %680, %v65
  %v682 = vpop.permute.xlu0 %681
  %684 = vset.pattern.permute.xlu0 2
  %685 = vperm.xlu0 %684, %v66
  %v686 = vpop.permute.xlu0 %685
  %688 = vset.pattern.permute.xlu0 2
  %689 = vperm.xlu0 %688, %v67
  %v690 = vpop.permute.xlu0 %689
  %692 = vset.pattern.permute.xlu0 3
  %693 = vperm.xlu0 %692, %v20
  %v694 = vpop.permute.xlu0 %693
  %696 = vset.pattern.permute.xlu0 3
  %697 = vperm.xlu0 %696, %v21
  %v698 = vpop.permute.xlu0 %697
  %700 = vset.pattern.permute.xlu0 3
  %701 = vperm.xlu0 %700, %v22
  %v702 = vpop.permute.xlu0 %701
  %704 = vset.pattern.permute.xlu0 3
  %705 = vperm.xlu0 %704, %v23
  %v706 = vpop.permute.xlu0 %705
  %708 = vset.pattern.permute.xlu0 3
  %709 = vperm.xlu0 %708, %v24
  %v710 = vpop.permute.xlu0 %709
  %712 = vset.pattern.permute.xlu0 3
  %713 = vperm.xlu0 %712, %v25
  %v714 = vpop.permute.xlu0 %713
  %716 = vset.pattern.permute.xlu0 3
  %717 = vperm.xlu0 %716, %v26
  %v718 = vpop.permute.xlu0 %717
  %720 = vset.pattern.permute.xlu0 3
  %721 = vperm.xlu0 %720, %v27
  %v722 = vpop.permute.xlu0 %721
  %724 = vset.pattern.permute.xlu0 3
  %725 = vperm.xlu0 %724, %v28
  %v726 = vpop.permute.xlu0 %725
  %728 = vset.pattern.permute.xlu0 3
  %729 = vperm.xlu0 %728, %v29
  %v730 = vpop.permute.xlu0 %729
  %732 = vset.pattern.permute.xlu0 3
  %733 = vperm.xlu0 %732, %v30
  %v734 = vpop.permute.xlu0 %733
  %736 = vset.pattern.permute.xlu0 3
  %737 = vperm.xlu0 %736, %v31
  %v738 = vpop.permute.xlu0 %737
  %740 = vset.pattern.permute.xlu0 3
  %741 = vperm.xlu0 %740, %v32
  %v742 = vpop.permute.xlu0 %741
  %744 = vset.pattern.permute.xlu0 3
  %745 = vperm.xlu0 %744, %v33
  %v746 = vpop.permute.xlu0 %745
  %748 = vset.pattern.permute.xlu0 3
  %749 = vperm.xlu0 %748, %v34
  %v750 = vpop.permute.xlu0 %749
  %752 = vset.pattern.permute.xlu0 3
  %753 = vperm.xlu0 %752, %v35
  %v754 = vpop.permute.xlu0 %753
  %756 = vset.pattern.permute.xlu0 3
  %757 = vperm.xlu0 %756, %v36
  %v758 = vpop.permute.xlu0 %757
  %760 = vset.pattern.permute.xlu0 3
  %761 = vperm.xlu0 %760, %v37
  %v762 = vpop.permute.xlu0 %761
  %764 = vset.pattern.permute.xlu0 3
  %765 = vperm.xlu0 %764, %v38
  %v766 = vpop.permute.xlu0 %765
  %768 = vset.pattern.permute.xlu0 3
  %769 = vperm.xlu0 %768, %v39
  %v770 = vpop.permute.xlu0 %769
  %772 = vset.pattern.permute.xlu0 3
  %773 = vperm.xlu0 %772, %v40
  %v774 = vpop.permute.xlu0 %773
  %776 = vset.pattern.permute.xlu0 3
  %777 = vperm.xlu0 %776, %v41
  %v778 = vpop.permute.xlu0 %777
  %780 = vset.pattern.permute.xlu0 3
  %781 = vperm.xlu0 %780, %v42
  %v782 = vpop.permute.xlu0 %781
  %784 = vset.pattern.permute.xlu0 3
  %785 = vperm.xlu0 %784, %v43
  %v786 = vpop.permute.xlu0 %785
  %788 = vset.pattern.permute.xlu0 3
  %789 = vperm.xlu0 %788, %v44
  %v790 = vpop.permute.xlu0 %789
  %792 = vset.pattern.permute.xlu0 3
  %793 = vperm.xlu0 %792, %v45
  %v794 = vpop.permute.xlu0 %793
  %796 = vset.pattern.permute.xlu0 3
  %797 = vperm.xlu0 %796, %v46
  %v798 = vpop.permute.xlu0 %797
  %800 = vset.pattern.permute.xlu0 3
  %801 = vperm.xlu0 %800, %v47
  %v802 = vpop.permute.xlu0 %801
  %804 = vset.pattern.permute.xlu0 3
  %805 = vperm.xlu0 %804, %v48
  %v806 = vpop.permute.xlu0 %805
  %808 = vset.pattern.permute.xlu0 3
  %809 = vperm.xlu0 %808, %v49
  %v810 = vpop.permute.xlu0 %809
  %812 = vset.pattern.permute.xlu0 3
  %813 = vperm.xlu0 %812, %v50
  %v814 = vpop.permute.xlu0 %813
  %816 = vset.pattern.permute.xlu0 3
  %817 = vperm.xlu0 %816, %v51
  %v818 = vpop.permute.xlu0 %817
  %820 = vset.pattern.permute.xlu0 3
  %821 = vperm.xlu0 %820, %v52
  %v822 = vpop.permute.xlu0 %821
  %824 = vset.pattern.permute.xlu0 3
  %825 = vperm.xlu0 %824, %v53
  %v826 = vpop.permute.xlu0 %825
  %828 = vset.pattern.permute.xlu0 3
  %829 = vperm.xlu0 %828, %v54
  %v830 = vpop.permute.xlu0 %829
  %832 = vset.pattern.permute.xlu0 3
  %833 = vperm.xlu0 %832, %v55
  %v834 = vpop.permute.xlu0 %833
  %836 = vset.pattern.permute.xlu0 3
  %837 = vperm.xlu0 %836, %v56
  %v838 = vpop.permute.xlu0 %837
  %840 = vset.pattern.permute.xlu0 3
  %841 = vperm.xlu0 %840, %v57
  %v842 = vpop.permute.xlu0 %841
  %844 = vset.pattern.permute.xlu0 3
  %845 = vperm.xlu0 %844, %v58
  %v846 = vpop.permute.xlu0 %845
  %848 = vset.pattern.permute.xlu0 3
  %849 = vperm.xlu0 %848, %v59
  %v850 = vpop.permute.xlu0 %849
  %852 = vset.pattern.permute.xlu0 3
  %853 = vperm.xlu0 %852, %v60
  %v854 = vpop.permute.xlu0 %853
  %856 = vset.pattern.permute.xlu0 3
  %857 = vperm.xlu0 %856, %v61
  %v858 = vpop.permute.xlu0 %857
  %860 = vset.pattern.permute.xlu0 3
  %861 = vperm.xlu0 %860, %v62
  %v862 = vpop.permute.xlu0 %861
  %864 = vset.pattern.permute.xlu0 3
  %865 = vperm.xlu0 %864, %v63
  %v866 = vpop.permute.xlu0 %865
  %868 = vset.pattern.permute.xlu0 3
  %869 = vperm.xlu0 %868, %v64
  %v870 = vpop.permute.xlu0 %869
  %872 = vset.pattern.permute.xlu0 3
  %873 = vperm.xlu0 %872, %v65
  %v874 = vpop.permute.xlu0 %873
  %876 = vset.pattern.permute.xlu0 3
  %877 = vperm.xlu0 %876, %v66
  %v878 = vpop.permute.xlu0 %877
  %880 = vset.pattern.permute.xlu0 3
  %881 = vperm.xlu0 %880, %v67
  %v882 = vpop.permute.xlu0 %881
  %v884 = vld [vmem:[%s2] sm:$0xff]
  %v885 = vld [vmem:[%s2 + $0x8] sm:$0xff]
  %v886 = vld [vmem:[%s2 + $0x10] sm:$0xff]
  %v887 = vld [vmem:[%s2 + $0x18] sm:$0xff]
  %v888 = vld [vmem:[%s2 + $0x20] sm:$0xff]
  %v889 = vld [vmem:[%s2 + $0x28] sm:$0xff]
  %v890 = vld [vmem:[%s2 + $0x30] sm:$0xff]
  %v891 = vld [vmem:[%s2 + $0x38] sm:$0xff]
  %v892 = vld [vmem:[%s2 + $0x40] sm:$0xff]
  %v893 = vld [vmem:[%s2 + $0x48] sm:$0xff]
  %v894 = vld [vmem:[%s2 + $0x50] sm:$0xff]
  %v895 = vld [vmem:[%s2 + $0x58] sm:$0xff]
  %v896 = vld [vmem:[%s2 + $0x60] sm:$0xff]
  %v897 = vld [vmem:[%s2 + $0x68] sm:$0xff]
  %v898 = vld [vmem:[%s2 + $0x70] sm:$0xff]
  %v899 = vld [vmem:[%s2 + $0x78] sm:$0xff]
  %v900 = vld [vmem:[%s2 + $0x80] sm:$0xff]
  %v901 = vld [vmem:[%s2 + $0x88] sm:$0xff]
  %v902 = vld [vmem:[%s2 + $0x90] sm:$0xff]
  %v903 = vld [vmem:[%s2 + $0x98] sm:$0xff]
  %v904 = vld [vmem:[%s2 + $0xa0] sm:$0xff]
  %v905 = vld [vmem:[%s2 + $0xa8] sm:$0xff]
  %v906 = vld [vmem:[%s2 + $0xb0] sm:$0xff]
  %v907 = vld [vmem:[%s2 + $0xb8] sm:$0xff]
  %v908 = vld [vmem:[%s2 + $0xc0] sm:$0xff]
  %v909 = vld [vmem:[%s2 + $0xc8] sm:$0xff]
  %v910 = vld [vmem:[%s2 + $0xd0] sm:$0xff]
  %v911 = vld [vmem:[%s2 + $0xd8] sm:$0xff]
  %v912 = vld [vmem:[%s2 + $0xe0] sm:$0xff]
  %v913 = vld [vmem:[%s2 + $0xe8] sm:$0xff]
  %v914 = vld [vmem:[%s2 + $0xf0] sm:$0xff]
  %v915 = vld [vmem:[%s2 + $0xf8] sm:$0xff]
  %v916 = vld [vmem:[%s2 + $0x100] sm:$0xff]
  %v917 = vld [vmem:[%s2 + $0x108] sm:$0xff]
  %v918 = vld [vmem:[%s2 + $0x110] sm:$0xff]
  %v919 = vld [vmem:[%s2 + $0x118] sm:$0xff]
  %v920 = vld [vmem:[%s2 + $0x120] sm:$0xff]
  %v921 = vld [vmem:[%s2 + $0x128] sm:$0xff]
  %v922 = vld [vmem:[%s2 + $0x130] sm:$0xff]
  %v923 = vld [vmem:[%s2 + $0x138] sm:$0xff]
  %v924 = vld [vmem:[%s2 + $0x140] sm:$0xff]
  %v925 = vld [vmem:[%s2 + $0x148] sm:$0xff]
  %v926 = vld [vmem:[%s2 + $0x150] sm:$0xff]
  %v927 = vld [vmem:[%s2 + $0x158] sm:$0xff]
  %v928 = vld [vmem:[%s2 + $0x160] sm:$0xff]
  %v929 = vld [vmem:[%s2 + $0x168] sm:$0xff]
  %v930 = vld [vmem:[%s2 + $0x170] sm:$0xff]
  %v931 = vld [vmem:[%s2 + $0x178] sm:$0xff]
  %933 = vset.pattern.permute.xlu0 0
  %934 = vperm.xlu0 %933, %v884
  %v935 = vpop.permute.xlu0 %934
  %938 = vset.pattern.permute.xlu0 0
  %939 = vperm.xlu0 %938, %v885
  %v940 = vpop.permute.xlu0 %939
  %943 = vset.pattern.permute.xlu0 0
  %944 = vperm.xlu0 %943, %v886
  %v945 = vpop.permute.xlu0 %944
  %948 = vset.pattern.permute.xlu0 0
  %949 = vperm.xlu0 %948, %v887
  %v950 = vpop.permute.xlu0 %949
  %953 = vset.pattern.permute.xlu0 0
  %954 = vperm.xlu0 %953, %v888
  %v955 = vpop.permute.xlu0 %954
  %958 = vset.pattern.permute.xlu0 0
  %959 = vperm.xlu0 %958, %v889
  %v960 = vpop.permute.xlu0 %959
  %963 = vset.pattern.permute.xlu0 0
  %964 = vperm.xlu0 %963, %v890
  %v965 = vpop.permute.xlu0 %964
  %968 = vset.pattern.permute.xlu0 0
  %969 = vperm.xlu0 %968, %v891
  %v970 = vpop.permute.xlu0 %969
  %973 = vset.pattern.permute.xlu0 0
  %974 = vperm.xlu0 %973, %v892
  %v975 = vpop.permute.xlu0 %974
  %978 = vset.pattern.permute.xlu0 0
  %979 = vperm.xlu0 %978, %v893
  %v980 = vpop.permute.xlu0 %979
  %983 = vset.pattern.permute.xlu0 0
  %984 = vperm.xlu0 %983, %v894
  %v985 = vpop.permute.xlu0 %984
  %988 = vset.pattern.permute.xlu0 0
  %989 = vperm.xlu0 %988, %v895
  %v990 = vpop.permute.xlu0 %989
  %993 = vset.pattern.permute.xlu0 0
  %994 = vperm.xlu0 %993, %v896
  %v995 = vpop.permute.xlu0 %994
  %998 = vset.pattern.permute.xlu0 0
  %999 = vperm.xlu0 %998, %v897
  %v1000 = vpop.permute.xlu0 %999
  %1003 = vset.pattern.permute.xlu0 0
  %1004 = vperm.xlu0 %1003, %v898
  %v1005 = vpop.permute.xlu0 %1004
  %1008 = vset.pattern.permute.xlu0 0
  %1009 = vperm.xlu0 %1008, %v899
  %v1010 = vpop.permute.xlu0 %1009
  %1013 = vset.pattern.permute.xlu0 0
  %1014 = vperm.xlu0 %1013, %v900
  %v1015 = vpop.permute.xlu0 %1014
  %1018 = vset.pattern.permute.xlu0 0
  %1019 = vperm.xlu0 %1018, %v901
  %v1020 = vpop.permute.xlu0 %1019
  %1023 = vset.pattern.permute.xlu0 0
  %1024 = vperm.xlu0 %1023, %v902
  %v1025 = vpop.permute.xlu0 %1024
  %1028 = vset.pattern.permute.xlu0 0
  %1029 = vperm.xlu0 %1028, %v903
  %v1030 = vpop.permute.xlu0 %1029
  %1033 = vset.pattern.permute.xlu0 0
  %1034 = vperm.xlu0 %1033, %v904
  %v1035 = vpop.permute.xlu0 %1034
  %1038 = vset.pattern.permute.xlu0 0
  %1039 = vperm.xlu0 %1038, %v905
  %v1040 = vpop.permute.xlu0 %1039
  %1043 = vset.pattern.permute.xlu0 0
  %1044 = vperm.xlu0 %1043, %v906
  %v1045 = vpop.permute.xlu0 %1044
  %1048 = vset.pattern.permute.xlu0 0
  %1049 = vperm.xlu0 %1048, %v907
  %v1050 = vpop.permute.xlu0 %1049
  %1053 = vset.pattern.permute.xlu0 0
  %1054 = vperm.xlu0 %1053, %v908
  %v1055 = vpop.permute.xlu0 %1054
  %1058 = vset.pattern.permute.xlu0 0
  %1059 = vperm.xlu0 %1058, %v909
  %v1060 = vpop.permute.xlu0 %1059
  %1063 = vset.pattern.permute.xlu0 0
  %1064 = vperm.xlu0 %1063, %v910
  %v1065 = vpop.permute.xlu0 %1064
  %1068 = vset.pattern.permute.xlu0 0
  %1069 = vperm.xlu0 %1068, %v911
  %v1070 = vpop.permute.xlu0 %1069
  %1073 = vset.pattern.permute.xlu0 0
  %1074 = vperm.xlu0 %1073, %v912
  %v1075 = vpop.permute.xlu0 %1074
  %1078 = vset.pattern.permute.xlu0 0
  %1079 = vperm.xlu0 %1078, %v913
  %v1080 = vpop.permute.xlu0 %1079
  %1083 = vset.pattern.permute.xlu0 0
  %1084 = vperm.xlu0 %1083, %v914
  %v1085 = vpop.permute.xlu0 %1084
  %1088 = vset.pattern.permute.xlu0 0
  %1089 = vperm.xlu0 %1088, %v915
  %v1090 = vpop.permute.xlu0 %1089
  %1093 = vset.pattern.permute.xlu0 0
  %1094 = vperm.xlu0 %1093, %v916
  %v1095 = vpop.permute.xlu0 %1094
  %1098 = vset.pattern.permute.xlu0 0
  %1099 = vperm.xlu0 %1098, %v917
  %v1100 = vpop.permute.xlu0 %1099
  %1103 = vset.pattern.permute.xlu0 0
  %1104 = vperm.xlu0 %1103, %v918
  %v1105 = vpop.permute.xlu0 %1104
  %1108 = vset.pattern.permute.xlu0 0
  %1109 = vperm.xlu0 %1108, %v919
  %v1110 = vpop.permute.xlu0 %1109
  %1113 = vset.pattern.permute.xlu0 0
  %1114 = vperm.xlu0 %1113, %v920
  %v1115 = vpop.permute.xlu0 %1114
  %1118 = vset.pattern.permute.xlu0 0
  %1119 = vperm.xlu0 %1118, %v921
  %v1120 = vpop.permute.xlu0 %1119
  %1123 = vset.pattern.permute.xlu0 0
  %1124 = vperm.xlu0 %1123, %v922
  %v1125 = vpop.permute.xlu0 %1124
  %1128 = vset.pattern.permute.xlu0 0
  %1129 = vperm.xlu0 %1128, %v923
  %v1130 = vpop.permute.xlu0 %1129
  %1133 = vset.pattern.permute.xlu0 0
  %1134 = vperm.xlu0 %1133, %v924
  %v1135 = vpop.permute.xlu0 %1134
  %1138 = vset.pattern.permute.xlu0 0
  %1139 = vperm.xlu0 %1138, %v925
  %v1140 = vpop.permute.xlu0 %1139
  %1143 = vset.pattern.permute.xlu0 0
  %1144 = vperm.xlu0 %1143, %v926
  %v1145 = vpop.permute.xlu0 %1144
  %1148 = vset.pattern.permute.xlu0 0
  %1149 = vperm.xlu0 %1148, %v927
  %v1150 = vpop.permute.xlu0 %1149
  %1153 = vset.pattern.permute.xlu0 0
  %1154 = vperm.xlu0 %1153, %v928
  %v1155 = vpop.permute.xlu0 %1154
  %1158 = vset.pattern.permute.xlu0 0
  %1159 = vperm.xlu0 %1158, %v929
  %v1160 = vpop.permute.xlu0 %1159
  %1163 = vset.pattern.permute.xlu0 0
  %1164 = vperm.xlu0 %1163, %v930
  %v1165 = vpop.permute.xlu0 %1164
  %1168 = vset.pattern.permute.xlu0 0
  %1169 = vperm.xlu0 %1168, %v931
  %v1170 = vpop.permute.xlu0 %1169
  %v1172 = vld [vmem:[%s3] sm:$0xff]
  %v1173 = vld [vmem:[%s3 + $0x8] sm:$0xff]
  %v1174 = vld [vmem:[%s3 + $0x10] sm:$0xff]
  %v1175 = vld [vmem:[%s3 + $0x18] sm:$0xff]
  %v1176 = vld [vmem:[%s3 + $0x20] sm:$0xff]
  %v1177 = vld [vmem:[%s3 + $0x28] sm:$0xff]
  %v1178 = vld [vmem:[%s3 + $0x30] sm:$0xff]
  %v1179 = vld [vmem:[%s3 + $0x38] sm:$0xff]
  %v1180 = vld [vmem:[%s3 + $0x40] sm:$0xff]
  %v1181 = vld [vmem:[%s3 + $0x48] sm:$0xff]
  %v1182 = vld [vmem:[%s3 + $0x50] sm:$0xff]
  %v1183 = vld [vmem:[%s3 + $0x58] sm:$0xff]
  %v1184 = vld [vmem:[%s3 + $0x60] sm:$0xff]
  %v1185 = vld [vmem:[%s3 + $0x68] sm:$0xff]
  %v1186 = vld [vmem:[%s3 + $0x70] sm:$0xff]
  %v1187 = vld [vmem:[%s3 + $0x78] sm:$0xff]
  %v1188 = vld [vmem:[%s3 + $0x80] sm:$0xff]
  %v1189 = vld [vmem:[%s3 + $0x88] sm:$0xff]
  %v1190 = vld [vmem:[%s3 + $0x90] sm:$0xff]
  %v1191 = vld [vmem:[%s3 + $0x98] sm:$0xff]
  %v1192 = vld [vmem:[%s3 + $0xa0] sm:$0xff]
  %v1193 = vld [vmem:[%s3 + $0xa8] sm:$0xff]
  %v1194 = vld [vmem:[%s3 + $0xb0] sm:$0xff]
  %v1195 = vld [vmem:[%s3 + $0xb8] sm:$0xff]
  %v1196 = vld [vmem:[%s3 + $0xc0] sm:$0xff]
  %v1197 = vld [vmem:[%s3 + $0xc8] sm:$0xff]
  %v1198 = vld [vmem:[%s3 + $0xd0] sm:$0xff]
  %v1199 = vld [vmem:[%s3 + $0xd8] sm:$0xff]
  %v1200 = vld [vmem:[%s3 + $0xe0] sm:$0xff]
  %v1201 = vld [vmem:[%s3 + $0xe8] sm:$0xff]
  %v1202 = vld [vmem:[%s3 + $0xf0] sm:$0xff]
  %v1203 = vld [vmem:[%s3 + $0xf8] sm:$0xff]
  %v1204 = vld [vmem:[%s3 + $0x100] sm:$0xff]
  %v1205 = vld [vmem:[%s3 + $0x108] sm:$0xff]
  %v1206 = vld [vmem:[%s3 + $0x110] sm:$0xff]
  %v1207 = vld [vmem:[%s3 + $0x118] sm:$0xff]
  %v1208 = vld [vmem:[%s3 + $0x120] sm:$0xff]
  %v1209 = vld [vmem:[%s3 + $0x128] sm:$0xff]
  %v1210 = vld [vmem:[%s3 + $0x130] sm:$0xff]
  %v1211 = vld [vmem:[%s3 + $0x138] sm:$0xff]
  %v1212 = vld [vmem:[%s3 + $0x140] sm:$0xff]
  %v1213 = vld [vmem:[%s3 + $0x148] sm:$0xff]
  %v1214 = vld [vmem:[%s3 + $0x150] sm:$0xff]
  %v1215 = vld [vmem:[%s3 + $0x158] sm:$0xff]
  %v1216 = vld [vmem:[%s3 + $0x160] sm:$0xff]
  %v1217 = vld [vmem:[%s3 + $0x168] sm:$0xff]
  %v1218 = vld [vmem:[%s3 + $0x170] sm:$0xff]
  %v1219 = vld [vmem:[%s3 + $0x178] sm:$0xff]
  %1221 = vset.pattern.permute.xlu0 0
  %1222 = vperm.xlu0 %1221, %v1172
  %v1223 = vpop.permute.xlu0 %1222
  %1226 = vset.pattern.permute.xlu0 0
  %1227 = vperm.xlu0 %1226, %v1173
  %v1228 = vpop.permute.xlu0 %1227
  %1231 = vset.pattern.permute.xlu0 0
  %1232 = vperm.xlu0 %1231, %v1174
  %v1233 = vpop.permute.xlu0 %1232
  %1236 = vset.pattern.permute.xlu0 0
  %1237 = vperm.xlu0 %1236, %v1175
  %v1238 = vpop.permute.xlu0 %1237
  %1241 = vset.pattern.permute.xlu0 0
  %1242 = vperm.xlu0 %1241, %v1176
  %v1243 = vpop.permute.xlu0 %1242
  %1246 = vset.pattern.permute.xlu0 0
  %1247 = vperm.xlu0 %1246, %v1177
  %v1248 = vpop.permute.xlu0 %1247
  %1251 = vset.pattern.permute.xlu0 0
  %1252 = vperm.xlu0 %1251, %v1178
  %v1253 = vpop.permute.xlu0 %1252
  %1256 = vset.pattern.permute.xlu0 0
  %1257 = vperm.xlu0 %1256, %v1179
  %v1258 = vpop.permute.xlu0 %1257
  %1261 = vset.pattern.permute.xlu0 0
  %1262 = vperm.xlu0 %1261, %v1180
  %v1263 = vpop.permute.xlu0 %1262
  %1266 = vset.pattern.permute.xlu0 0
  %1267 = vperm.xlu0 %1266, %v1181
  %v1268 = vpop.permute.xlu0 %1267
  %1271 = vset.pattern.permute.xlu0 0
  %1272 = vperm.xlu0 %1271, %v1182
  %v1273 = vpop.permute.xlu0 %1272
  %1276 = vset.pattern.permute.xlu0 0
  %1277 = vperm.xlu0 %1276, %v1183
  %v1278 = vpop.permute.xlu0 %1277
  %1281 = vset.pattern.permute.xlu0 0
  %1282 = vperm.xlu0 %1281, %v1184
  %v1283 = vpop.permute.xlu0 %1282
  %1286 = vset.pattern.permute.xlu0 0
  %1287 = vperm.xlu0 %1286, %v1185
  %v1288 = vpop.permute.xlu0 %1287
  %1291 = vset.pattern.permute.xlu0 0
  %1292 = vperm.xlu0 %1291, %v1186
  %v1293 = vpop.permute.xlu0 %1292
  %1296 = vset.pattern.permute.xlu0 0
  %1297 = vperm.xlu0 %1296, %v1187
  %v1298 = vpop.permute.xlu0 %1297
  %1301 = vset.pattern.permute.xlu0 0
  %1302 = vperm.xlu0 %1301, %v1188
  %v1303 = vpop.permute.xlu0 %1302
  %1306 = vset.pattern.permute.xlu0 0
  %1307 = vperm.xlu0 %1306, %v1189
  %v1308 = vpop.permute.xlu0 %1307
  %1311 = vset.pattern.permute.xlu0 0
  %1312 = vperm.xlu0 %1311, %v1190
  %v1313 = vpop.permute.xlu0 %1312
  %1316 = vset.pattern.permute.xlu0 0
  %1317 = vperm.xlu0 %1316, %v1191
  %v1318 = vpop.permute.xlu0 %1317
  %1321 = vset.pattern.permute.xlu0 0
  %1322 = vperm.xlu0 %1321, %v1192
  %v1323 = vpop.permute.xlu0 %1322
  %1326 = vset.pattern.permute.xlu0 0
  %1327 = vperm.xlu0 %1326, %v1193
  %v1328 = vpop.permute.xlu0 %1327
  %1331 = vset.pattern.permute.xlu0 0
  %1332 = vperm.xlu0 %1331, %v1194
  %v1333 = vpop.permute.xlu0 %1332
  %1336 = vset.pattern.permute.xlu0 0
  %1337 = vperm.xlu0 %1336, %v1195
  %v1338 = vpop.permute.xlu0 %1337
  %1341 = vset.pattern.permute.xlu0 0
  %1342 = vperm.xlu0 %1341, %v1196
  %v1343 = vpop.permute.xlu0 %1342
  %1346 = vset.pattern.permute.xlu0 0
  %1347 = vperm.xlu0 %1346, %v1197
  %v1348 = vpop.permute.xlu0 %1347
  %1351 = vset.pattern.permute.xlu0 0
  %1352 = vperm.xlu0 %1351, %v1198
  %v1353 = vpop.permute.xlu0 %1352
  %1356 = vset.pattern.permute.xlu0 0
  %1357 = vperm.xlu0 %1356, %v1199
  %v1358 = vpop.permute.xlu0 %1357
  %1361 = vset.pattern.permute.xlu0 0
  %1362 = vperm.xlu0 %1361, %v1200
  %v1363 = vpop.permute.xlu0 %1362
  %1366 = vset.pattern.permute.xlu0 0
  %1367 = vperm.xlu0 %1366, %v1201
  %v1368 = vpop.permute.xlu0 %1367
  %1371 = vset.pattern.permute.xlu0 0
  %1372 = vperm.xlu0 %1371, %v1202
  %v1373 = vpop.permute.xlu0 %1372
  %1376 = vset.pattern.permute.xlu0 0
  %1377 = vperm.xlu0 %1376, %v1203
  %v1378 = vpop.permute.xlu0 %1377
  %1381 = vset.pattern.permute.xlu0 0
  %1382 = vperm.xlu0 %1381, %v1204
  %v1383 = vpop.permute.xlu0 %1382
  %1386 = vset.pattern.permute.xlu0 0
  %1387 = vperm.xlu0 %1386, %v1205
  %v1388 = vpop.permute.xlu0 %1387
  %1391 = vset.pattern.permute.xlu0 0
  %1392 = vperm.xlu0 %1391, %v1206
  %v1393 = vpop.permute.xlu0 %1392
  %1396 = vset.pattern.permute.xlu0 0
  %1397 = vperm.xlu0 %1396, %v1207
  %v1398 = vpop.permute.xlu0 %1397
  %1401 = vset.pattern.permute.xlu0 0
  %1402 = vperm.xlu0 %1401, %v1208
  %v1403 = vpop.permute.xlu0 %1402
  %1406 = vset.pattern.permute.xlu0 0
  %1407 = vperm.xlu0 %1406, %v1209
  %v1408 = vpop.permute.xlu0 %1407
  %1411 = vset.pattern.permute.xlu0 0
  %1412 = vperm.xlu0 %1411, %v1210
  %v1413 = vpop.permute.xlu0 %1412
  %1416 = vset.pattern.permute.xlu0 0
  %1417 = vperm.xlu0 %1416, %v1211
  %v1418 = vpop.permute.xlu0 %1417
  %1421 = vset.pattern.permute.xlu0 0
  %1422 = vperm.xlu0 %1421, %v1212
  %v1423 = vpop.permute.xlu0 %1422
  %1426 = vset.pattern.permute.xlu0 0
  %1427 = vperm.xlu0 %1426, %v1213
  %v1428 = vpop.permute.xlu0 %1427
  %1431 = vset.pattern.permute.xlu0 0
  %1432 = vperm.xlu0 %1431, %v1214
  %v1433 = vpop.permute.xlu0 %1432
  %1436 = vset.pattern.permute.xlu0 0
  %1437 = vperm.xlu0 %1436, %v1215
  %v1438 = vpop.permute.xlu0 %1437
  %1441 = vset.pattern.permute.xlu0 0
  %1442 = vperm.xlu0 %1441, %v1216
  %v1443 = vpop.permute.xlu0 %1442
  %1446 = vset.pattern.permute.xlu0 0
  %1447 = vperm.xlu0 %1446, %v1217
  %v1448 = vpop.permute.xlu0 %1447
  %1451 = vset.pattern.permute.xlu0 0
  %1452 = vperm.xlu0 %1451, %v1218
  %v1453 = vpop.permute.xlu0 %1452
  %1456 = vset.pattern.permute.xlu0 0
  %1457 = vperm.xlu0 %1456, %v1219
  %v1458 = vpop.permute.xlu0 %1457
  %1460 = vset.pattern.permute.xlu0 1
  %1461 = vperm.xlu0 %1460, %v1172
  %v1462 = vpop.permute.xlu0 %1461
  %1464 = vset.pattern.permute.xlu0 1
  %1465 = vperm.xlu0 %1464, %v1173
  %v1466 = vpop.permute.xlu0 %1465
  %1468 = vset.pattern.permute.xlu0 1
  %1469 = vperm.xlu0 %1468, %v1174
  %v1470 = vpop.permute.xlu0 %1469
  %1472 = vset.pattern.permute.xlu0 1
  %1473 = vperm.xlu0 %1472, %v1175
  %v1474 = vpop.permute.xlu0 %1473
  %1476 = vset.pattern.permute.xlu0 1
  %1477 = vperm.xlu0 %1476, %v1176
  %v1478 = vpop.permute.xlu0 %1477
  %1480 = vset.pattern.permute.xlu0 1
  %1481 = vperm.xlu0 %1480, %v1177
  %v1482 = vpop.permute.xlu0 %1481
  %1484 = vset.pattern.permute.xlu0 1
  %1485 = vperm.xlu0 %1484, %v1178
  %v1486 = vpop.permute.xlu0 %1485
  %1488 = vset.pattern.permute.xlu0 1
  %1489 = vperm.xlu0 %1488, %v1179
  %v1490 = vpop.permute.xlu0 %1489
  %1492 = vset.pattern.permute.xlu0 1
  %1493 = vperm.xlu0 %1492, %v1180
  %v1494 = vpop.permute.xlu0 %1493
  %1496 = vset.pattern.permute.xlu0 1
  %1497 = vperm.xlu0 %1496, %v1181
  %v1498 = vpop.permute.xlu0 %1497
  %1500 = vset.pattern.permute.xlu0 1
  %1501 = vperm.xlu0 %1500, %v1182
  %v1502 = vpop.permute.xlu0 %1501
  %1504 = vset.pattern.permute.xlu0 1
  %1505 = vperm.xlu0 %1504, %v1183
  %v1506 = vpop.permute.xlu0 %1505
  %1508 = vset.pattern.permute.xlu0 1
  %1509 = vperm.xlu0 %1508, %v1184
  %v1510 = vpop.permute.xlu0 %1509
  %1512 = vset.pattern.permute.xlu0 1
  %1513 = vperm.xlu0 %1512, %v1185
  %v1514 = vpop.permute.xlu0 %1513
  %1516 = vset.pattern.permute.xlu0 1
  %1517 = vperm.xlu0 %1516, %v1186
  %v1518 = vpop.permute.xlu0 %1517
  %1520 = vset.pattern.permute.xlu0 1
  %1521 = vperm.xlu0 %1520, %v1187
  %v1522 = vpop.permute.xlu0 %1521
  %1524 = vset.pattern.permute.xlu0 1
  %1525 = vperm.xlu0 %1524, %v1188
  %v1526 = vpop.permute.xlu0 %1525
  %1528 = vset.pattern.permute.xlu0 1
  %1529 = vperm.xlu0 %1528, %v1189
  %v1530 = vpop.permute.xlu0 %1529
  %1532 = vset.pattern.permute.xlu0 1
  %1533 = vperm.xlu0 %1532, %v1190
  %v1534 = vpop.permute.xlu0 %1533
  %1536 = vset.pattern.permute.xlu0 1
  %1537 = vperm.xlu0 %1536, %v1191
  %v1538 = vpop.permute.xlu0 %1537
  %1540 = vset.pattern.permute.xlu0 1
  %1541 = vperm.xlu0 %1540, %v1192
  %v1542 = vpop.permute.xlu0 %1541
  %1544 = vset.pattern.permute.xlu0 1
  %1545 = vperm.xlu0 %1544, %v1193
  %v1546 = vpop.permute.xlu0 %1545
  %1548 = vset.pattern.permute.xlu0 1
  %1549 = vperm.xlu0 %1548, %v1194
  %v1550 = vpop.permute.xlu0 %1549
  %1552 = vset.pattern.permute.xlu0 1
  %1553 = vperm.xlu0 %1552, %v1195
  %v1554 = vpop.permute.xlu0 %1553
  %1556 = vset.pattern.permute.xlu0 1
  %1557 = vperm.xlu0 %1556, %v1196
  %v1558 = vpop.permute.xlu0 %1557
  %1560 = vset.pattern.permute.xlu0 1
  %1561 = vperm.xlu0 %1560, %v1197
  %v1562 = vpop.permute.xlu0 %1561
  %1564 = vset.pattern.permute.xlu0 1
  %1565 = vperm.xlu0 %1564, %v1198
  %v1566 = vpop.permute.xlu0 %1565
  %1568 = vset.pattern.permute.xlu0 1
  %1569 = vperm.xlu0 %1568, %v1199
  %v1570 = vpop.permute.xlu0 %1569
  %1572 = vset.pattern.permute.xlu0 1
  %1573 = vperm.xlu0 %1572, %v1200
  %v1574 = vpop.permute.xlu0 %1573
  %1576 = vset.pattern.permute.xlu0 1
  %1577 = vperm.xlu0 %1576, %v1201
  %v1578 = vpop.permute.xlu0 %1577
  %1580 = vset.pattern.permute.xlu0 1
  %1581 = vperm.xlu0 %1580, %v1202
  %v1582 = vpop.permute.xlu0 %1581
  %1584 = vset.pattern.permute.xlu0 1
  %1585 = vperm.xlu0 %1584, %v1203
  %v1586 = vpop.permute.xlu0 %1585
  %1588 = vset.pattern.permute.xlu0 1
  %1589 = vperm.xlu0 %1588, %v1204
  %v1590 = vpop.permute.xlu0 %1589
  %1592 = vset.pattern.permute.xlu0 1
  %1593 = vperm.xlu0 %1592, %v1205
  %v1594 = vpop.permute.xlu0 %1593
  %1596 = vset.pattern.permute.xlu0 1
  %1597 = vperm.xlu0 %1596, %v1206
  %v1598 = vpop.permute.xlu0 %1597
  %1600 = vset.pattern.permute.xlu0 1
  %1601 = vperm.xlu0 %1600, %v1207
  %v1602 = vpop.permute.xlu0 %1601
  %1604 = vset.pattern.permute.xlu0 1
  %1605 = vperm.xlu0 %1604, %v1208
  %v1606 = vpop.permute.xlu0 %1605
  %1608 = vset.pattern.permute.xlu0 1
  %1609 = vperm.xlu0 %1608, %v1209
  %v1610 = vpop.permute.xlu0 %1609
  %1612 = vset.pattern.permute.xlu0 1
  %1613 = vperm.xlu0 %1612, %v1210
  %v1614 = vpop.permute.xlu0 %1613
  %1616 = vset.pattern.permute.xlu0 1
  %1617 = vperm.xlu0 %1616, %v1211
  %v1618 = vpop.permute.xlu0 %1617
  %1620 = vset.pattern.permute.xlu0 1
  %1621 = vperm.xlu0 %1620, %v1212
  %v1622 = vpop.permute.xlu0 %1621
  %1624 = vset.pattern.permute.xlu0 1
  %1625 = vperm.xlu0 %1624, %v1213
  %v1626 = vpop.permute.xlu0 %1625
  %1628 = vset.pattern.permute.xlu0 1
  %1629 = vperm.xlu0 %1628, %v1214
  %v1630 = vpop.permute.xlu0 %1629
  %1632 = vset.pattern.permute.xlu0 1
  %1633 = vperm.xlu0 %1632, %v1215
  %v1634 = vpop.permute.xlu0 %1633
  %1636 = vset.pattern.permute.xlu0 1
  %1637 = vperm.xlu0 %1636, %v1216
  %v1638 = vpop.permute.xlu0 %1637
  %1640 = vset.pattern.permute.xlu0 1
  %1641 = vperm.xlu0 %1640, %v1217
  %v1642 = vpop.permute.xlu0 %1641
  %1644 = vset.pattern.permute.xlu0 1
  %1645 = vperm.xlu0 %1644, %v1218
  %v1646 = vpop.permute.xlu0 %1645
  %1648 = vset.pattern.permute.xlu0 1
  %1649 = vperm.xlu0 %1648, %v1219
  %v1650 = vpop.permute.xlu0 %1649
  %1652 = vset.pattern.permute.xlu0 2
  %1653 = vperm.xlu0 %1652, %v1172
  %v1654 = vpop.permute.xlu0 %1653
  %1656 = vset.pattern.permute.xlu0 2
  %1657 = vperm.xlu0 %1656, %v1173
  %v1658 = vpop.permute.xlu0 %1657
  %1660 = vset.pattern.permute.xlu0 2
  %1661 = vperm.xlu0 %1660, %v1174
  %v1662 = vpop.permute.xlu0 %1661
  %1664 = vset.pattern.permute.xlu0 2
  %1665 = vperm.xlu0 %1664, %v1175
  %v1666 = vpop.permute.xlu0 %1665
  %1668 = vset.pattern.permute.xlu0 2
  %1669 = vperm.xlu0 %1668, %v1176
  %v1670 = vpop.permute.xlu0 %1669
  %1672 = vset.pattern.permute.xlu0 2
  %1673 = vperm.xlu0 %1672, %v1177
  %v1674 = vpop.permute.xlu0 %1673
  %1676 = vset.pattern.permute.xlu0 2
  %1677 = vperm.xlu0 %1676, %v1178
  %v1678 = vpop.permute.xlu0 %1677
  %1680 = vset.pattern.permute.xlu0 2
  %1681 = vperm.xlu0 %1680, %v1179
  %v1682 = vpop.permute.xlu0 %1681
  %1684 = vset.pattern.permute.xlu0 2
  %1685 = vperm.xlu0 %1684, %v1180
  %v1686 = vpop.permute.xlu0 %1685
  %1688 = vset.pattern.permute.xlu0 2
  %1689 = vperm.xlu0 %1688, %v1181
  %v1690 = vpop.permute.xlu0 %1689
  %1692 = vset.pattern.permute.xlu0 2
  %1693 = vperm.xlu0 %1692, %v1182
  %v1694 = vpop.permute.xlu0 %1693
  %1696 = vset.pattern.permute.xlu0 2
  %1697 = vperm.xlu0 %1696, %v1183
  %v1698 = vpop.permute.xlu0 %1697
  %1700 = vset.pattern.permute.xlu0 2
  %1701 = vperm.xlu0 %1700, %v1184
  %v1702 = vpop.permute.xlu0 %1701
  %1704 = vset.pattern.permute.xlu0 2
  %1705 = vperm.xlu0 %1704, %v1185
  %v1706 = vpop.permute.xlu0 %1705
  %1708 = vset.pattern.permute.xlu0 2
  %1709 = vperm.xlu0 %1708, %v1186
  %v1710 = vpop.permute.xlu0 %1709
  %1712 = vset.pattern.permute.xlu0 2
  %1713 = vperm.xlu0 %1712, %v1187
  %v1714 = vpop.permute.xlu0 %1713
  %1716 = vset.pattern.permute.xlu0 2
  %1717 = vperm.xlu0 %1716, %v1188
  %v1718 = vpop.permute.xlu0 %1717
  %1720 = vset.pattern.permute.xlu0 2
  %1721 = vperm.xlu0 %1720, %v1189
  %v1722 = vpop.permute.xlu0 %1721
  %1724 = vset.pattern.permute.xlu0 2
  %1725 = vperm.xlu0 %1724, %v1190
  %v1726 = vpop.permute.xlu0 %1725
  %1728 = vset.pattern.permute.xlu0 2
  %1729 = vperm.xlu0 %1728, %v1191
  %v1730 = vpop.permute.xlu0 %1729
  %1732 = vset.pattern.permute.xlu0 2
  %1733 = vperm.xlu0 %1732, %v1192
  %v1734 = vpop.permute.xlu0 %1733
  %1736 = vset.pattern.permute.xlu0 2
  %1737 = vperm.xlu0 %1736, %v1193
  %v1738 = vpop.permute.xlu0 %1737
  %1740 = vset.pattern.permute.xlu0 2
  %1741 = vperm.xlu0 %1740, %v1194
  %v1742 = vpop.permute.xlu0 %1741
  %1744 = vset.pattern.permute.xlu0 2
  %1745 = vperm.xlu0 %1744, %v1195
  %v1746 = vpop.permute.xlu0 %1745
  %1748 = vset.pattern.permute.xlu0 2
  %1749 = vperm.xlu0 %1748, %v1196
  %v1750 = vpop.permute.xlu0 %1749
  %1752 = vset.pattern.permute.xlu0 2
  %1753 = vperm.xlu0 %1752, %v1197
  %v1754 = vpop.permute.xlu0 %1753
  %1756 = vset.pattern.permute.xlu0 2
  %1757 = vperm.xlu0 %1756, %v1198
  %v1758 = vpop.permute.xlu0 %1757
  %1760 = vset.pattern.permute.xlu0 2
  %1761 = vperm.xlu0 %1760, %v1199
  %v1762 = vpop.permute.xlu0 %1761
  %1764 = vset.pattern.permute.xlu0 2
  %1765 = vperm.xlu0 %1764, %v1200
  %v1766 = vpop.permute.xlu0 %1765
  %1768 = vset.pattern.permute.xlu0 2
  %1769 = vperm.xlu0 %1768, %v1201
  %v1770 = vpop.permute.xlu0 %1769
  %1772 = vset.pattern.permute.xlu0 2
  %1773 = vperm.xlu0 %1772, %v1202
  %v1774 = vpop.permute.xlu0 %1773
  %1776 = vset.pattern.permute.xlu0 2
  %1777 = vperm.xlu0 %1776, %v1203
  %v1778 = vpop.permute.xlu0 %1777
  %1780 = vset.pattern.permute.xlu0 2
  %1781 = vperm.xlu0 %1780, %v1204
  %v1782 = vpop.permute.xlu0 %1781
  %1784 = vset.pattern.permute.xlu0 2
  %1785 = vperm.xlu0 %1784, %v1205
  %v1786 = vpop.permute.xlu0 %1785
  %1788 = vset.pattern.permute.xlu0 2
  %1789 = vperm.xlu0 %1788, %v1206
  %v1790 = vpop.permute.xlu0 %1789
  %1792 = vset.pattern.permute.xlu0 2
  %1793 = vperm.xlu0 %1792, %v1207
  %v1794 = vpop.permute.xlu0 %1793
  %1796 = vset.pattern.permute.xlu0 2
  %1797 = vperm.xlu0 %1796, %v1208
  %v1798 = vpop.permute.xlu0 %1797
  %1800 = vset.pattern.permute.xlu0 2
  %1801 = vperm.xlu0 %1800, %v1209
  %v1802 = vpop.permute.xlu0 %1801
  %1804 = vset.pattern.permute.xlu0 2
  %1805 = vperm.xlu0 %1804, %v1210
  %v1806 = vpop.permute.xlu0 %1805
  %1808 = vset.pattern.permute.xlu0 2
  %1809 = vperm.xlu0 %1808, %v1211
  %v1810 = vpop.permute.xlu0 %1809
  %1812 = vset.pattern.permute.xlu0 2
  %1813 = vperm.xlu0 %1812, %v1212
  %v1814 = vpop.permute.xlu0 %1813
  %1816 = vset.pattern.permute.xlu0 2
  %1817 = vperm.xlu0 %1816, %v1213
  %v1818 = vpop.permute.xlu0 %1817
  %1820 = vset.pattern.permute.xlu0 2
  %1821 = vperm.xlu0 %1820, %v1214
  %v1822 = vpop.permute.xlu0 %1821
  %1824 = vset.pattern.permute.xlu0 2
  %1825 = vperm.xlu0 %1824, %v1215
  %v1826 = vpop.permute.xlu0 %1825
  %1828 = vset.pattern.permute.xlu0 2
  %1829 = vperm.xlu0 %1828, %v1216
  %v1830 = vpop.permute.xlu0 %1829
  %1832 = vset.pattern.permute.xlu0 2
  %1833 = vperm.xlu0 %1832, %v1217
  %v1834 = vpop.permute.xlu0 %1833
  %1836 = vset.pattern.permute.xlu0 2
  %1837 = vperm.xlu0 %1836, %v1218
  %v1838 = vpop.permute.xlu0 %1837
  %1840 = vset.pattern.permute.xlu0 2
  %1841 = vperm.xlu0 %1840, %v1219
  %v1842 = vpop.permute.xlu0 %1841
  %v1844 = vld [vmem:[%s4] sm:$0x7]
  %v1845 = vld [vmem:[%s0] sm:$0xff]
  %v1846 = vld [vmem:[%s0 + $0x8] sm:$0xff]
  %v1849 = vlaneseq
  %v1850 = vshrl.u32 %v1849, 7
  %v1851 = vsub.s32 0, %v1850
  %v1852 = vrot.slane %v1845, %v1851
  %v1853 = vlaneseq
  %v1854 = vshrl.u32 %v1853, 7
  %v1855 = vsub.s32 4, %v1854
  %v1856 = vrot.slane %v1845, %v1855
  %v1857 = vlaneseq
  %v1858 = vshrl.u32 %v1857, 7
  %v1859 = vsub.s32 0, %v1858
  %v1860 = vrot.slane %v1846, %v1859
  %v1861 = vlaneseq
  %v1862 = vshrl.u32 %v1861, 7
  %v1863 = vsub.s32 4, %v1862
  %v1864 = vrot.slane %v1846, %v1863
  %v1869 = vlaneseq
  %v1870 = vshrl.u32 %v1869, 7
  %v1871 = vsub.s32 0, %v1870
  %v1872 = vrot.slane %v1852, %v1871
  %v1873 = vlaneseq
  %v1874 = vshrl.u32 %v1873, 7
  %v1875 = vsub.s32 0, %v1874
  %v1876 = vrot.slane %v1856, %v1875
  %v1877 = vlaneseq
  %v1878 = vshrl.u32 %v1877, 7
  %v1879 = vsub.s32 0, %v1878
  %v1880 = vrot.slane %v1860, %v1879
  %v1881 = vlaneseq
  %v1882 = vshrl.u32 %v1881, 7
  %v1883 = vsub.s32 0, %v1882
  %v1884 = vrot.slane %v1864, %v1883
  %v1885 = vmul.f32 %v71, %v1872
  %v1886 = vmul.f32 %v71, %v1876
  %v1887 = vmul.f32 %v71, %v1880
  %v1888 = vmul.f32 %v71, %v1884
  %v1889 = vmul.f32 %v76, %v1872
  %v1890 = vmul.f32 %v76, %v1876
  %v1891 = vmul.f32 %v76, %v1880
  %v1892 = vmul.f32 %v76, %v1884
  %v1893 = vmul.f32 %v81, %v1872
  %v1894 = vmul.f32 %v81, %v1876
  %v1895 = vmul.f32 %v81, %v1880
  %v1896 = vmul.f32 %v81, %v1884
  %v1897 = vmul.f32 %v86, %v1872
  %v1898 = vmul.f32 %v86, %v1876
  %v1899 = vmul.f32 %v86, %v1880
  %v1900 = vmul.f32 %v86, %v1884
  %v1901 = vmul.f32 %v91, %v1872
  %v1902 = vmul.f32 %v91, %v1876
  %v1903 = vmul.f32 %v91, %v1880
  %v1904 = vmul.f32 %v91, %v1884
  %v1905 = vmul.f32 %v96, %v1872
  %v1906 = vmul.f32 %v96, %v1876
  %v1907 = vmul.f32 %v96, %v1880
  %v1908 = vmul.f32 %v96, %v1884
  %v1909 = vmul.f32 %v101, %v1872
  %v1910 = vmul.f32 %v101, %v1876
  %v1911 = vmul.f32 %v101, %v1880
  %v1912 = vmul.f32 %v101, %v1884
  %v1913 = vmul.f32 %v106, %v1872
  %v1914 = vmul.f32 %v106, %v1876
  %v1915 = vmul.f32 %v106, %v1880
  %v1916 = vmul.f32 %v106, %v1884
  %v1917 = vmul.f32 %v111, %v1872
  %v1918 = vmul.f32 %v111, %v1876
  %v1919 = vmul.f32 %v111, %v1880
  %v1920 = vmul.f32 %v111, %v1884
  %v1921 = vmul.f32 %v116, %v1872
  %v1922 = vmul.f32 %v116, %v1876
  %v1923 = vmul.f32 %v116, %v1880
  %v1924 = vmul.f32 %v116, %v1884
  %v1925 = vmul.f32 %v121, %v1872
  %v1926 = vmul.f32 %v121, %v1876
  %v1927 = vmul.f32 %v121, %v1880
  %v1928 = vmul.f32 %v121, %v1884
  %v1929 = vmul.f32 %v126, %v1872
  %v1930 = vmul.f32 %v126, %v1876
  %v1931 = vmul.f32 %v126, %v1880
  %v1932 = vmul.f32 %v126, %v1884
  %v1933 = vmul.f32 %v131, %v1872
  %v1934 = vmul.f32 %v131, %v1876
  %v1935 = vmul.f32 %v131, %v1880
  %v1936 = vmul.f32 %v131, %v1884
  %v1937 = vmul.f32 %v136, %v1872
  %v1938 = vmul.f32 %v136, %v1876
  %v1939 = vmul.f32 %v136, %v1880
  %v1940 = vmul.f32 %v136, %v1884
  %v1941 = vmul.f32 %v141, %v1872
  %v1942 = vmul.f32 %v141, %v1876
  %v1943 = vmul.f32 %v141, %v1880
  %v1944 = vmul.f32 %v141, %v1884
  %v1945 = vmul.f32 %v146, %v1872
  %v1946 = vmul.f32 %v146, %v1876
  %v1947 = vmul.f32 %v146, %v1880
  %v1948 = vmul.f32 %v146, %v1884
  %v1949 = vmul.f32 %v151, %v1872
  %v1950 = vmul.f32 %v151, %v1876
  %v1951 = vmul.f32 %v151, %v1880
  %v1952 = vmul.f32 %v151, %v1884
  %v1953 = vmul.f32 %v156, %v1872
  %v1954 = vmul.f32 %v156, %v1876
  %v1955 = vmul.f32 %v156, %v1880
  %v1956 = vmul.f32 %v156, %v1884
  %v1957 = vmul.f32 %v161, %v1872
  %v1958 = vmul.f32 %v161, %v1876
  %v1959 = vmul.f32 %v161, %v1880
  %v1960 = vmul.f32 %v161, %v1884
  %v1961 = vmul.f32 %v166, %v1872
  %v1962 = vmul.f32 %v166, %v1876
  %v1963 = vmul.f32 %v166, %v1880
  %v1964 = vmul.f32 %v166, %v1884
  %v1965 = vmul.f32 %v171, %v1872
  %v1966 = vmul.f32 %v171, %v1876
  %v1967 = vmul.f32 %v171, %v1880
  %v1968 = vmul.f32 %v171, %v1884
  %v1969 = vmul.f32 %v176, %v1872
  %v1970 = vmul.f32 %v176, %v1876
  %v1971 = vmul.f32 %v176, %v1880
  %v1972 = vmul.f32 %v176, %v1884
  %v1973 = vmul.f32 %v181, %v1872
  %v1974 = vmul.f32 %v181, %v1876
  %v1975 = vmul.f32 %v181, %v1880
  %v1976 = vmul.f32 %v181, %v1884
  %v1977 = vmul.f32 %v186, %v1872
  %v1978 = vmul.f32 %v186, %v1876
  %v1979 = vmul.f32 %v186, %v1880
  %v1980 = vmul.f32 %v186, %v1884
  %v1981 = vmul.f32 %v191, %v1872
  %v1982 = vmul.f32 %v191, %v1876
  %v1983 = vmul.f32 %v191, %v1880
  %v1984 = vmul.f32 %v191, %v1884
  %v1985 = vmul.f32 %v196, %v1872
  %v1986 = vmul.f32 %v196, %v1876
  %v1987 = vmul.f32 %v196, %v1880
  %v1988 = vmul.f32 %v196, %v1884
  %v1989 = vmul.f32 %v201, %v1872
  %v1990 = vmul.f32 %v201, %v1876
  %v1991 = vmul.f32 %v201, %v1880
  %v1992 = vmul.f32 %v201, %v1884
  %v1993 = vmul.f32 %v206, %v1872
  %v1994 = vmul.f32 %v206, %v1876
  %v1995 = vmul.f32 %v206, %v1880
  %v1996 = vmul.f32 %v206, %v1884
  %v1997 = vmul.f32 %v211, %v1872
  %v1998 = vmul.f32 %v211, %v1876
  %v1999 = vmul.f32 %v211, %v1880
  %v2000 = vmul.f32 %v211, %v1884
  %v2001 = vmul.f32 %v216, %v1872
  %v2002 = vmul.f32 %v216, %v1876
  %v2003 = vmul.f32 %v216, %v1880
  %v2004 = vmul.f32 %v216, %v1884
  %v2005 = vmul.f32 %v221, %v1872
  %v2006 = vmul.f32 %v221, %v1876
  %v2007 = vmul.f32 %v221, %v1880
  %v2008 = vmul.f32 %v221, %v1884
  %v2009 = vmul.f32 %v226, %v1872
  %v2010 = vmul.f32 %v226, %v1876
  %v2011 = vmul.f32 %v226, %v1880
  %v2012 = vmul.f32 %v226, %v1884
  %v2013 = vmul.f32 %v231, %v1872
  %v2014 = vmul.f32 %v231, %v1876
  %v2015 = vmul.f32 %v231, %v1880
  %v2016 = vmul.f32 %v231, %v1884
  %v2017 = vmul.f32 %v236, %v1872
  %v2018 = vmul.f32 %v236, %v1876
  %v2019 = vmul.f32 %v236, %v1880
  %v2020 = vmul.f32 %v236, %v1884
  %v2021 = vmul.f32 %v241, %v1872
  %v2022 = vmul.f32 %v241, %v1876
  %v2023 = vmul.f32 %v241, %v1880
  %v2024 = vmul.f32 %v241, %v1884
  %v2025 = vmul.f32 %v246, %v1872
  %v2026 = vmul.f32 %v246, %v1876
  %v2027 = vmul.f32 %v246, %v1880
  %v2028 = vmul.f32 %v246, %v1884
  %v2029 = vmul.f32 %v251, %v1872
  %v2030 = vmul.f32 %v251, %v1876
  %v2031 = vmul.f32 %v251, %v1880
  %v2032 = vmul.f32 %v251, %v1884
  %v2033 = vmul.f32 %v256, %v1872
  %v2034 = vmul.f32 %v256, %v1876
  %v2035 = vmul.f32 %v256, %v1880
  %v2036 = vmul.f32 %v256, %v1884
  %v2037 = vmul.f32 %v261, %v1872
  %v2038 = vmul.f32 %v261, %v1876
  %v2039 = vmul.f32 %v261, %v1880
  %v2040 = vmul.f32 %v261, %v1884
  %v2041 = vmul.f32 %v266, %v1872
  %v2042 = vmul.f32 %v266, %v1876
  %v2043 = vmul.f32 %v266, %v1880
  %v2044 = vmul.f32 %v266, %v1884
  %v2045 = vmul.f32 %v271, %v1872
  %v2046 = vmul.f32 %v271, %v1876
  %v2047 = vmul.f32 %v271, %v1880
  %v2048 = vmul.f32 %v271, %v1884
  %v2049 = vmul.f32 %v276, %v1872
  %v2050 = vmul.f32 %v276, %v1876
  %v2051 = vmul.f32 %v276, %v1880
  %v2052 = vmul.f32 %v276, %v1884
  %v2053 = vmul.f32 %v281, %v1872
  %v2054 = vmul.f32 %v281, %v1876
  %v2055 = vmul.f32 %v281, %v1880
  %v2056 = vmul.f32 %v281, %v1884
  %v2057 = vmul.f32 %v286, %v1872
  %v2058 = vmul.f32 %v286, %v1876
  %v2059 = vmul.f32 %v286, %v1880
  %v2060 = vmul.f32 %v286, %v1884
  %v2061 = vmul.f32 %v291, %v1872
  %v2062 = vmul.f32 %v291, %v1876
  %v2063 = vmul.f32 %v291, %v1880
  %v2064 = vmul.f32 %v291, %v1884
  %v2065 = vmul.f32 %v296, %v1872
  %v2066 = vmul.f32 %v296, %v1876
  %v2067 = vmul.f32 %v296, %v1880
  %v2068 = vmul.f32 %v296, %v1884
  %v2069 = vmul.f32 %v301, %v1872
  %v2070 = vmul.f32 %v301, %v1876
  %v2071 = vmul.f32 %v301, %v1880
  %v2072 = vmul.f32 %v301, %v1884
  %v2073 = vmul.f32 %v306, %v1872
  %v2074 = vmul.f32 %v306, %v1876
  %v2075 = vmul.f32 %v306, %v1880
  %v2076 = vmul.f32 %v306, %v1884
  %v2077 = vadd.f32 %v935, %v1885
  %v2078 = vadd.f32 %v935, %v1886
  %v2079 = vadd.f32 %v935, %v1887
  %v2080 = vadd.f32 %v935, %v1888
  %v2081 = vadd.f32 %v940, %v1889
  %v2082 = vadd.f32 %v940, %v1890
  %v2083 = vadd.f32 %v940, %v1891
  %v2084 = vadd.f32 %v940, %v1892
  %v2085 = vadd.f32 %v945, %v1893
  %v2086 = vadd.f32 %v945, %v1894
  %v2087 = vadd.f32 %v945, %v1895
  %v2088 = vadd.f32 %v945, %v1896
  %v2089 = vadd.f32 %v950, %v1897
  %v2090 = vadd.f32 %v950, %v1898
  %v2091 = vadd.f32 %v950, %v1899
  %v2092 = vadd.f32 %v950, %v1900
  %v2093 = vadd.f32 %v955, %v1901
  %v2094 = vadd.f32 %v955, %v1902
  %v2095 = vadd.f32 %v955, %v1903
  %v2096 = vadd.f32 %v955, %v1904
  %v2097 = vadd.f32 %v960, %v1905
  %v2098 = vadd.f32 %v960, %v1906
  %v2099 = vadd.f32 %v960, %v1907
  %v2100 = vadd.f32 %v960, %v1908
  %v2101 = vadd.f32 %v965, %v1909
  %v2102 = vadd.f32 %v965, %v1910
  %v2103 = vadd.f32 %v965, %v1911
  %v2104 = vadd.f32 %v965, %v1912
  %v2105 = vadd.f32 %v970, %v1913
  %v2106 = vadd.f32 %v970, %v1914
  %v2107 = vadd.f32 %v970, %v1915
  %v2108 = vadd.f32 %v970, %v1916
  %v2109 = vadd.f32 %v975, %v1917
  %v2110 = vadd.f32 %v975, %v1918
  %v2111 = vadd.f32 %v975, %v1919
  %v2112 = vadd.f32 %v975, %v1920
  %v2113 = vadd.f32 %v980, %v1921
  %v2114 = vadd.f32 %v980, %v1922
  %v2115 = vadd.f32 %v980, %v1923
  %v2116 = vadd.f32 %v980, %v1924
  %v2117 = vadd.f32 %v985, %v1925
  %v2118 = vadd.f32 %v985, %v1926
  %v2119 = vadd.f32 %v985, %v1927
  %v2120 = vadd.f32 %v985, %v1928
  %v2121 = vadd.f32 %v990, %v1929
  %v2122 = vadd.f32 %v990, %v1930
  %v2123 = vadd.f32 %v990, %v1931
  %v2124 = vadd.f32 %v990, %v1932
  %v2125 = vadd.f32 %v995, %v1933
  %v2126 = vadd.f32 %v995, %v1934
  %v2127 = vadd.f32 %v995, %v1935
  %v2128 = vadd.f32 %v995, %v1936
  %v2129 = vadd.f32 %v1000, %v1937
  %v2130 = vadd.f32 %v1000, %v1938
  %v2131 = vadd.f32 %v1000, %v1939
  %v2132 = vadd.f32 %v1000, %v1940
  %v2133 = vadd.f32 %v1005, %v1941
  %v2134 = vadd.f32 %v1005, %v1942
  %v2135 = vadd.f32 %v1005, %v1943
  %v2136 = vadd.f32 %v1005, %v1944
  %v2137 = vadd.f32 %v1010, %v1945
  %v2138 = vadd.f32 %v1010, %v1946
  %v2139 = vadd.f32 %v1010, %v1947
  %v2140 = vadd.f32 %v1010, %v1948
  %v2141 = vadd.f32 %v1015, %v1949
  %v2142 = vadd.f32 %v1015, %v1950
  %v2143 = vadd.f32 %v1015, %v1951
  %v2144 = vadd.f32 %v1015, %v1952
  %v2145 = vadd.f32 %v1020, %v1953
  %v2146 = vadd.f32 %v1020, %v1954
  %v2147 = vadd.f32 %v1020, %v1955
  %v2148 = vadd.f32 %v1020, %v1956
  %v2149 = vadd.f32 %v1025, %v1957
  %v2150 = vadd.f32 %v1025, %v1958
  %v2151 = vadd.f32 %v1025, %v1959
  %v2152 = vadd.f32 %v1025, %v1960
  %v2153 = vadd.f32 %v1030, %v1961
  %v2154 = vadd.f32 %v1030, %v1962
  %v2155 = vadd.f32 %v1030, %v1963
  %v2156 = vadd.f32 %v1030, %v1964
  %v2157 = vadd.f32 %v1035, %v1965
  %v2158 = vadd.f32 %v1035, %v1966
  %v2159 = vadd.f32 %v1035, %v1967
  %v2160 = vadd.f32 %v1035, %v1968
  %v2161 = vadd.f32 %v1040, %v1969
  %v2162 = vadd.f32 %v1040, %v1970
  %v2163 = vadd.f32 %v1040, %v1971
  %v2164 = vadd.f32 %v1040, %v1972
  %v2165 = vadd.f32 %v1045, %v1973
  %v2166 = vadd.f32 %v1045, %v1974
  %v2167 = vadd.f32 %v1045, %v1975
  %v2168 = vadd.f32 %v1045, %v1976
  %v2169 = vadd.f32 %v1050, %v1977
  %v2170 = vadd.f32 %v1050, %v1978
  %v2171 = vadd.f32 %v1050, %v1979
  %v2172 = vadd.f32 %v1050, %v1980
  %v2173 = vadd.f32 %v1055, %v1981
  %v2174 = vadd.f32 %v1055, %v1982
  %v2175 = vadd.f32 %v1055, %v1983
  %v2176 = vadd.f32 %v1055, %v1984
  %v2177 = vadd.f32 %v1060, %v1985
  %v2178 = vadd.f32 %v1060, %v1986
  %v2179 = vadd.f32 %v1060, %v1987
  %v2180 = vadd.f32 %v1060, %v1988
  %v2181 = vadd.f32 %v1065, %v1989
  %v2182 = vadd.f32 %v1065, %v1990
  %v2183 = vadd.f32 %v1065, %v1991
  %v2184 = vadd.f32 %v1065, %v1992
  %v2185 = vadd.f32 %v1070, %v1993
  %v2186 = vadd.f32 %v1070, %v1994
  %v2187 = vadd.f32 %v1070, %v1995
  %v2188 = vadd.f32 %v1070, %v1996
  %v2189 = vadd.f32 %v1075, %v1997
  %v2190 = vadd.f32 %v1075, %v1998
  %v2191 = vadd.f32 %v1075, %v1999
  %v2192 = vadd.f32 %v1075, %v2000
  %v2193 = vadd.f32 %v1080, %v2001
  %v2194 = vadd.f32 %v1080, %v2002
  %v2195 = vadd.f32 %v1080, %v2003
  %v2196 = vadd.f32 %v1080, %v2004
  %v2197 = vadd.f32 %v1085, %v2005
  %v2198 = vadd.f32 %v1085, %v2006
  %v2199 = vadd.f32 %v1085, %v2007
  %v2200 = vadd.f32 %v1085, %v2008
  %v2201 = vadd.f32 %v1090, %v2009
  %v2202 = vadd.f32 %v1090, %v2010
  %v2203 = vadd.f32 %v1090, %v2011
  %v2204 = vadd.f32 %v1090, %v2012
  %v2205 = vadd.f32 %v1095, %v2013
  %v2206 = vadd.f32 %v1095, %v2014
  %v2207 = vadd.f32 %v1095, %v2015
  %v2208 = vadd.f32 %v1095, %v2016
  %v2209 = vadd.f32 %v1100, %v2017
  %v2210 = vadd.f32 %v1100, %v2018
  %v2211 = vadd.f32 %v1100, %v2019
  %v2212 = vadd.f32 %v1100, %v2020
  %v2213 = vadd.f32 %v1105, %v2021
  %v2214 = vadd.f32 %v1105, %v2022
  %v2215 = vadd.f32 %v1105, %v2023
  %v2216 = vadd.f32 %v1105, %v2024
  %v2217 = vadd.f32 %v1110, %v2025
  %v2218 = vadd.f32 %v1110, %v2026
  %v2219 = vadd.f32 %v1110, %v2027
  %v2220 = vadd.f32 %v1110, %v2028
  %v2221 = vadd.f32 %v1115, %v2029
  %v2222 = vadd.f32 %v1115, %v2030
  %v2223 = vadd.f32 %v1115, %v2031
  %v2224 = vadd.f32 %v1115, %v2032
  %v2225 = vadd.f32 %v1120, %v2033
  %v2226 = vadd.f32 %v1120, %v2034
  %v2227 = vadd.f32 %v1120, %v2035
  %v2228 = vadd.f32 %v1120, %v2036
  %v2229 = vadd.f32 %v1125, %v2037
  %v2230 = vadd.f32 %v1125, %v2038
  %v2231 = vadd.f32 %v1125, %v2039
  %v2232 = vadd.f32 %v1125, %v2040
  %v2233 = vadd.f32 %v1130, %v2041
  %v2234 = vadd.f32 %v1130, %v2042
  %v2235 = vadd.f32 %v1130, %v2043
  %v2236 = vadd.f32 %v1130, %v2044
  %v2237 = vadd.f32 %v1135, %v2045
  %v2238 = vadd.f32 %v1135, %v2046
  %v2239 = vadd.f32 %v1135, %v2047
  %v2240 = vadd.f32 %v1135, %v2048
  %v2241 = vadd.f32 %v1140, %v2049
  %v2242 = vadd.f32 %v1140, %v2050
  %v2243 = vadd.f32 %v1140, %v2051
  %v2244 = vadd.f32 %v1140, %v2052
  %v2245 = vadd.f32 %v1145, %v2053
  %v2246 = vadd.f32 %v1145, %v2054
  %v2247 = vadd.f32 %v1145, %v2055
  %v2248 = vadd.f32 %v1145, %v2056
  %v2249 = vadd.f32 %v1150, %v2057
  %v2250 = vadd.f32 %v1150, %v2058
  %v2251 = vadd.f32 %v1150, %v2059
  %v2252 = vadd.f32 %v1150, %v2060
  %v2253 = vadd.f32 %v1155, %v2061
  %v2254 = vadd.f32 %v1155, %v2062
  %v2255 = vadd.f32 %v1155, %v2063
  %v2256 = vadd.f32 %v1155, %v2064
  %v2257 = vadd.f32 %v1160, %v2065
  %v2258 = vadd.f32 %v1160, %v2066
  %v2259 = vadd.f32 %v1160, %v2067
  %v2260 = vadd.f32 %v1160, %v2068
  %v2261 = vadd.f32 %v1165, %v2069
  %v2262 = vadd.f32 %v1165, %v2070
  %v2263 = vadd.f32 %v1165, %v2071
  %v2264 = vadd.f32 %v1165, %v2072
  %v2265 = vadd.f32 %v1170, %v2073
  %v2266 = vadd.f32 %v1170, %v2074
  %v2267 = vadd.f32 %v1170, %v2075
  %v2268 = vadd.f32 %v1170, %v2076
  %v2269 = vlaneseq
  %v2270 = vshrl.u32 %v2269, 7
  %v2271 = vsub.s32 1, %v2270
  %v2272 = vrot.slane %v1845, %v2271
  %v2273 = vlaneseq
  %v2274 = vshrl.u32 %v2273, 7
  %v2275 = vsub.s32 5, %v2274
  %v2276 = vrot.slane %v1845, %v2275
  %v2277 = vlaneseq
  %v2278 = vshrl.u32 %v2277, 7
  %v2279 = vsub.s32 1, %v2278
  %v2280 = vrot.slane %v1846, %v2279
  %v2281 = vlaneseq
  %v2282 = vshrl.u32 %v2281, 7
  %v2283 = vsub.s32 5, %v2282
  %v2284 = vrot.slane %v1846, %v2283
  %v2289 = vlaneseq
  %v2290 = vshrl.u32 %v2289, 7
  %v2291 = vsub.s32 1, %v2290
  %v2292 = vrot.slane %v2272, %v2291
  %v2293 = vlaneseq
  %v2294 = vshrl.u32 %v2293, 7
  %v2295 = vsub.s32 1, %v2294
  %v2296 = vrot.slane %v2276, %v2295
  %v2297 = vlaneseq
  %v2298 = vshrl.u32 %v2297, 7
  %v2299 = vsub.s32 1, %v2298
  %v2300 = vrot.slane %v2280, %v2299
  %v2301 = vlaneseq
  %v2302 = vshrl.u32 %v2301, 7
  %v2303 = vsub.s32 1, %v2302
  %v2304 = vrot.slane %v2284, %v2303
  %v2305 = vmul.f32 %v310, %v2292
  %v2306 = vmul.f32 %v310, %v2296
  %v2307 = vmul.f32 %v310, %v2300
  %v2308 = vmul.f32 %v310, %v2304
  %v2309 = vmul.f32 %v314, %v2292
  %v2310 = vmul.f32 %v314, %v2296
  %v2311 = vmul.f32 %v314, %v2300
  %v2312 = vmul.f32 %v314, %v2304
  %v2313 = vmul.f32 %v318, %v2292
  %v2314 = vmul.f32 %v318, %v2296
  %v2315 = vmul.f32 %v318, %v2300
  %v2316 = vmul.f32 %v318, %v2304
  %v2317 = vmul.f32 %v322, %v2292
  %v2318 = vmul.f32 %v322, %v2296
  %v2319 = vmul.f32 %v322, %v2300
  %v2320 = vmul.f32 %v322, %v2304
  %v2321 = vmul.f32 %v326, %v2292
  %v2322 = vmul.f32 %v326, %v2296
  %v2323 = vmul.f32 %v326, %v2300
  %v2324 = vmul.f32 %v326, %v2304
  %v2325 = vmul.f32 %v330, %v2292
  %v2326 = vmul.f32 %v330, %v2296
  %v2327 = vmul.f32 %v330, %v2300
  %v2328 = vmul.f32 %v330, %v2304
  %v2329 = vmul.f32 %v334, %v2292
  %v2330 = vmul.f32 %v334, %v2296
  %v2331 = vmul.f32 %v334, %v2300
  %v2332 = vmul.f32 %v334, %v2304
  %v2333 = vmul.f32 %v338, %v2292
  %v2334 = vmul.f32 %v338, %v2296
  %v2335 = vmul.f32 %v338, %v2300
  %v2336 = vmul.f32 %v338, %v2304
  %v2337 = vmul.f32 %v342, %v2292
  %v2338 = vmul.f32 %v342, %v2296
  %v2339 = vmul.f32 %v342, %v2300
  %v2340 = vmul.f32 %v342, %v2304
  %v2341 = vmul.f32 %v346, %v2292
  %v2342 = vmul.f32 %v346, %v2296
  %v2343 = vmul.f32 %v346, %v2300
  %v2344 = vmul.f32 %v346, %v2304
  %v2345 = vmul.f32 %v350, %v2292
  %v2346 = vmul.f32 %v350, %v2296
  %v2347 = vmul.f32 %v350, %v2300
  %v2348 = vmul.f32 %v350, %v2304
  %v2349 = vmul.f32 %v354, %v2292
  %v2350 = vmul.f32 %v354, %v2296
  %v2351 = vmul.f32 %v354, %v2300
  %v2352 = vmul.f32 %v354, %v2304
  %v2353 = vmul.f32 %v358, %v2292
  %v2354 = vmul.f32 %v358, %v2296
  %v2355 = vmul.f32 %v358, %v2300
  %v2356 = vmul.f32 %v358, %v2304
  %v2357 = vmul.f32 %v362, %v2292
  %v2358 = vmul.f32 %v362, %v2296
  %v2359 = vmul.f32 %v362, %v2300
  %v2360 = vmul.f32 %v362, %v2304
  %v2361 = vmul.f32 %v366, %v2292
  %v2362 = vmul.f32 %v366, %v2296
  %v2363 = vmul.f32 %v366, %v2300
  %v2364 = vmul.f32 %v366, %v2304
  %v2365 = vmul.f32 %v370, %v2292
  %v2366 = vmul.f32 %v370, %v2296
  %v2367 = vmul.f32 %v370, %v2300
  %v2368 = vmul.f32 %v370, %v2304
  %v2369 = vmul.f32 %v374, %v2292
  %v2370 = vmul.f32 %v374, %v2296
  %v2371 = vmul.f32 %v374, %v2300
  %v2372 = vmul.f32 %v374, %v2304
  %v2373 = vmul.f32 %v378, %v2292
  %v2374 = vmul.f32 %v378, %v2296
  %v2375 = vmul.f32 %v378, %v2300
  %v2376 = vmul.f32 %v378, %v2304
  %v2377 = vmul.f32 %v382, %v2292
  %v2378 = vmul.f32 %v382, %v2296
  %v2379 = vmul.f32 %v382, %v2300
  %v2380 = vmul.f32 %v382, %v2304
  %v2381 = vmul.f32 %v386, %v2292
  %v2382 = vmul.f32 %v386, %v2296
  %v2383 = vmul.f32 %v386, %v2300
  %v2384 = vmul.f32 %v386, %v2304
  %v2385 = vmul.f32 %v390, %v2292
  %v2386 = vmul.f32 %v390, %v2296
  %v2387 = vmul.f32 %v390, %v2300
  %v2388 = vmul.f32 %v390, %v2304
  %v2389 = vmul.f32 %v394, %v2292
  %v2390 = vmul.f32 %v394, %v2296
  %v2391 = vmul.f32 %v394, %v2300
  %v2392 = vmul.f32 %v394, %v2304
  %v2393 = vmul.f32 %v398, %v2292
  %v2394 = vmul.f32 %v398, %v2296
  %v2395 = vmul.f32 %v398, %v2300
  %v2396 = vmul.f32 %v398, %v2304
  %v2397 = vmul.f32 %v402, %v2292
  %v2398 = vmul.f32 %v402, %v2296
  %v2399 = vmul.f32 %v402, %v2300
  %v2400 = vmul.f32 %v402, %v2304
  %v2401 = vmul.f32 %v406, %v2292
  %v2402 = vmul.f32 %v406, %v2296
  %v2403 = vmul.f32 %v406, %v2300
  %v2404 = vmul.f32 %v406, %v2304
  %v2405 = vmul.f32 %v410, %v2292
  %v2406 = vmul.f32 %v410, %v2296
  %v2407 = vmul.f32 %v410, %v2300
  %v2408 = vmul.f32 %v410, %v2304
  %v2409 = vmul.f32 %v414, %v2292
  %v2410 = vmul.f32 %v414, %v2296
  %v2411 = vmul.f32 %v414, %v2300
  %v2412 = vmul.f32 %v414, %v2304
  %v2413 = vmul.f32 %v418, %v2292
  %v2414 = vmul.f32 %v418, %v2296
  %v2415 = vmul.f32 %v418, %v2300
  %v2416 = vmul.f32 %v418, %v2304
  %v2417 = vmul.f32 %v422, %v2292
  %v2418 = vmul.f32 %v422, %v2296
  %v2419 = vmul.f32 %v422, %v2300
  %v2420 = vmul.f32 %v422, %v2304
  %v2421 = vmul.f32 %v426, %v2292
  %v2422 = vmul.f32 %v426, %v2296
  %v2423 = vmul.f32 %v426, %v2300
  %v2424 = vmul.f32 %v426, %v2304
  %v2425 = vmul.f32 %v430, %v2292
  %v2426 = vmul.f32 %v430, %v2296
  %v2427 = vmul.f32 %v430, %v2300
  %v2428 = vmul.f32 %v430, %v2304
  %v2429 = vmul.f32 %v434, %v2292
  %v2430 = vmul.f32 %v434, %v2296
  %v2431 = vmul.f32 %v434, %v2300
  %v2432 = vmul.f32 %v434, %v2304
  %v2433 = vmul.f32 %v438, %v2292
  %v2434 = vmul.f32 %v438, %v2296
  %v2435 = vmul.f32 %v438, %v2300
  %v2436 = vmul.f32 %v438, %v2304
  %v2437 = vmul.f32 %v442, %v2292
  %v2438 = vmul.f32 %v442, %v2296
  %v2439 = vmul.f32 %v442, %v2300
  %v2440 = vmul.f32 %v442, %v2304
  %v2441 = vmul.f32 %v446, %v2292
  %v2442 = vmul.f32 %v446, %v2296
  %v2443 = vmul.f32 %v446, %v2300
  %v2444 = vmul.f32 %v446, %v2304
  %v2445 = vmul.f32 %v450, %v2292
  %v2446 = vmul.f32 %v450, %v2296
  %v2447 = vmul.f32 %v450, %v2300
  %v2448 = vmul.f32 %v450, %v2304
  %v2449 = vmul.f32 %v454, %v2292
  %v2450 = vmul.f32 %v454, %v2296
  %v2451 = vmul.f32 %v454, %v2300
  %v2452 = vmul.f32 %v454, %v2304
  %v2453 = vmul.f32 %v458, %v2292
  %v2454 = vmul.f32 %v458, %v2296
  %v2455 = vmul.f32 %v458, %v2300
  %v2456 = vmul.f32 %v458, %v2304
  %v2457 = vmul.f32 %v462, %v2292
  %v2458 = vmul.f32 %v462, %v2296
  %v2459 = vmul.f32 %v462, %v2300
  %v2460 = vmul.f32 %v462, %v2304
  %v2461 = vmul.f32 %v466, %v2292
  %v2462 = vmul.f32 %v466, %v2296
  %v2463 = vmul.f32 %v466, %v2300
  %v2464 = vmul.f32 %v466, %v2304
  %v2465 = vmul.f32 %v470, %v2292
  %v2466 = vmul.f32 %v470, %v2296
  %v2467 = vmul.f32 %v470, %v2300
  %v2468 = vmul.f32 %v470, %v2304
  %v2469 = vmul.f32 %v474, %v2292
  %v2470 = vmul.f32 %v474, %v2296
  %v2471 = vmul.f32 %v474, %v2300
  %v2472 = vmul.f32 %v474, %v2304
  %v2473 = vmul.f32 %v478, %v2292
  %v2474 = vmul.f32 %v478, %v2296
  %v2475 = vmul.f32 %v478, %v2300
  %v2476 = vmul.f32 %v478, %v2304
  %v2477 = vmul.f32 %v482, %v2292
  %v2478 = vmul.f32 %v482, %v2296
  %v2479 = vmul.f32 %v482, %v2300
  %v2480 = vmul.f32 %v482, %v2304
  %v2481 = vmul.f32 %v486, %v2292
  %v2482 = vmul.f32 %v486, %v2296
  %v2483 = vmul.f32 %v486, %v2300
  %v2484 = vmul.f32 %v486, %v2304
  %v2485 = vmul.f32 %v490, %v2292
  %v2486 = vmul.f32 %v490, %v2296
  %v2487 = vmul.f32 %v490, %v2300
  %v2488 = vmul.f32 %v490, %v2304
  %v2489 = vmul.f32 %v494, %v2292
  %v2490 = vmul.f32 %v494, %v2296
  %v2491 = vmul.f32 %v494, %v2300
  %v2492 = vmul.f32 %v494, %v2304
  %v2493 = vmul.f32 %v498, %v2292
  %v2494 = vmul.f32 %v498, %v2296
  %v2495 = vmul.f32 %v498, %v2300
  %v2496 = vmul.f32 %v498, %v2304
  %v2497 = vadd.f32 %v2077, %v2305
  %v2498 = vadd.f32 %v2078, %v2306
  %v2499 = vadd.f32 %v2079, %v2307
  %v2500 = vadd.f32 %v2080, %v2308
  %v2501 = vadd.f32 %v2081, %v2309
  %v2502 = vadd.f32 %v2082, %v2310
  %v2503 = vadd.f32 %v2083, %v2311
  %v2504 = vadd.f32 %v2084, %v2312
  %v2505 = vadd.f32 %v2085, %v2313
  %v2506 = vadd.f32 %v2086, %v2314
  %v2507 = vadd.f32 %v2087, %v2315
  %v2508 = vadd.f32 %v2088, %v2316
  %v2509 = vadd.f32 %v2089, %v2317
  %v2510 = vadd.f32 %v2090, %v2318
  %v2511 = vadd.f32 %v2091, %v2319
  %v2512 = vadd.f32 %v2092, %v2320
  %v2513 = vadd.f32 %v2093, %v2321
  %v2514 = vadd.f32 %v2094, %v2322
  %v2515 = vadd.f32 %v2095, %v2323
  %v2516 = vadd.f32 %v2096, %v2324
  %v2517 = vadd.f32 %v2097, %v2325
  %v2518 = vadd.f32 %v2098, %v2326
  %v2519 = vadd.f32 %v2099, %v2327
  %v2520 = vadd.f32 %v2100, %v2328
  %v2521 = vadd.f32 %v2101, %v2329
  %v2522 = vadd.f32 %v2102, %v2330
  %v2523 = vadd.f32 %v2103, %v2331
  %v2524 = vadd.f32 %v2104, %v2332
  %v2525 = vadd.f32 %v2105, %v2333
  %v2526 = vadd.f32 %v2106, %v2334
  %v2527 = vadd.f32 %v2107, %v2335
  %v2528 = vadd.f32 %v2108, %v2336
  %v2529 = vadd.f32 %v2109, %v2337
  %v2530 = vadd.f32 %v2110, %v2338
  %v2531 = vadd.f32 %v2111, %v2339
  %v2532 = vadd.f32 %v2112, %v2340
  %v2533 = vadd.f32 %v2113, %v2341
  %v2534 = vadd.f32 %v2114, %v2342
  %v2535 = vadd.f32 %v2115, %v2343
  %v2536 = vadd.f32 %v2116, %v2344
  %v2537 = vadd.f32 %v2117, %v2345
  %v2538 = vadd.f32 %v2118, %v2346
  %v2539 = vadd.f32 %v2119, %v2347
  %v2540 = vadd.f32 %v2120, %v2348
  %v2541 = vadd.f32 %v2121, %v2349
  %v2542 = vadd.f32 %v2122, %v2350
  %v2543 = vadd.f32 %v2123, %v2351
  %v2544 = vadd.f32 %v2124, %v2352
  %v2545 = vadd.f32 %v2125, %v2353
  %v2546 = vadd.f32 %v2126, %v2354
  %v2547 = vadd.f32 %v2127, %v2355
  %v2548 = vadd.f32 %v2128, %v2356
  %v2549 = vadd.f32 %v2129, %v2357
  %v2550 = vadd.f32 %v2130, %v2358
  %v2551 = vadd.f32 %v2131, %v2359
  %v2552 = vadd.f32 %v2132, %v2360
  %v2553 = vadd.f32 %v2133, %v2361
  %v2554 = vadd.f32 %v2134, %v2362
  %v2555 = vadd.f32 %v2135, %v2363
  %v2556 = vadd.f32 %v2136, %v2364
  %v2557 = vadd.f32 %v2137, %v2365
  %v2558 = vadd.f32 %v2138, %v2366
  %v2559 = vadd.f32 %v2139, %v2367
  %v2560 = vadd.f32 %v2140, %v2368
  %v2561 = vadd.f32 %v2141, %v2369
  %v2562 = vadd.f32 %v2142, %v2370
  %v2563 = vadd.f32 %v2143, %v2371
  %v2564 = vadd.f32 %v2144, %v2372
  %v2565 = vadd.f32 %v2145, %v2373
  %v2566 = vadd.f32 %v2146, %v2374
  %v2567 = vadd.f32 %v2147, %v2375
  %v2568 = vadd.f32 %v2148, %v2376
  %v2569 = vadd.f32 %v2149, %v2377
  %v2570 = vadd.f32 %v2150, %v2378
  %v2571 = vadd.f32 %v2151, %v2379
  %v2572 = vadd.f32 %v2152, %v2380
  %v2573 = vadd.f32 %v2153, %v2381
  %v2574 = vadd.f32 %v2154, %v2382
  %v2575 = vadd.f32 %v2155, %v2383
  %v2576 = vadd.f32 %v2156, %v2384
  %v2577 = vadd.f32 %v2157, %v2385
  %v2578 = vadd.f32 %v2158, %v2386
  %v2579 = vadd.f32 %v2159, %v2387
  %v2580 = vadd.f32 %v2160, %v2388
  %v2581 = vadd.f32 %v2161, %v2389
  %v2582 = vadd.f32 %v2162, %v2390
  %v2583 = vadd.f32 %v2163, %v2391
  %v2584 = vadd.f32 %v2164, %v2392
  %v2585 = vadd.f32 %v2165, %v2393
  %v2586 = vadd.f32 %v2166, %v2394
  %v2587 = vadd.f32 %v2167, %v2395
  %v2588 = vadd.f32 %v2168, %v2396
  %v2589 = vadd.f32 %v2169, %v2397
  %v2590 = vadd.f32 %v2170, %v2398
  %v2591 = vadd.f32 %v2171, %v2399
  %v2592 = vadd.f32 %v2172, %v2400
  %v2593 = vadd.f32 %v2173, %v2401
  %v2594 = vadd.f32 %v2174, %v2402
  %v2595 = vadd.f32 %v2175, %v2403
  %v2596 = vadd.f32 %v2176, %v2404
  %v2597 = vadd.f32 %v2177, %v2405
  %v2598 = vadd.f32 %v2178, %v2406
  %v2599 = vadd.f32 %v2179, %v2407
  %v2600 = vadd.f32 %v2180, %v2408
  %v2601 = vadd.f32 %v2181, %v2409
  %v2602 = vadd.f32 %v2182, %v2410
  %v2603 = vadd.f32 %v2183, %v2411
  %v2604 = vadd.f32 %v2184, %v2412
  %v2605 = vadd.f32 %v2185, %v2413
  %v2606 = vadd.f32 %v2186, %v2414
  %v2607 = vadd.f32 %v2187, %v2415
  %v2608 = vadd.f32 %v2188, %v2416
  %v2609 = vadd.f32 %v2189, %v2417
  %v2610 = vadd.f32 %v2190, %v2418
  %v2611 = vadd.f32 %v2191, %v2419
  %v2612 = vadd.f32 %v2192, %v2420
  %v2613 = vadd.f32 %v2193, %v2421
  %v2614 = vadd.f32 %v2194, %v2422
  %v2615 = vadd.f32 %v2195, %v2423
  %v2616 = vadd.f32 %v2196, %v2424
  %v2617 = vadd.f32 %v2197, %v2425
  %v2618 = vadd.f32 %v2198, %v2426
  %v2619 = vadd.f32 %v2199, %v2427
  %v2620 = vadd.f32 %v2200, %v2428
  %v2621 = vadd.f32 %v2201, %v2429
  %v2622 = vadd.f32 %v2202, %v2430
  %v2623 = vadd.f32 %v2203, %v2431
  %v2624 = vadd.f32 %v2204, %v2432
  %v2625 = vadd.f32 %v2205, %v2433
  %v2626 = vadd.f32 %v2206, %v2434
  %v2627 = vadd.f32 %v2207, %v2435
  %v2628 = vadd.f32 %v2208, %v2436
  %v2629 = vadd.f32 %v2209, %v2437
  %v2630 = vadd.f32 %v2210, %v2438
  %v2631 = vadd.f32 %v2211, %v2439
  %v2632 = vadd.f32 %v2212, %v2440
  %v2633 = vadd.f32 %v2213, %v2441
  %v2634 = vadd.f32 %v2214, %v2442
  %v2635 = vadd.f32 %v2215, %v2443
  %v2636 = vadd.f32 %v2216, %v2444
  %v2637 = vadd.f32 %v2217, %v2445
  %v2638 = vadd.f32 %v2218, %v2446
  %v2639 = vadd.f32 %v2219, %v2447
  %v2640 = vadd.f32 %v2220, %v2448
  %v2641 = vadd.f32 %v2221, %v2449
  %v2642 = vadd.f32 %v2222, %v2450
  %v2643 = vadd.f32 %v2223, %v2451
  %v2644 = vadd.f32 %v2224, %v2452
  %v2645 = vadd.f32 %v2225, %v2453
  %v2646 = vadd.f32 %v2226, %v2454
  %v2647 = vadd.f32 %v2227, %v2455
  %v2648 = vadd.f32 %v2228, %v2456
  %v2649 = vadd.f32 %v2229, %v2457
  %v2650 = vadd.f32 %v2230, %v2458
  %v2651 = vadd.f32 %v2231, %v2459
  %v2652 = vadd.f32 %v2232, %v2460
  %v2653 = vadd.f32 %v2233, %v2461
  %v2654 = vadd.f32 %v2234, %v2462
  %v2655 = vadd.f32 %v2235, %v2463
  %v2656 = vadd.f32 %v2236, %v2464
  %v2657 = vadd.f32 %v2237, %v2465
  %v2658 = vadd.f32 %v2238, %v2466
  %v2659 = vadd.f32 %v2239, %v2467
  %v2660 = vadd.f32 %v2240, %v2468
  %v2661 = vadd.f32 %v2241, %v2469
  %v2662 = vadd.f32 %v2242, %v2470
  %v2663 = vadd.f32 %v2243, %v2471
  %v2664 = vadd.f32 %v2244, %v2472
  %v2665 = vadd.f32 %v2245, %v2473
  %v2666 = vadd.f32 %v2246, %v2474
  %v2667 = vadd.f32 %v2247, %v2475
  %v2668 = vadd.f32 %v2248, %v2476
  %v2669 = vadd.f32 %v2249, %v2477
  %v2670 = vadd.f32 %v2250, %v2478
  %v2671 = vadd.f32 %v2251, %v2479
  %v2672 = vadd.f32 %v2252, %v2480
  %v2673 = vadd.f32 %v2253, %v2481
  %v2674 = vadd.f32 %v2254, %v2482
  %v2675 = vadd.f32 %v2255, %v2483
  %v2676 = vadd.f32 %v2256, %v2484
  %v2677 = vadd.f32 %v2257, %v2485
  %v2678 = vadd.f32 %v2258, %v2486
  %v2679 = vadd.f32 %v2259, %v2487
  %v2680 = vadd.f32 %v2260, %v2488
  %v2681 = vadd.f32 %v2261, %v2489
  %v2682 = vadd.f32 %v2262, %v2490
  %v2683 = vadd.f32 %v2263, %v2491
  %v2684 = vadd.f32 %v2264, %v2492
  %v2685 = vadd.f32 %v2265, %v2493
  %v2686 = vadd.f32 %v2266, %v2494
  %v2687 = vadd.f32 %v2267, %v2495
  %v2688 = vadd.f32 %v2268, %v2496
  %v2689 = vlaneseq
  %v2690 = vshrl.u32 %v2689, 7
  %v2691 = vsub.s32 2, %v2690
  %v2692 = vrot.slane %v1845, %v2691
  %v2693 = vlaneseq
  %v2694 = vshrl.u32 %v2693, 7
  %v2695 = vsub.s32 6, %v2694
  %v2696 = vrot.slane %v1845, %v2695
  %v2697 = vlaneseq
  %v2698 = vshrl.u32 %v2697, 7
  %v2699 = vsub.s32 2, %v2698
  %v2700 = vrot.slane %v1846, %v2699
  %v2701 = vlaneseq
  %v2702 = vshrl.u32 %v2701, 7
  %v2703 = vsub.s32 6, %v2702
  %v2704 = vrot.slane %v1846, %v2703
  %v2709 = vlaneseq
  %v2710 = vshrl.u32 %v2709, 7
  %v2711 = vsub.s32 2, %v2710
  %v2712 = vrot.slane %v2692, %v2711
  %v2713 = vlaneseq
  %v2714 = vshrl.u32 %v2713, 7
  %v2715 = vsub.s32 2, %v2714
  %v2716 = vrot.slane %v2696, %v2715
  %v2717 = vlaneseq
  %v2718 = vshrl.u32 %v2717, 7
  %v2719 = vsub.s32 2, %v2718
  %v2720 = vrot.slane %v2700, %v2719
  %v2721 = vlaneseq
  %v2722 = vshrl.u32 %v2721, 7
  %v2723 = vsub.s32 2, %v2722
  %v2724 = vrot.slane %v2704, %v2723
  %v2725 = vmul.f32 %v502, %v2712
  %v2726 = vmul.f32 %v502, %v2716
  %v2727 = vmul.f32 %v502, %v2720
  %v2728 = vmul.f32 %v502, %v2724
  %v2729 = vmul.f32 %v506, %v2712
  %v2730 = vmul.f32 %v506, %v2716
  %v2731 = vmul.f32 %v506, %v2720
  %v2732 = vmul.f32 %v506, %v2724
  %v2733 = vmul.f32 %v510, %v2712
  %v2734 = vmul.f32 %v510, %v2716
  %v2735 = vmul.f32 %v510, %v2720
  %v2736 = vmul.f32 %v510, %v2724
  %v2737 = vmul.f32 %v514, %v2712
  %v2738 = vmul.f32 %v514, %v2716
  %v2739 = vmul.f32 %v514, %v2720
  %v2740 = vmul.f32 %v514, %v2724
  %v2741 = vmul.f32 %v518, %v2712
  %v2742 = vmul.f32 %v518, %v2716
  %v2743 = vmul.f32 %v518, %v2720
  %v2744 = vmul.f32 %v518, %v2724
  %v2745 = vmul.f32 %v522, %v2712
  %v2746 = vmul.f32 %v522, %v2716
  %v2747 = vmul.f32 %v522, %v2720
  %v2748 = vmul.f32 %v522, %v2724
  %v2749 = vmul.f32 %v526, %v2712
  %v2750 = vmul.f32 %v526, %v2716
  %v2751 = vmul.f32 %v526, %v2720
  %v2752 = vmul.f32 %v526, %v2724
  %v2753 = vmul.f32 %v530, %v2712
  %v2754 = vmul.f32 %v530, %v2716
  %v2755 = vmul.f32 %v530, %v2720
  %v2756 = vmul.f32 %v530, %v2724
  %v2757 = vmul.f32 %v534, %v2712
  %v2758 = vmul.f32 %v534, %v2716
  %v2759 = vmul.f32 %v534, %v2720
  %v2760 = vmul.f32 %v534, %v2724
  %v2761 = vmul.f32 %v538, %v2712
  %v2762 = vmul.f32 %v538, %v2716
  %v2763 = vmul.f32 %v538, %v2720
  %v2764 = vmul.f32 %v538, %v2724
  %v2765 = vmul.f32 %v542, %v2712
  %v2766 = vmul.f32 %v542, %v2716
  %v2767 = vmul.f32 %v542, %v2720
  %v2768 = vmul.f32 %v542, %v2724
  %v2769 = vmul.f32 %v546, %v2712
  %v2770 = vmul.f32 %v546, %v2716
  %v2771 = vmul.f32 %v546, %v2720
  %v2772 = vmul.f32 %v546, %v2724
  %v2773 = vmul.f32 %v550, %v2712
  %v2774 = vmul.f32 %v550, %v2716
  %v2775 = vmul.f32 %v550, %v2720
  %v2776 = vmul.f32 %v550, %v2724
  %v2777 = vmul.f32 %v554, %v2712
  %v2778 = vmul.f32 %v554, %v2716
  %v2779 = vmul.f32 %v554, %v2720
  %v2780 = vmul.f32 %v554, %v2724
  %v2781 = vmul.f32 %v558, %v2712
  %v2782 = vmul.f32 %v558, %v2716
  %v2783 = vmul.f32 %v558, %v2720
  %v2784 = vmul.f32 %v558, %v2724
  %v2785 = vmul.f32 %v562, %v2712
  %v2786 = vmul.f32 %v562, %v2716
  %v2787 = vmul.f32 %v562, %v2720
  %v2788 = vmul.f32 %v562, %v2724
  %v2789 = vmul.f32 %v566, %v2712
  %v2790 = vmul.f32 %v566, %v2716
  %v2791 = vmul.f32 %v566, %v2720
  %v2792 = vmul.f32 %v566, %v2724
  %v2793 = vmul.f32 %v570, %v2712
  %v2794 = vmul.f32 %v570, %v2716
  %v2795 = vmul.f32 %v570, %v2720
  %v2796 = vmul.f32 %v570, %v2724
  %v2797 = vmul.f32 %v574, %v2712
  %v2798 = vmul.f32 %v574, %v2716
  %v2799 = vmul.f32 %v574, %v2720
  %v2800 = vmul.f32 %v574, %v2724
  %v2801 = vmul.f32 %v578, %v2712
  %v2802 = vmul.f32 %v578, %v2716
  %v2803 = vmul.f32 %v578, %v2720
  %v2804 = vmul.f32 %v578, %v2724
  %v2805 = vmul.f32 %v582, %v2712
  %v2806 = vmul.f32 %v582, %v2716
  %v2807 = vmul.f32 %v582, %v2720
  %v2808 = vmul.f32 %v582, %v2724
  %v2809 = vmul.f32 %v586, %v2712
  %v2810 = vmul.f32 %v586, %v2716
  %v2811 = vmul.f32 %v586, %v2720
  %v2812 = vmul.f32 %v586, %v2724
  %v2813 = vmul.f32 %v590, %v2712
  %v2814 = vmul.f32 %v590, %v2716
  %v2815 = vmul.f32 %v590, %v2720
  %v2816 = vmul.f32 %v590, %v2724
  %v2817 = vmul.f32 %v594, %v2712
  %v2818 = vmul.f32 %v594, %v2716
  %v2819 = vmul.f32 %v594, %v2720
  %v2820 = vmul.f32 %v594, %v2724
  %v2821 = vmul.f32 %v598, %v2712
  %v2822 = vmul.f32 %v598, %v2716
  %v2823 = vmul.f32 %v598, %v2720
  %v2824 = vmul.f32 %v598, %v2724
  %v2825 = vmul.f32 %v602, %v2712
  %v2826 = vmul.f32 %v602, %v2716
  %v2827 = vmul.f32 %v602, %v2720
  %v2828 = vmul.f32 %v602, %v2724
  %v2829 = vmul.f32 %v606, %v2712
  %v2830 = vmul.f32 %v606, %v2716
  %v2831 = vmul.f32 %v606, %v2720
  %v2832 = vmul.f32 %v606, %v2724
  %v2833 = vmul.f32 %v610, %v2712
  %v2834 = vmul.f32 %v610, %v2716
  %v2835 = vmul.f32 %v610, %v2720
  %v2836 = vmul.f32 %v610, %v2724
  %v2837 = vmul.f32 %v614, %v2712
  %v2838 = vmul.f32 %v614, %v2716
  %v2839 = vmul.f32 %v614, %v2720
  %v2840 = vmul.f32 %v614, %v2724
  %v2841 = vmul.f32 %v618, %v2712
  %v2842 = vmul.f32 %v618, %v2716
  %v2843 = vmul.f32 %v618, %v2720
  %v2844 = vmul.f32 %v618, %v2724
  %v2845 = vmul.f32 %v622, %v2712
  %v2846 = vmul.f32 %v622, %v2716
  %v2847 = vmul.f32 %v622, %v2720
  %v2848 = vmul.f32 %v622, %v2724
  %v2849 = vmul.f32 %v626, %v2712
  %v2850 = vmul.f32 %v626, %v2716
  %v2851 = vmul.f32 %v626, %v2720
  %v2852 = vmul.f32 %v626, %v2724
  %v2853 = vmul.f32 %v630, %v2712
  %v2854 = vmul.f32 %v630, %v2716
  %v2855 = vmul.f32 %v630, %v2720
  %v2856 = vmul.f32 %v630, %v2724
  %v2857 = vmul.f32 %v634, %v2712
  %v2858 = vmul.f32 %v634, %v2716
  %v2859 = vmul.f32 %v634, %v2720
  %v2860 = vmul.f32 %v634, %v2724
  %v2861 = vmul.f32 %v638, %v2712
  %v2862 = vmul.f32 %v638, %v2716
  %v2863 = vmul.f32 %v638, %v2720
  %v2864 = vmul.f32 %v638, %v2724
  %v2865 = vmul.f32 %v642, %v2712
  %v2866 = vmul.f32 %v642, %v2716
  %v2867 = vmul.f32 %v642, %v2720
  %v2868 = vmul.f32 %v642, %v2724
  %v2869 = vmul.f32 %v646, %v2712
  %v2870 = vmul.f32 %v646, %v2716
  %v2871 = vmul.f32 %v646, %v2720
  %v2872 = vmul.f32 %v646, %v2724
  %v2873 = vmul.f32 %v650, %v2712
  %v2874 = vmul.f32 %v650, %v2716
  %v2875 = vmul.f32 %v650, %v2720
  %v2876 = vmul.f32 %v650, %v2724
  %v2877 = vmul.f32 %v654, %v2712
  %v2878 = vmul.f32 %v654, %v2716
  %v2879 = vmul.f32 %v654, %v2720
  %v2880 = vmul.f32 %v654, %v2724
  %v2881 = vmul.f32 %v658, %v2712
  %v2882 = vmul.f32 %v658, %v2716
  %v2883 = vmul.f32 %v658, %v2720
  %v2884 = vmul.f32 %v658, %v2724
  %v2885 = vmul.f32 %v662, %v2712
  %v2886 = vmul.f32 %v662, %v2716
  %v2887 = vmul.f32 %v662, %v2720
  %v2888 = vmul.f32 %v662, %v2724
  %v2889 = vmul.f32 %v666, %v2712
  %v2890 = vmul.f32 %v666, %v2716
  %v2891 = vmul.f32 %v666, %v2720
  %v2892 = vmul.f32 %v666, %v2724
  %v2893 = vmul.f32 %v670, %v2712
  %v2894 = vmul.f32 %v670, %v2716
  %v2895 = vmul.f32 %v670, %v2720
  %v2896 = vmul.f32 %v670, %v2724
  %v2897 = vmul.f32 %v674, %v2712
  %v2898 = vmul.f32 %v674, %v2716
  %v2899 = vmul.f32 %v674, %v2720
  %v2900 = vmul.f32 %v674, %v2724
  %v2901 = vmul.f32 %v678, %v2712
  %v2902 = vmul.f32 %v678, %v2716
  %v2903 = vmul.f32 %v678, %v2720
  %v2904 = vmul.f32 %v678, %v2724
  %v2905 = vmul.f32 %v682, %v2712
  %v2906 = vmul.f32 %v682, %v2716
  %v2907 = vmul.f32 %v682, %v2720
  %v2908 = vmul.f32 %v682, %v2724
  %v2909 = vmul.f32 %v686, %v2712
  %v2910 = vmul.f32 %v686, %v2716
  %v2911 = vmul.f32 %v686, %v2720
  %v2912 = vmul.f32 %v686, %v2724
  %v2913 = vmul.f32 %v690, %v2712
  %v2914 = vmul.f32 %v690, %v2716
  %v2915 = vmul.f32 %v690, %v2720
  %v2916 = vmul.f32 %v690, %v2724
  %v2917 = vadd.f32 %v2497, %v2725
  %v2918 = vadd.f32 %v2498, %v2726
  %v2919 = vadd.f32 %v2499, %v2727
  %v2920 = vadd.f32 %v2500, %v2728
  %v2921 = vadd.f32 %v2501, %v2729
  %v2922 = vadd.f32 %v2502, %v2730
  %v2923 = vadd.f32 %v2503, %v2731
  %v2924 = vadd.f32 %v2504, %v2732
  %v2925 = vadd.f32 %v2505, %v2733
  %v2926 = vadd.f32 %v2506, %v2734
  %v2927 = vadd.f32 %v2507, %v2735
  %v2928 = vadd.f32 %v2508, %v2736
  %v2929 = vadd.f32 %v2509, %v2737
  %v2930 = vadd.f32 %v2510, %v2738
  %v2931 = vadd.f32 %v2511, %v2739
  %v2932 = vadd.f32 %v2512, %v2740
  %v2933 = vadd.f32 %v2513, %v2741
  %v2934 = vadd.f32 %v2514, %v2742
  %v2935 = vadd.f32 %v2515, %v2743
  %v2936 = vadd.f32 %v2516, %v2744
  %v2937 = vadd.f32 %v2517, %v2745
  %v2938 = vadd.f32 %v2518, %v2746
  %v2939 = vadd.f32 %v2519, %v2747
  %v2940 = vadd.f32 %v2520, %v2748
  %v2941 = vadd.f32 %v2521, %v2749
  %v2942 = vadd.f32 %v2522, %v2750
  %v2943 = vadd.f32 %v2523, %v2751
  %v2944 = vadd.f32 %v2524, %v2752
  %v2945 = vadd.f32 %v2525, %v2753
  %v2946 = vadd.f32 %v2526, %v2754
  %v2947 = vadd.f32 %v2527, %v2755
  %v2948 = vadd.f32 %v2528, %v2756
  %v2949 = vadd.f32 %v2529, %v2757
  %v2950 = vadd.f32 %v2530, %v2758
  %v2951 = vadd.f32 %v2531, %v2759
  %v2952 = vadd.f32 %v2532, %v2760
  %v2953 = vadd.f32 %v2533, %v2761
  %v2954 = vadd.f32 %v2534, %v2762
  %v2955 = vadd.f32 %v2535, %v2763
  %v2956 = vadd.f32 %v2536, %v2764
  %v2957 = vadd.f32 %v2537, %v2765
  %v2958 = vadd.f32 %v2538, %v2766
  %v2959 = vadd.f32 %v2539, %v2767
  %v2960 = vadd.f32 %v2540, %v2768
  %v2961 = vadd.f32 %v2541, %v2769
  %v2962 = vadd.f32 %v2542, %v2770
  %v2963 = vadd.f32 %v2543, %v2771
  %v2964 = vadd.f32 %v2544, %v2772
  %v2965 = vadd.f32 %v2545, %v2773
  %v2966 = vadd.f32 %v2546, %v2774
  %v2967 = vadd.f32 %v2547, %v2775
  %v2968 = vadd.f32 %v2548, %v2776
  %v2969 = vadd.f32 %v2549, %v2777
  %v2970 = vadd.f32 %v2550, %v2778
  %v2971 = vadd.f32 %v2551, %v2779
  %v2972 = vadd.f32 %v2552, %v2780
  %v2973 = vadd.f32 %v2553, %v2781
  %v2974 = vadd.f32 %v2554, %v2782
  %v2975 = vadd.f32 %v2555, %v2783
  %v2976 = vadd.f32 %v2556, %v2784
  %v2977 = vadd.f32 %v2557, %v2785
  %v2978 = vadd.f32 %v2558, %v2786
  %v2979 = vadd.f32 %v2559, %v2787
  %v2980 = vadd.f32 %v2560, %v2788
  %v2981 = vadd.f32 %v2561, %v2789
  %v2982 = vadd.f32 %v2562, %v2790
  %v2983 = vadd.f32 %v2563, %v2791
  %v2984 = vadd.f32 %v2564, %v2792
  %v2985 = vadd.f32 %v2565, %v2793
  %v2986 = vadd.f32 %v2566, %v2794
  %v2987 = vadd.f32 %v2567, %v2795
  %v2988 = vadd.f32 %v2568, %v2796
  %v2989 = vadd.f32 %v2569, %v2797
  %v2990 = vadd.f32 %v2570, %v2798
  %v2991 = vadd.f32 %v2571, %v2799
  %v2992 = vadd.f32 %v2572, %v2800
  %v2993 = vadd.f32 %v2573, %v2801
  %v2994 = vadd.f32 %v2574, %v2802
  %v2995 = vadd.f32 %v2575, %v2803
  %v2996 = vadd.f32 %v2576, %v2804
  %v2997 = vadd.f32 %v2577, %v2805
  %v2998 = vadd.f32 %v2578, %v2806
  %v2999 = vadd.f32 %v2579, %v2807
  %v3000 = vadd.f32 %v2580, %v2808
  %v3001 = vadd.f32 %v2581, %v2809
  %v3002 = vadd.f32 %v2582, %v2810
  %v3003 = vadd.f32 %v2583, %v2811
  %v3004 = vadd.f32 %v2584, %v2812
  %v3005 = vadd.f32 %v2585, %v2813
  %v3006 = vadd.f32 %v2586, %v2814
  %v3007 = vadd.f32 %v2587, %v2815
  %v3008 = vadd.f32 %v2588, %v2816
  %v3009 = vadd.f32 %v2589, %v2817
  %v3010 = vadd.f32 %v2590, %v2818
  %v3011 = vadd.f32 %v2591, %v2819
  %v3012 = vadd.f32 %v2592, %v2820
  %v3013 = vadd.f32 %v2593, %v2821
  %v3014 = vadd.f32 %v2594, %v2822
  %v3015 = vadd.f32 %v2595, %v2823
  %v3016 = vadd.f32 %v2596, %v2824
  %v3017 = vadd.f32 %v2597, %v2825
  %v3018 = vadd.f32 %v2598, %v2826
  %v3019 = vadd.f32 %v2599, %v2827
  %v3020 = vadd.f32 %v2600, %v2828
  %v3021 = vadd.f32 %v2601, %v2829
  %v3022 = vadd.f32 %v2602, %v2830
  %v3023 = vadd.f32 %v2603, %v2831
  %v3024 = vadd.f32 %v2604, %v2832
  %v3025 = vadd.f32 %v2605, %v2833
  %v3026 = vadd.f32 %v2606, %v2834
  %v3027 = vadd.f32 %v2607, %v2835
  %v3028 = vadd.f32 %v2608, %v2836
  %v3029 = vadd.f32 %v2609, %v2837
  %v3030 = vadd.f32 %v2610, %v2838
  %v3031 = vadd.f32 %v2611, %v2839
  %v3032 = vadd.f32 %v2612, %v2840
  %v3033 = vadd.f32 %v2613, %v2841
  %v3034 = vadd.f32 %v2614, %v2842
  %v3035 = vadd.f32 %v2615, %v2843
  %v3036 = vadd.f32 %v2616, %v2844
  %v3037 = vadd.f32 %v2617, %v2845
  %v3038 = vadd.f32 %v2618, %v2846
  %v3039 = vadd.f32 %v2619, %v2847
  %v3040 = vadd.f32 %v2620, %v2848
  %v3041 = vadd.f32 %v2621, %v2849
  %v3042 = vadd.f32 %v2622, %v2850
  %v3043 = vadd.f32 %v2623, %v2851
  %v3044 = vadd.f32 %v2624, %v2852
  %v3045 = vadd.f32 %v2625, %v2853
  %v3046 = vadd.f32 %v2626, %v2854
  %v3047 = vadd.f32 %v2627, %v2855
  %v3048 = vadd.f32 %v2628, %v2856
  %v3049 = vadd.f32 %v2629, %v2857
  %v3050 = vadd.f32 %v2630, %v2858
  %v3051 = vadd.f32 %v2631, %v2859
  %v3052 = vadd.f32 %v2632, %v2860
  %v3053 = vadd.f32 %v2633, %v2861
  %v3054 = vadd.f32 %v2634, %v2862
  %v3055 = vadd.f32 %v2635, %v2863
  %v3056 = vadd.f32 %v2636, %v2864
  %v3057 = vadd.f32 %v2637, %v2865
  %v3058 = vadd.f32 %v2638, %v2866
  %v3059 = vadd.f32 %v2639, %v2867
  %v3060 = vadd.f32 %v2640, %v2868
  %v3061 = vadd.f32 %v2641, %v2869
  %v3062 = vadd.f32 %v2642, %v2870
  %v3063 = vadd.f32 %v2643, %v2871
  %v3064 = vadd.f32 %v2644, %v2872
  %v3065 = vadd.f32 %v2645, %v2873
  %v3066 = vadd.f32 %v2646, %v2874
  %v3067 = vadd.f32 %v2647, %v2875
  %v3068 = vadd.f32 %v2648, %v2876
  %v3069 = vadd.f32 %v2649, %v2877
  %v3070 = vadd.f32 %v2650, %v2878
  %v3071 = vadd.f32 %v2651, %v2879
  %v3072 = vadd.f32 %v2652, %v2880
  %v3073 = vadd.f32 %v2653, %v2881
  %v3074 = vadd.f32 %v2654, %v2882
  %v3075 = vadd.f32 %v2655, %v2883
  %v3076 = vadd.f32 %v2656, %v2884
  %v3077 = vadd.f32 %v2657, %v2885
  %v3078 = vadd.f32 %v2658, %v2886
  %v3079 = vadd.f32 %v2659, %v2887
  %v3080 = vadd.f32 %v2660, %v2888
  %v3081 = vadd.f32 %v2661, %v2889
  %v3082 = vadd.f32 %v2662, %v2890
  %v3083 = vadd.f32 %v2663, %v2891
  %v3084 = vadd.f32 %v2664, %v2892
  %v3085 = vadd.f32 %v2665, %v2893
  %v3086 = vadd.f32 %v2666, %v2894
  %v3087 = vadd.f32 %v2667, %v2895
  %v3088 = vadd.f32 %v2668, %v2896
  %v3089 = vadd.f32 %v2669, %v2897
  %v3090 = vadd.f32 %v2670, %v2898
  %v3091 = vadd.f32 %v2671, %v2899
  %v3092 = vadd.f32 %v2672, %v2900
  %v3093 = vadd.f32 %v2673, %v2901
  %v3094 = vadd.f32 %v2674, %v2902
  %v3095 = vadd.f32 %v2675, %v2903
  %v3096 = vadd.f32 %v2676, %v2904
  %v3097 = vadd.f32 %v2677, %v2905
  %v3098 = vadd.f32 %v2678, %v2906
  %v3099 = vadd.f32 %v2679, %v2907
  %v3100 = vadd.f32 %v2680, %v2908
  %v3101 = vadd.f32 %v2681, %v2909
  %v3102 = vadd.f32 %v2682, %v2910
  %v3103 = vadd.f32 %v2683, %v2911
  %v3104 = vadd.f32 %v2684, %v2912
  %v3105 = vadd.f32 %v2685, %v2913
  %v3106 = vadd.f32 %v2686, %v2914
  %v3107 = vadd.f32 %v2687, %v2915
  %v3108 = vadd.f32 %v2688, %v2916
  %v3109 = vlaneseq
  %v3110 = vshrl.u32 %v3109, 7
  %v3111 = vsub.s32 3, %v3110
  %v3112 = vrot.slane %v1845, %v3111
  %v3113 = vlaneseq
  %v3114 = vshrl.u32 %v3113, 7
  %v3115 = vsub.s32 7, %v3114
  %v3116 = vrot.slane %v1845, %v3115
  %v3117 = vlaneseq
  %v3118 = vshrl.u32 %v3117, 7
  %v3119 = vsub.s32 3, %v3118
  %v3120 = vrot.slane %v1846, %v3119
  %v3121 = vlaneseq
  %v3122 = vshrl.u32 %v3121, 7
  %v3123 = vsub.s32 7, %v3122
  %v3124 = vrot.slane %v1846, %v3123
  %v3129 = vlaneseq
  %v3130 = vshrl.u32 %v3129, 7
  %v3131 = vsub.s32 3, %v3130
  %v3132 = vrot.slane %v3112, %v3131
  %v3133 = vlaneseq
  %v3134 = vshrl.u32 %v3133, 7
  %v3135 = vsub.s32 3, %v3134
  %v3136 = vrot.slane %v3116, %v3135
  %v3137 = vlaneseq
  %v3138 = vshrl.u32 %v3137, 7
  %v3139 = vsub.s32 3, %v3138
  %v3140 = vrot.slane %v3120, %v3139
  %v3141 = vlaneseq
  %v3142 = vshrl.u32 %v3141, 7
  %v3143 = vsub.s32 3, %v3142
  %v3144 = vrot.slane %v3124, %v3143
  %v3145 = vmul.f32 %v694, %v3132
  %v3146 = vmul.f32 %v694, %v3136
  %v3147 = vmul.f32 %v694, %v3140
  %v3148 = vmul.f32 %v694, %v3144
  %v3149 = vmul.f32 %v698, %v3132
  %v3150 = vmul.f32 %v698, %v3136
  %v3151 = vmul.f32 %v698, %v3140
  %v3152 = vmul.f32 %v698, %v3144
  %v3153 = vmul.f32 %v702, %v3132
  %v3154 = vmul.f32 %v702, %v3136
  %v3155 = vmul.f32 %v702, %v3140
  %v3156 = vmul.f32 %v702, %v3144
  %v3157 = vmul.f32 %v706, %v3132
  %v3158 = vmul.f32 %v706, %v3136
  %v3159 = vmul.f32 %v706, %v3140
  %v3160 = vmul.f32 %v706, %v3144
  %v3161 = vmul.f32 %v710, %v3132
  %v3162 = vmul.f32 %v710, %v3136
  %v3163 = vmul.f32 %v710, %v3140
  %v3164 = vmul.f32 %v710, %v3144
  %v3165 = vmul.f32 %v714, %v3132
  %v3166 = vmul.f32 %v714, %v3136
  %v3167 = vmul.f32 %v714, %v3140
  %v3168 = vmul.f32 %v714, %v3144
  %v3169 = vmul.f32 %v718, %v3132
  %v3170 = vmul.f32 %v718, %v3136
  %v3171 = vmul.f32 %v718, %v3140
  %v3172 = vmul.f32 %v718, %v3144
  %v3173 = vmul.f32 %v722, %v3132
  %v3174 = vmul.f32 %v722, %v3136
  %v3175 = vmul.f32 %v722, %v3140
  %v3176 = vmul.f32 %v722, %v3144
  %v3177 = vmul.f32 %v726, %v3132
  %v3178 = vmul.f32 %v726, %v3136
  %v3179 = vmul.f32 %v726, %v3140
  %v3180 = vmul.f32 %v726, %v3144
  %v3181 = vmul.f32 %v730, %v3132
  %v3182 = vmul.f32 %v730, %v3136
  %v3183 = vmul.f32 %v730, %v3140
  %v3184 = vmul.f32 %v730, %v3144
  %v3185 = vmul.f32 %v734, %v3132
  %v3186 = vmul.f32 %v734, %v3136
  %v3187 = vmul.f32 %v734, %v3140
  %v3188 = vmul.f32 %v734, %v3144
  %v3189 = vmul.f32 %v738, %v3132
  %v3190 = vmul.f32 %v738, %v3136
  %v3191 = vmul.f32 %v738, %v3140
  %v3192 = vmul.f32 %v738, %v3144
  %v3193 = vmul.f32 %v742, %v3132
  %v3194 = vmul.f32 %v742, %v3136
  %v3195 = vmul.f32 %v742, %v3140
  %v3196 = vmul.f32 %v742, %v3144
  %v3197 = vmul.f32 %v746, %v3132
  %v3198 = vmul.f32 %v746, %v3136
  %v3199 = vmul.f32 %v746, %v3140
  %v3200 = vmul.f32 %v746, %v3144
  %v3201 = vmul.f32 %v750, %v3132
  %v3202 = vmul.f32 %v750, %v3136
  %v3203 = vmul.f32 %v750, %v3140
  %v3204 = vmul.f32 %v750, %v3144
  %v3205 = vmul.f32 %v754, %v3132
  %v3206 = vmul.f32 %v754, %v3136
  %v3207 = vmul.f32 %v754, %v3140
  %v3208 = vmul.f32 %v754, %v3144
  %v3209 = vmul.f32 %v758, %v3132
  %v3210 = vmul.f32 %v758, %v3136
  %v3211 = vmul.f32 %v758, %v3140
  %v3212 = vmul.f32 %v758, %v3144
  %v3213 = vmul.f32 %v762, %v3132
  %v3214 = vmul.f32 %v762, %v3136
  %v3215 = vmul.f32 %v762, %v3140
  %v3216 = vmul.f32 %v762, %v3144
  %v3217 = vmul.f32 %v766, %v3132
  %v3218 = vmul.f32 %v766, %v3136
  %v3219 = vmul.f32 %v766, %v3140
  %v3220 = vmul.f32 %v766, %v3144
  %v3221 = vmul.f32 %v770, %v3132
  %v3222 = vmul.f32 %v770, %v3136
  %v3223 = vmul.f32 %v770, %v3140
  %v3224 = vmul.f32 %v770, %v3144
  %v3225 = vmul.f32 %v774, %v3132
  %v3226 = vmul.f32 %v774, %v3136
  %v3227 = vmul.f32 %v774, %v3140
  %v3228 = vmul.f32 %v774, %v3144
  %v3229 = vmul.f32 %v778, %v3132
  %v3230 = vmul.f32 %v778, %v3136
  %v3231 = vmul.f32 %v778, %v3140
  %v3232 = vmul.f32 %v778, %v3144
  %v3233 = vmul.f32 %v782, %v3132
  %v3234 = vmul.f32 %v782, %v3136
  %v3235 = vmul.f32 %v782, %v3140
  %v3236 = vmul.f32 %v782, %v3144
  %v3237 = vmul.f32 %v786, %v3132
  %v3238 = vmul.f32 %v786, %v3136
  %v3239 = vmul.f32 %v786, %v3140
  %v3240 = vmul.f32 %v786, %v3144
  %v3241 = vmul.f32 %v790, %v3132
  %v3242 = vmul.f32 %v790, %v3136
  %v3243 = vmul.f32 %v790, %v3140
  %v3244 = vmul.f32 %v790, %v3144
  %v3245 = vmul.f32 %v794, %v3132
  %v3246 = vmul.f32 %v794, %v3136
  %v3247 = vmul.f32 %v794, %v3140
  %v3248 = vmul.f32 %v794, %v3144
  %v3249 = vmul.f32 %v798, %v3132
  %v3250 = vmul.f32 %v798, %v3136
  %v3251 = vmul.f32 %v798, %v3140
  %v3252 = vmul.f32 %v798, %v3144
  %v3253 = vmul.f32 %v802, %v3132
  %v3254 = vmul.f32 %v802, %v3136
  %v3255 = vmul.f32 %v802, %v3140
  %v3256 = vmul.f32 %v802, %v3144
  %v3257 = vmul.f32 %v806, %v3132
  %v3258 = vmul.f32 %v806, %v3136
  %v3259 = vmul.f32 %v806, %v3140
  %v3260 = vmul.f32 %v806, %v3144
  %v3261 = vmul.f32 %v810, %v3132
  %v3262 = vmul.f32 %v810, %v3136
  %v3263 = vmul.f32 %v810, %v3140
  %v3264 = vmul.f32 %v810, %v3144
  %v3265 = vmul.f32 %v814, %v3132
  %v3266 = vmul.f32 %v814, %v3136
  %v3267 = vmul.f32 %v814, %v3140
  %v3268 = vmul.f32 %v814, %v3144
  %v3269 = vmul.f32 %v818, %v3132
  %v3270 = vmul.f32 %v818, %v3136
  %v3271 = vmul.f32 %v818, %v3140
  %v3272 = vmul.f32 %v818, %v3144
  %v3273 = vmul.f32 %v822, %v3132
  %v3274 = vmul.f32 %v822, %v3136
  %v3275 = vmul.f32 %v822, %v3140
  %v3276 = vmul.f32 %v822, %v3144
  %v3277 = vmul.f32 %v826, %v3132
  %v3278 = vmul.f32 %v826, %v3136
  %v3279 = vmul.f32 %v826, %v3140
  %v3280 = vmul.f32 %v826, %v3144
  %v3281 = vmul.f32 %v830, %v3132
  %v3282 = vmul.f32 %v830, %v3136
  %v3283 = vmul.f32 %v830, %v3140
  %v3284 = vmul.f32 %v830, %v3144
  %v3285 = vmul.f32 %v834, %v3132
  %v3286 = vmul.f32 %v834, %v3136
  %v3287 = vmul.f32 %v834, %v3140
  %v3288 = vmul.f32 %v834, %v3144
  %v3289 = vmul.f32 %v838, %v3132
  %v3290 = vmul.f32 %v838, %v3136
  %v3291 = vmul.f32 %v838, %v3140
  %v3292 = vmul.f32 %v838, %v3144
  %v3293 = vmul.f32 %v842, %v3132
  %v3294 = vmul.f32 %v842, %v3136
  %v3295 = vmul.f32 %v842, %v3140
  %v3296 = vmul.f32 %v842, %v3144
  %v3297 = vmul.f32 %v846, %v3132
  %v3298 = vmul.f32 %v846, %v3136
  %v3299 = vmul.f32 %v846, %v3140
  %v3300 = vmul.f32 %v846, %v3144
  %v3301 = vmul.f32 %v850, %v3132
  %v3302 = vmul.f32 %v850, %v3136
  %v3303 = vmul.f32 %v850, %v3140
  %v3304 = vmul.f32 %v850, %v3144
  %v3305 = vmul.f32 %v854, %v3132
  %v3306 = vmul.f32 %v854, %v3136
  %v3307 = vmul.f32 %v854, %v3140
  %v3308 = vmul.f32 %v854, %v3144
  %v3309 = vmul.f32 %v858, %v3132
  %v3310 = vmul.f32 %v858, %v3136
  %v3311 = vmul.f32 %v858, %v3140
  %v3312 = vmul.f32 %v858, %v3144
  %v3313 = vmul.f32 %v862, %v3132
  %v3314 = vmul.f32 %v862, %v3136
  %v3315 = vmul.f32 %v862, %v3140
  %v3316 = vmul.f32 %v862, %v3144
  %v3317 = vmul.f32 %v866, %v3132
  %v3318 = vmul.f32 %v866, %v3136
  %v3319 = vmul.f32 %v866, %v3140
  %v3320 = vmul.f32 %v866, %v3144
  %v3321 = vmul.f32 %v870, %v3132
  %v3322 = vmul.f32 %v870, %v3136
  %v3323 = vmul.f32 %v870, %v3140
  %v3324 = vmul.f32 %v870, %v3144
  %v3325 = vmul.f32 %v874, %v3132
  %v3326 = vmul.f32 %v874, %v3136
  %v3327 = vmul.f32 %v874, %v3140
  %v3328 = vmul.f32 %v874, %v3144
  %v3329 = vmul.f32 %v878, %v3132
  %v3330 = vmul.f32 %v878, %v3136
  %v3331 = vmul.f32 %v878, %v3140
  %v3332 = vmul.f32 %v878, %v3144
  %v3333 = vmul.f32 %v882, %v3132
  %v3334 = vmul.f32 %v882, %v3136
  %v3335 = vmul.f32 %v882, %v3140
  %v3336 = vmul.f32 %v882, %v3144
  %v3337 = vadd.f32 %v2917, %v3145
  %v3338 = vadd.f32 %v2918, %v3146
  %v3339 = vadd.f32 %v2919, %v3147
  %v3340 = vadd.f32 %v2920, %v3148
  %v3341 = vadd.f32 %v2921, %v3149
  %v3342 = vadd.f32 %v2922, %v3150
  %v3343 = vadd.f32 %v2923, %v3151
  %v3344 = vadd.f32 %v2924, %v3152
  %v3345 = vadd.f32 %v2925, %v3153
  %v3346 = vadd.f32 %v2926, %v3154
  %v3347 = vadd.f32 %v2927, %v3155
  %v3348 = vadd.f32 %v2928, %v3156
  %v3349 = vadd.f32 %v2929, %v3157
  %v3350 = vadd.f32 %v2930, %v3158
  %v3351 = vadd.f32 %v2931, %v3159
  %v3352 = vadd.f32 %v2932, %v3160
  %v3353 = vadd.f32 %v2933, %v3161
  %v3354 = vadd.f32 %v2934, %v3162
  %v3355 = vadd.f32 %v2935, %v3163
  %v3356 = vadd.f32 %v2936, %v3164
  %v3357 = vadd.f32 %v2937, %v3165
  %v3358 = vadd.f32 %v2938, %v3166
  %v3359 = vadd.f32 %v2939, %v3167
  %v3360 = vadd.f32 %v2940, %v3168
  %v3361 = vadd.f32 %v2941, %v3169
  %v3362 = vadd.f32 %v2942, %v3170
  %v3363 = vadd.f32 %v2943, %v3171
  %v3364 = vadd.f32 %v2944, %v3172
  %v3365 = vadd.f32 %v2945, %v3173
  %v3366 = vadd.f32 %v2946, %v3174
  %v3367 = vadd.f32 %v2947, %v3175
  %v3368 = vadd.f32 %v2948, %v3176
  %v3369 = vadd.f32 %v2949, %v3177
  %v3370 = vadd.f32 %v2950, %v3178
  %v3371 = vadd.f32 %v2951, %v3179
  %v3372 = vadd.f32 %v2952, %v3180
  %v3373 = vadd.f32 %v2953, %v3181
  %v3374 = vadd.f32 %v2954, %v3182
  %v3375 = vadd.f32 %v2955, %v3183
  %v3376 = vadd.f32 %v2956, %v3184
  %v3377 = vadd.f32 %v2957, %v3185
  %v3378 = vadd.f32 %v2958, %v3186
  %v3379 = vadd.f32 %v2959, %v3187
  %v3380 = vadd.f32 %v2960, %v3188
  %v3381 = vadd.f32 %v2961, %v3189
  %v3382 = vadd.f32 %v2962, %v3190
  %v3383 = vadd.f32 %v2963, %v3191
  %v3384 = vadd.f32 %v2964, %v3192
  %v3385 = vadd.f32 %v2965, %v3193
  %v3386 = vadd.f32 %v2966, %v3194
  %v3387 = vadd.f32 %v2967, %v3195
  %v3388 = vadd.f32 %v2968, %v3196
  %v3389 = vadd.f32 %v2969, %v3197
  %v3390 = vadd.f32 %v2970, %v3198
  %v3391 = vadd.f32 %v2971, %v3199
  %v3392 = vadd.f32 %v2972, %v3200
  %v3393 = vadd.f32 %v2973, %v3201
  %v3394 = vadd.f32 %v2974, %v3202
  %v3395 = vadd.f32 %v2975, %v3203
  %v3396 = vadd.f32 %v2976, %v3204
  %v3397 = vadd.f32 %v2977, %v3205
  %v3398 = vadd.f32 %v2978, %v3206
  %v3399 = vadd.f32 %v2979, %v3207
  %v3400 = vadd.f32 %v2980, %v3208
  %v3401 = vadd.f32 %v2981, %v3209
  %v3402 = vadd.f32 %v2982, %v3210
  %v3403 = vadd.f32 %v2983, %v3211
  %v3404 = vadd.f32 %v2984, %v3212
  %v3405 = vadd.f32 %v2985, %v3213
  %v3406 = vadd.f32 %v2986, %v3214
  %v3407 = vadd.f32 %v2987, %v3215
  %v3408 = vadd.f32 %v2988, %v3216
  %v3409 = vadd.f32 %v2989, %v3217
  %v3410 = vadd.f32 %v2990, %v3218
  %v3411 = vadd.f32 %v2991, %v3219
  %v3412 = vadd.f32 %v2992, %v3220
  %v3413 = vadd.f32 %v2993, %v3221
  %v3414 = vadd.f32 %v2994, %v3222
  %v3415 = vadd.f32 %v2995, %v3223
  %v3416 = vadd.f32 %v2996, %v3224
  %v3417 = vadd.f32 %v2997, %v3225
  %v3418 = vadd.f32 %v2998, %v3226
  %v3419 = vadd.f32 %v2999, %v3227
  %v3420 = vadd.f32 %v3000, %v3228
  %v3421 = vadd.f32 %v3001, %v3229
  %v3422 = vadd.f32 %v3002, %v3230
  %v3423 = vadd.f32 %v3003, %v3231
  %v3424 = vadd.f32 %v3004, %v3232
  %v3425 = vadd.f32 %v3005, %v3233
  %v3426 = vadd.f32 %v3006, %v3234
  %v3427 = vadd.f32 %v3007, %v3235
  %v3428 = vadd.f32 %v3008, %v3236
  %v3429 = vadd.f32 %v3009, %v3237
  %v3430 = vadd.f32 %v3010, %v3238
  %v3431 = vadd.f32 %v3011, %v3239
  %v3432 = vadd.f32 %v3012, %v3240
  %v3433 = vadd.f32 %v3013, %v3241
  %v3434 = vadd.f32 %v3014, %v3242
  %v3435 = vadd.f32 %v3015, %v3243
  %v3436 = vadd.f32 %v3016, %v3244
  %v3437 = vadd.f32 %v3017, %v3245
  %v3438 = vadd.f32 %v3018, %v3246
  %v3439 = vadd.f32 %v3019, %v3247
  %v3440 = vadd.f32 %v3020, %v3248
  %v3441 = vadd.f32 %v3021, %v3249
  %v3442 = vadd.f32 %v3022, %v3250
  %v3443 = vadd.f32 %v3023, %v3251
  %v3444 = vadd.f32 %v3024, %v3252
  %v3445 = vadd.f32 %v3025, %v3253
  %v3446 = vadd.f32 %v3026, %v3254
  %v3447 = vadd.f32 %v3027, %v3255
  %v3448 = vadd.f32 %v3028, %v3256
  %v3449 = vadd.f32 %v3029, %v3257
  %v3450 = vadd.f32 %v3030, %v3258
  %v3451 = vadd.f32 %v3031, %v3259
  %v3452 = vadd.f32 %v3032, %v3260
  %v3453 = vadd.f32 %v3033, %v3261
  %v3454 = vadd.f32 %v3034, %v3262
  %v3455 = vadd.f32 %v3035, %v3263
  %v3456 = vadd.f32 %v3036, %v3264
  %v3457 = vadd.f32 %v3037, %v3265
  %v3458 = vadd.f32 %v3038, %v3266
  %v3459 = vadd.f32 %v3039, %v3267
  %v3460 = vadd.f32 %v3040, %v3268
  %v3461 = vadd.f32 %v3041, %v3269
  %v3462 = vadd.f32 %v3042, %v3270
  %v3463 = vadd.f32 %v3043, %v3271
  %v3464 = vadd.f32 %v3044, %v3272
  %v3465 = vadd.f32 %v3045, %v3273
  %v3466 = vadd.f32 %v3046, %v3274
  %v3467 = vadd.f32 %v3047, %v3275
  %v3468 = vadd.f32 %v3048, %v3276
  %v3469 = vadd.f32 %v3049, %v3277
  %v3470 = vadd.f32 %v3050, %v3278
  %v3471 = vadd.f32 %v3051, %v3279
  %v3472 = vadd.f32 %v3052, %v3280
  %v3473 = vadd.f32 %v3053, %v3281
  %v3474 = vadd.f32 %v3054, %v3282
  %v3475 = vadd.f32 %v3055, %v3283
  %v3476 = vadd.f32 %v3056, %v3284
  %v3477 = vadd.f32 %v3057, %v3285
  %v3478 = vadd.f32 %v3058, %v3286
  %v3479 = vadd.f32 %v3059, %v3287
  %v3480 = vadd.f32 %v3060, %v3288
  %v3481 = vadd.f32 %v3061, %v3289
  %v3482 = vadd.f32 %v3062, %v3290
  %v3483 = vadd.f32 %v3063, %v3291
  %v3484 = vadd.f32 %v3064, %v3292
  %v3485 = vadd.f32 %v3065, %v3293
  %v3486 = vadd.f32 %v3066, %v3294
  %v3487 = vadd.f32 %v3067, %v3295
  %v3488 = vadd.f32 %v3068, %v3296
  %v3489 = vadd.f32 %v3069, %v3297
  %v3490 = vadd.f32 %v3070, %v3298
  %v3491 = vadd.f32 %v3071, %v3299
  %v3492 = vadd.f32 %v3072, %v3300
  %v3493 = vadd.f32 %v3073, %v3301
  %v3494 = vadd.f32 %v3074, %v3302
  %v3495 = vadd.f32 %v3075, %v3303
  %v3496 = vadd.f32 %v3076, %v3304
  %v3497 = vadd.f32 %v3077, %v3305
  %v3498 = vadd.f32 %v3078, %v3306
  %v3499 = vadd.f32 %v3079, %v3307
  %v3500 = vadd.f32 %v3080, %v3308
  %v3501 = vadd.f32 %v3081, %v3309
  %v3502 = vadd.f32 %v3082, %v3310
  %v3503 = vadd.f32 %v3083, %v3311
  %v3504 = vadd.f32 %v3084, %v3312
  %v3505 = vadd.f32 %v3085, %v3313
  %v3506 = vadd.f32 %v3086, %v3314
  %v3507 = vadd.f32 %v3087, %v3315
  %v3508 = vadd.f32 %v3088, %v3316
  %v3509 = vadd.f32 %v3089, %v3317
  %v3510 = vadd.f32 %v3090, %v3318
  %v3511 = vadd.f32 %v3091, %v3319
  %v3512 = vadd.f32 %v3092, %v3320
  %v3513 = vadd.f32 %v3093, %v3321
  %v3514 = vadd.f32 %v3094, %v3322
  %v3515 = vadd.f32 %v3095, %v3323
  %v3516 = vadd.f32 %v3096, %v3324
  %v3517 = vadd.f32 %v3097, %v3325
  %v3518 = vadd.f32 %v3098, %v3326
  %v3519 = vadd.f32 %v3099, %v3327
  %v3520 = vadd.f32 %v3100, %v3328
  %v3521 = vadd.f32 %v3101, %v3329
  %v3522 = vadd.f32 %v3102, %v3330
  %v3523 = vadd.f32 %v3103, %v3331
  %v3524 = vadd.f32 %v3104, %v3332
  %v3525 = vadd.f32 %v3105, %v3333
  %v3526 = vadd.f32 %v3106, %v3334
  %v3527 = vadd.f32 %v3107, %v3335
  %v3528 = vadd.f32 %v3108, %v3336
  %v3529 = vmax.f32 %v3337, 0.0
  %v3530 = vmax.f32 %v3338, 0.0
  %v3531 = vmax.f32 %v3339, 0.0
  %v3532 = vmax.f32 %v3340, 0.0
  %v3533 = vmax.f32 %v3341, 0.0
  %v3534 = vmax.f32 %v3342, 0.0
  %v3535 = vmax.f32 %v3343, 0.0
  %v3536 = vmax.f32 %v3344, 0.0
  %v3537 = vmax.f32 %v3345, 0.0
  %v3538 = vmax.f32 %v3346, 0.0
  %v3539 = vmax.f32 %v3347, 0.0
  %v3540 = vmax.f32 %v3348, 0.0
  %v3541 = vmax.f32 %v3349, 0.0
  %v3542 = vmax.f32 %v3350, 0.0
  %v3543 = vmax.f32 %v3351, 0.0
  %v3544 = vmax.f32 %v3352, 0.0
  %v3545 = vmax.f32 %v3353, 0.0
  %v3546 = vmax.f32 %v3354, 0.0
  %v3547 = vmax.f32 %v3355, 0.0
  %v3548 = vmax.f32 %v3356, 0.0
  %v3549 = vmax.f32 %v3357, 0.0
  %v3550 = vmax.f32 %v3358, 0.0
  %v3551 = vmax.f32 %v3359, 0.0
  %v3552 = vmax.f32 %v3360, 0.0
  %v3553 = vmax.f32 %v3361, 0.0
  %v3554 = vmax.f32 %v3362, 0.0
  %v3555 = vmax.f32 %v3363, 0.0
  %v3556 = vmax.f32 %v3364, 0.0
  %v3557 = vmax.f32 %v3365, 0.0
  %v3558 = vmax.f32 %v3366, 0.0
  %v3559 = vmax.f32 %v3367, 0.0
  %v3560 = vmax.f32 %v3368, 0.0
  %v3561 = vmax.f32 %v3369, 0.0
  %v3562 = vmax.f32 %v3370, 0.0
  %v3563 = vmax.f32 %v3371, 0.0
  %v3564 = vmax.f32 %v3372, 0.0
  %v3565 = vmax.f32 %v3373, 0.0
  %v3566 = vmax.f32 %v3374, 0.0
  %v3567 = vmax.f32 %v3375, 0.0
  %v3568 = vmax.f32 %v3376, 0.0
  %v3569 = vmax.f32 %v3377, 0.0
  %v3570 = vmax.f32 %v3378, 0.0
  %v3571 = vmax.f32 %v3379, 0.0
  %v3572 = vmax.f32 %v3380, 0.0
  %v3573 = vmax.f32 %v3381, 0.0
  %v3574 = vmax.f32 %v3382, 0.0
  %v3575 = vmax.f32 %v3383, 0.0
  %v3576 = vmax.f32 %v3384, 0.0
  %v3577 = vmax.f32 %v3385, 0.0
  %v3578 = vmax.f32 %v3386, 0.0
  %v3579 = vmax.f32 %v3387, 0.0
  %v3580 = vmax.f32 %v3388, 0.0
  %v3581 = vmax.f32 %v3389, 0.0
  %v3582 = vmax.f32 %v3390, 0.0
  %v3583 = vmax.f32 %v3391, 0.0
  %v3584 = vmax.f32 %v3392, 0.0
  %v3585 = vmax.f32 %v3393, 0.0
  %v3586 = vmax.f32 %v3394, 0.0
  %v3587 = vmax.f32 %v3395, 0.0
  %v3588 = vmax.f32 %v3396, 0.0
  %v3589 = vmax.f32 %v3397, 0.0
  %v3590 = vmax.f32 %v3398, 0.0
  %v3591 = vmax.f32 %v3399, 0.0
  %v3592 = vmax.f32 %v3400, 0.0
  %v3593 = vmax.f32 %v3401, 0.0
  %v3594 = vmax.f32 %v3402, 0.0
  %v3595 = vmax.f32 %v3403, 0.0
  %v3596 = vmax.f32 %v3404, 0.0
  %v3597 = vmax.f32 %v3405, 0.0
  %v3598 = vmax.f32 %v3406, 0.0
  %v3599 = vmax.f32 %v3407, 0.0
  %v3600 = vmax.f32 %v3408, 0.0
  %v3601 = vmax.f32 %v3409, 0.0
  %v3602 = vmax.f32 %v3410, 0.0
  %v3603 = vmax.f32 %v3411, 0.0
  %v3604 = vmax.f32 %v3412, 0.0
  %v3605 = vmax.f32 %v3413, 0.0
  %v3606 = vmax.f32 %v3414, 0.0
  %v3607 = vmax.f32 %v3415, 0.0
  %v3608 = vmax.f32 %v3416, 0.0
  %v3609 = vmax.f32 %v3417, 0.0
  %v3610 = vmax.f32 %v3418, 0.0
  %v3611 = vmax.f32 %v3419, 0.0
  %v3612 = vmax.f32 %v3420, 0.0
  %v3613 = vmax.f32 %v3421, 0.0
  %v3614 = vmax.f32 %v3422, 0.0
  %v3615 = vmax.f32 %v3423, 0.0
  %v3616 = vmax.f32 %v3424, 0.0
  %v3617 = vmax.f32 %v3425, 0.0
  %v3618 = vmax.f32 %v3426, 0.0
  %v3619 = vmax.f32 %v3427, 0.0
  %v3620 = vmax.f32 %v3428, 0.0
  %v3621 = vmax.f32 %v3429, 0.0
  %v3622 = vmax.f32 %v3430, 0.0
  %v3623 = vmax.f32 %v3431, 0.0
  %v3624 = vmax.f32 %v3432, 0.0
  %v3625 = vmax.f32 %v3433, 0.0
  %v3626 = vmax.f32 %v3434, 0.0
  %v3627 = vmax.f32 %v3435, 0.0
  %v3628 = vmax.f32 %v3436, 0.0
  %v3629 = vmax.f32 %v3437, 0.0
  %v3630 = vmax.f32 %v3438, 0.0
  %v3631 = vmax.f32 %v3439, 0.0
  %v3632 = vmax.f32 %v3440, 0.0
  %v3633 = vmax.f32 %v3441, 0.0
  %v3634 = vmax.f32 %v3442, 0.0
  %v3635 = vmax.f32 %v3443, 0.0
  %v3636 = vmax.f32 %v3444, 0.0
  %v3637 = vmax.f32 %v3445, 0.0
  %v3638 = vmax.f32 %v3446, 0.0
  %v3639 = vmax.f32 %v3447, 0.0
  %v3640 = vmax.f32 %v3448, 0.0
  %v3641 = vmax.f32 %v3449, 0.0
  %v3642 = vmax.f32 %v3450, 0.0
  %v3643 = vmax.f32 %v3451, 0.0
  %v3644 = vmax.f32 %v3452, 0.0
  %v3645 = vmax.f32 %v3453, 0.0
  %v3646 = vmax.f32 %v3454, 0.0
  %v3647 = vmax.f32 %v3455, 0.0
  %v3648 = vmax.f32 %v3456, 0.0
  %v3649 = vmax.f32 %v3457, 0.0
  %v3650 = vmax.f32 %v3458, 0.0
  %v3651 = vmax.f32 %v3459, 0.0
  %v3652 = vmax.f32 %v3460, 0.0
  %v3653 = vmax.f32 %v3461, 0.0
  %v3654 = vmax.f32 %v3462, 0.0
  %v3655 = vmax.f32 %v3463, 0.0
  %v3656 = vmax.f32 %v3464, 0.0
  %v3657 = vmax.f32 %v3465, 0.0
  %v3658 = vmax.f32 %v3466, 0.0
  %v3659 = vmax.f32 %v3467, 0.0
  %v3660 = vmax.f32 %v3468, 0.0
  %v3661 = vmax.f32 %v3469, 0.0
  %v3662 = vmax.f32 %v3470, 0.0
  %v3663 = vmax.f32 %v3471, 0.0
  %v3664 = vmax.f32 %v3472, 0.0
  %v3665 = vmax.f32 %v3473, 0.0
  %v3666 = vmax.f32 %v3474, 0.0
  %v3667 = vmax.f32 %v3475, 0.0
  %v3668 = vmax.f32 %v3476, 0.0
  %v3669 = vmax.f32 %v3477, 0.0
  %v3670 = vmax.f32 %v3478, 0.0
  %v3671 = vmax.f32 %v3479, 0.0
  %v3672 = vmax.f32 %v3480, 0.0
  %v3673 = vmax.f32 %v3481, 0.0
  %v3674 = vmax.f32 %v3482, 0.0
  %v3675 = vmax.f32 %v3483, 0.0
  %v3676 = vmax.f32 %v3484, 0.0
  %v3677 = vmax.f32 %v3485, 0.0
  %v3678 = vmax.f32 %v3486, 0.0
  %v3679 = vmax.f32 %v3487, 0.0
  %v3680 = vmax.f32 %v3488, 0.0
  %v3681 = vmax.f32 %v3489, 0.0
  %v3682 = vmax.f32 %v3490, 0.0
  %v3683 = vmax.f32 %v3491, 0.0
  %v3684 = vmax.f32 %v3492, 0.0
  %v3685 = vmax.f32 %v3493, 0.0
  %v3686 = vmax.f32 %v3494, 0.0
  %v3687 = vmax.f32 %v3495, 0.0
  %v3688 = vmax.f32 %v3496, 0.0
  %v3689 = vmax.f32 %v3497, 0.0
  %v3690 = vmax.f32 %v3498, 0.0
  %v3691 = vmax.f32 %v3499, 0.0
  %v3692 = vmax.f32 %v3500, 0.0
  %v3693 = vmax.f32 %v3501, 0.0
  %v3694 = vmax.f32 %v3502, 0.0
  %v3695 = vmax.f32 %v3503, 0.0
  %v3696 = vmax.f32 %v3504, 0.0
  %v3697 = vmax.f32 %v3505, 0.0
  %v3698 = vmax.f32 %v3506, 0.0
  %v3699 = vmax.f32 %v3507, 0.0
  %v3700 = vmax.f32 %v3508, 0.0
  %v3701 = vmax.f32 %v3509, 0.0
  %v3702 = vmax.f32 %v3510, 0.0
  %v3703 = vmax.f32 %v3511, 0.0
  %v3704 = vmax.f32 %v3512, 0.0
  %v3705 = vmax.f32 %v3513, 0.0
  %v3706 = vmax.f32 %v3514, 0.0
  %v3707 = vmax.f32 %v3515, 0.0
  %v3708 = vmax.f32 %v3516, 0.0
  %v3709 = vmax.f32 %v3517, 0.0
  %v3710 = vmax.f32 %v3518, 0.0
  %v3711 = vmax.f32 %v3519, 0.0
  %v3712 = vmax.f32 %v3520, 0.0
  %v3713 = vmax.f32 %v3521, 0.0
  %v3714 = vmax.f32 %v3522, 0.0
  %v3715 = vmax.f32 %v3523, 0.0
  %v3716 = vmax.f32 %v3524, 0.0
  %v3717 = vmax.f32 %v3525, 0.0
  %v3718 = vmax.f32 %v3526, 0.0
  %v3719 = vmax.f32 %v3527, 0.0
  %v3720 = vmax.f32 %v3528, 0.0
  %v3721 = vmul.f32 %v1223, %v3529
  %v3722 = vmul.f32 %v1223, %v3530
  %v3723 = vmul.f32 %v1223, %v3531
  %v3724 = vmul.f32 %v1223, %v3532
  %v3725 = vmul.f32 %v1228, %v3533
  %v3726 = vmul.f32 %v1228, %v3534
  %v3727 = vmul.f32 %v1228, %v3535
  %v3728 = vmul.f32 %v1228, %v3536
  %v3729 = vmul.f32 %v1233, %v3537
  %v3730 = vmul.f32 %v1233, %v3538
  %v3731 = vmul.f32 %v1233, %v3539
  %v3732 = vmul.f32 %v1233, %v3540
  %v3733 = vmul.f32 %v1238, %v3541
  %v3734 = vmul.f32 %v1238, %v3542
  %v3735 = vmul.f32 %v1238, %v3543
  %v3736 = vmul.f32 %v1238, %v3544
  %v3737 = vmul.f32 %v1243, %v3545
  %v3738 = vmul.f32 %v1243, %v3546
  %v3739 = vmul.f32 %v1243, %v3547
  %v3740 = vmul.f32 %v1243, %v3548
  %v3741 = vmul.f32 %v1248, %v3549
  %v3742 = vmul.f32 %v1248, %v3550
  %v3743 = vmul.f32 %v1248, %v3551
  %v3744 = vmul.f32 %v1248, %v3552
  %v3745 = vmul.f32 %v1253, %v3553
  %v3746 = vmul.f32 %v1253, %v3554
  %v3747 = vmul.f32 %v1253, %v3555
  %v3748 = vmul.f32 %v1253, %v3556
  %v3749 = vmul.f32 %v1258, %v3557
  %v3750 = vmul.f32 %v1258, %v3558
  %v3751 = vmul.f32 %v1258, %v3559
  %v3752 = vmul.f32 %v1258, %v3560
  %v3753 = vmul.f32 %v1263, %v3561
  %v3754 = vmul.f32 %v1263, %v3562
  %v3755 = vmul.f32 %v1263, %v3563
  %v3756 = vmul.f32 %v1263, %v3564
  %v3757 = vmul.f32 %v1268, %v3565
  %v3758 = vmul.f32 %v1268, %v3566
  %v3759 = vmul.f32 %v1268, %v3567
  %v3760 = vmul.f32 %v1268, %v3568
  %v3761 = vmul.f32 %v1273, %v3569
  %v3762 = vmul.f32 %v1273, %v3570
  %v3763 = vmul.f32 %v1273, %v3571
  %v3764 = vmul.f32 %v1273, %v3572
  %v3765 = vmul.f32 %v1278, %v3573
  %v3766 = vmul.f32 %v1278, %v3574
  %v3767 = vmul.f32 %v1278, %v3575
  %v3768 = vmul.f32 %v1278, %v3576
  %v3769 = vmul.f32 %v1283, %v3577
  %v3770 = vmul.f32 %v1283, %v3578
  %v3771 = vmul.f32 %v1283, %v3579
  %v3772 = vmul.f32 %v1283, %v3580
  %v3773 = vmul.f32 %v1288, %v3581
  %v3774 = vmul.f32 %v1288, %v3582
  %v3775 = vmul.f32 %v1288, %v3583
  %v3776 = vmul.f32 %v1288, %v3584
  %v3777 = vmul.f32 %v1293, %v3585
  %v3778 = vmul.f32 %v1293, %v3586
  %v3779 = vmul.f32 %v1293, %v3587
  %v3780 = vmul.f32 %v1293, %v3588
  %v3781 = vmul.f32 %v1298, %v3589
  %v3782 = vmul.f32 %v1298, %v3590
  %v3783 = vmul.f32 %v1298, %v3591
  %v3784 = vmul.f32 %v1298, %v3592
  %v3785 = vmul.f32 %v1303, %v3593
  %v3786 = vmul.f32 %v1303, %v3594
  %v3787 = vmul.f32 %v1303, %v3595
  %v3788 = vmul.f32 %v1303, %v3596
  %v3789 = vmul.f32 %v1308, %v3597
  %v3790 = vmul.f32 %v1308, %v3598
  %v3791 = vmul.f32 %v1308, %v3599
  %v3792 = vmul.f32 %v1308, %v3600
  %v3793 = vmul.f32 %v1313, %v3601
  %v3794 = vmul.f32 %v1313, %v3602
  %v3795 = vmul.f32 %v1313, %v3603
  %v3796 = vmul.f32 %v1313, %v3604
  %v3797 = vmul.f32 %v1318, %v3605
  %v3798 = vmul.f32 %v1318, %v3606
  %v3799 = vmul.f32 %v1318, %v3607
  %v3800 = vmul.f32 %v1318, %v3608
  %v3801 = vmul.f32 %v1323, %v3609
  %v3802 = vmul.f32 %v1323, %v3610
  %v3803 = vmul.f32 %v1323, %v3611
  %v3804 = vmul.f32 %v1323, %v3612
  %v3805 = vmul.f32 %v1328, %v3613
  %v3806 = vmul.f32 %v1328, %v3614
  %v3807 = vmul.f32 %v1328, %v3615
  %v3808 = vmul.f32 %v1328, %v3616
  %v3809 = vmul.f32 %v1333, %v3617
  %v3810 = vmul.f32 %v1333, %v3618
  %v3811 = vmul.f32 %v1333, %v3619
  %v3812 = vmul.f32 %v1333, %v3620
  %v3813 = vmul.f32 %v1338, %v3621
  %v3814 = vmul.f32 %v1338, %v3622
  %v3815 = vmul.f32 %v1338, %v3623
  %v3816 = vmul.f32 %v1338, %v3624
  %v3817 = vmul.f32 %v1343, %v3625
  %v3818 = vmul.f32 %v1343, %v3626
  %v3819 = vmul.f32 %v1343, %v3627
  %v3820 = vmul.f32 %v1343, %v3628
  %v3821 = vmul.f32 %v1348, %v3629
  %v3822 = vmul.f32 %v1348, %v3630
  %v3823 = vmul.f32 %v1348, %v3631
  %v3824 = vmul.f32 %v1348, %v3632
  %v3825 = vmul.f32 %v1353, %v3633
  %v3826 = vmul.f32 %v1353, %v3634
  %v3827 = vmul.f32 %v1353, %v3635
  %v3828 = vmul.f32 %v1353, %v3636
  %v3829 = vmul.f32 %v1358, %v3637
  %v3830 = vmul.f32 %v1358, %v3638
  %v3831 = vmul.f32 %v1358, %v3639
  %v3832 = vmul.f32 %v1358, %v3640
  %v3833 = vmul.f32 %v1363, %v3641
  %v3834 = vmul.f32 %v1363, %v3642
  %v3835 = vmul.f32 %v1363, %v3643
  %v3836 = vmul.f32 %v1363, %v3644
  %v3837 = vmul.f32 %v1368, %v3645
  %v3838 = vmul.f32 %v1368, %v3646
  %v3839 = vmul.f32 %v1368, %v3647
  %v3840 = vmul.f32 %v1368, %v3648
  %v3841 = vmul.f32 %v1373, %v3649
  %v3842 = vmul.f32 %v1373, %v3650
  %v3843 = vmul.f32 %v1373, %v3651
  %v3844 = vmul.f32 %v1373, %v3652
  %v3845 = vmul.f32 %v1378, %v3653
  %v3846 = vmul.f32 %v1378, %v3654
  %v3847 = vmul.f32 %v1378, %v3655
  %v3848 = vmul.f32 %v1378, %v3656
  %v3849 = vmul.f32 %v1383, %v3657
  %v3850 = vmul.f32 %v1383, %v3658
  %v3851 = vmul.f32 %v1383, %v3659
  %v3852 = vmul.f32 %v1383, %v3660
  %v3853 = vmul.f32 %v1388, %v3661
  %v3854 = vmul.f32 %v1388, %v3662
  %v3855 = vmul.f32 %v1388, %v3663
  %v3856 = vmul.f32 %v1388, %v3664
  %v3857 = vmul.f32 %v1393, %v3665
  %v3858 = vmul.f32 %v1393, %v3666
  %v3859 = vmul.f32 %v1393, %v3667
  %v3860 = vmul.f32 %v1393, %v3668
  %v3861 = vmul.f32 %v1398, %v3669
  %v3862 = vmul.f32 %v1398, %v3670
  %v3863 = vmul.f32 %v1398, %v3671
  %v3864 = vmul.f32 %v1398, %v3672
  %v3865 = vmul.f32 %v1403, %v3673
  %v3866 = vmul.f32 %v1403, %v3674
  %v3867 = vmul.f32 %v1403, %v3675
  %v3868 = vmul.f32 %v1403, %v3676
  %v3869 = vmul.f32 %v1408, %v3677
  %v3870 = vmul.f32 %v1408, %v3678
  %v3871 = vmul.f32 %v1408, %v3679
  %v3872 = vmul.f32 %v1408, %v3680
  %v3873 = vmul.f32 %v1413, %v3681
  %v3874 = vmul.f32 %v1413, %v3682
  %v3875 = vmul.f32 %v1413, %v3683
  %v3876 = vmul.f32 %v1413, %v3684
  %v3877 = vmul.f32 %v1418, %v3685
  %v3878 = vmul.f32 %v1418, %v3686
  %v3879 = vmul.f32 %v1418, %v3687
  %v3880 = vmul.f32 %v1418, %v3688
  %v3881 = vmul.f32 %v1423, %v3689
  %v3882 = vmul.f32 %v1423, %v3690
  %v3883 = vmul.f32 %v1423, %v3691
  %v3884 = vmul.f32 %v1423, %v3692
  %v3885 = vmul.f32 %v1428, %v3693
  %v3886 = vmul.f32 %v1428, %v3694
  %v3887 = vmul.f32 %v1428, %v3695
  %v3888 = vmul.f32 %v1428, %v3696
  %v3889 = vmul.f32 %v1433, %v3697
  %v3890 = vmul.f32 %v1433, %v3698
  %v3891 = vmul.f32 %v1433, %v3699
  %v3892 = vmul.f32 %v1433, %v3700
  %v3893 = vmul.f32 %v1438, %v3701
  %v3894 = vmul.f32 %v1438, %v3702
  %v3895 = vmul.f32 %v1438, %v3703
  %v3896 = vmul.f32 %v1438, %v3704
  %v3897 = vmul.f32 %v1443, %v3705
  %v3898 = vmul.f32 %v1443, %v3706
  %v3899 = vmul.f32 %v1443, %v3707
  %v3900 = vmul.f32 %v1443, %v3708
  %v3901 = vmul.f32 %v1448, %v3709
  %v3902 = vmul.f32 %v1448, %v3710
  %v3903 = vmul.f32 %v1448, %v3711
  %v3904 = vmul.f32 %v1448, %v3712
  %v3905 = vmul.f32 %v1453, %v3713
  %v3906 = vmul.f32 %v1453, %v3714
  %v3907 = vmul.f32 %v1453, %v3715
  %v3908 = vmul.f32 %v1453, %v3716
  %v3909 = vmul.f32 %v1458, %v3717
  %v3910 = vmul.f32 %v1458, %v3718
  %v3911 = vmul.f32 %v1458, %v3719
  %v3912 = vmul.f32 %v1458, %v3720
  %v3913 = vadd.f32 %v3721, %v3725
  %v3914 = vadd.f32 %v3913, %v3729
  %v3915 = vadd.f32 %v3914, %v3733
  %v3916 = vadd.f32 %v3915, %v3737
  %v3917 = vadd.f32 %v3916, %v3741
  %v3918 = vadd.f32 %v3917, %v3745
  %v3919 = vadd.f32 %v3918, %v3749
  %v3920 = vadd.f32 %v3919, %v3753
  %v3921 = vadd.f32 %v3920, %v3757
  %v3922 = vadd.f32 %v3921, %v3761
  %v3923 = vadd.f32 %v3922, %v3765
  %v3924 = vadd.f32 %v3923, %v3769
  %v3925 = vadd.f32 %v3924, %v3773
  %v3926 = vadd.f32 %v3925, %v3777
  %v3927 = vadd.f32 %v3926, %v3781
  %v3928 = vadd.f32 %v3927, %v3785
  %v3929 = vadd.f32 %v3928, %v3789
  %v3930 = vadd.f32 %v3929, %v3793
  %v3931 = vadd.f32 %v3930, %v3797
  %v3932 = vadd.f32 %v3931, %v3801
  %v3933 = vadd.f32 %v3932, %v3805
  %v3934 = vadd.f32 %v3933, %v3809
  %v3935 = vadd.f32 %v3934, %v3813
  %v3936 = vadd.f32 %v3935, %v3817
  %v3937 = vadd.f32 %v3936, %v3821
  %v3938 = vadd.f32 %v3937, %v3825
  %v3939 = vadd.f32 %v3938, %v3829
  %v3940 = vadd.f32 %v3939, %v3833
  %v3941 = vadd.f32 %v3940, %v3837
  %v3942 = vadd.f32 %v3941, %v3841
  %v3943 = vadd.f32 %v3942, %v3845
  %v3944 = vadd.f32 %v3943, %v3849
  %v3945 = vadd.f32 %v3944, %v3853
  %v3946 = vadd.f32 %v3945, %v3857
  %v3947 = vadd.f32 %v3946, %v3861
  %v3948 = vadd.f32 %v3947, %v3865
  %v3949 = vadd.f32 %v3948, %v3869
  %v3950 = vadd.f32 %v3949, %v3873
  %v3951 = vadd.f32 %v3950, %v3877
  %v3952 = vadd.f32 %v3951, %v3881
  %v3953 = vadd.f32 %v3952, %v3885
  %v3954 = vadd.f32 %v3953, %v3889
  %v3955 = vadd.f32 %v3954, %v3893
  %v3956 = vadd.f32 %v3955, %v3897
  %v3957 = vadd.f32 %v3956, %v3901
  %v3958 = vadd.f32 %v3957, %v3905
  %v3959 = vadd.f32 %v3958, %v3909
  %v3960 = vrot.slane %v3959, 4
  %v3961 = vadd.f32 %v3959, %v3960
  %v3962 = vrot.slane %v3961, 2
  %v3963 = vadd.f32 %v3961, %v3962
  %v3964 = vrot.slane %v3963, 1
  %v3965 = vadd.f32 %v3963, %v3964
  %v3966 = vadd.f32 %v3722, %v3726
  %v3967 = vadd.f32 %v3966, %v3730
  %v3968 = vadd.f32 %v3967, %v3734
  %v3969 = vadd.f32 %v3968, %v3738
  %v3970 = vadd.f32 %v3969, %v3742
  %v3971 = vadd.f32 %v3970, %v3746
  %v3972 = vadd.f32 %v3971, %v3750
  %v3973 = vadd.f32 %v3972, %v3754
  %v3974 = vadd.f32 %v3973, %v3758
  %v3975 = vadd.f32 %v3974, %v3762
  %v3976 = vadd.f32 %v3975, %v3766
  %v3977 = vadd.f32 %v3976, %v3770
  %v3978 = vadd.f32 %v3977, %v3774
  %v3979 = vadd.f32 %v3978, %v3778
  %v3980 = vadd.f32 %v3979, %v3782
  %v3981 = vadd.f32 %v3980, %v3786
  %v3982 = vadd.f32 %v3981, %v3790
  %v3983 = vadd.f32 %v3982, %v3794
  %v3984 = vadd.f32 %v3983, %v3798
  %v3985 = vadd.f32 %v3984, %v3802
  %v3986 = vadd.f32 %v3985, %v3806
  %v3987 = vadd.f32 %v3986, %v3810
  %v3988 = vadd.f32 %v3987, %v3814
  %v3989 = vadd.f32 %v3988, %v3818
  %v3990 = vadd.f32 %v3989, %v3822
  %v3991 = vadd.f32 %v3990, %v3826
  %v3992 = vadd.f32 %v3991, %v3830
  %v3993 = vadd.f32 %v3992, %v3834
  %v3994 = vadd.f32 %v3993, %v3838
  %v3995 = vadd.f32 %v3994, %v3842
  %v3996 = vadd.f32 %v3995, %v3846
  %v3997 = vadd.f32 %v3996, %v3850
  %v3998 = vadd.f32 %v3997, %v3854
  %v3999 = vadd.f32 %v3998, %v3858
  %v4000 = vadd.f32 %v3999, %v3862
  %v4001 = vadd.f32 %v4000, %v3866
  %v4002 = vadd.f32 %v4001, %v3870
  %v4003 = vadd.f32 %v4002, %v3874
  %v4004 = vadd.f32 %v4003, %v3878
  %v4005 = vadd.f32 %v4004, %v3882
  %v4006 = vadd.f32 %v4005, %v3886
  %v4007 = vadd.f32 %v4006, %v3890
  %v4008 = vadd.f32 %v4007, %v3894
  %v4009 = vadd.f32 %v4008, %v3898
  %v4010 = vadd.f32 %v4009, %v3902
  %v4011 = vadd.f32 %v4010, %v3906
  %v4012 = vadd.f32 %v4011, %v3910
  %v4013 = vrot.slane %v4012, 4
  %v4014 = vadd.f32 %v4012, %v4013
  %v4015 = vrot.slane %v4014, 2
  %v4016 = vadd.f32 %v4014, %v4015
  %v4017 = vrot.slane %v4016, 1
  %v4018 = vadd.f32 %v4016, %v4017
  %v4019 = vadd.f32 %v3723, %v3727
  %v4020 = vadd.f32 %v4019, %v3731
  %v4021 = vadd.f32 %v4020, %v3735
  %v4022 = vadd.f32 %v4021, %v3739
  %v4023 = vadd.f32 %v4022, %v3743
  %v4024 = vadd.f32 %v4023, %v3747
  %v4025 = vadd.f32 %v4024, %v3751
  %v4026 = vadd.f32 %v4025, %v3755
  %v4027 = vadd.f32 %v4026, %v3759
  %v4028 = vadd.f32 %v4027, %v3763
  %v4029 = vadd.f32 %v4028, %v3767
  %v4030 = vadd.f32 %v4029, %v3771
  %v4031 = vadd.f32 %v4030, %v3775
  %v4032 = vadd.f32 %v4031, %v3779
  %v4033 = vadd.f32 %v4032, %v3783
  %v4034 = vadd.f32 %v4033, %v3787
  %v4035 = vadd.f32 %v4034, %v3791
  %v4036 = vadd.f32 %v4035, %v3795
  %v4037 = vadd.f32 %v4036, %v3799
  %v4038 = vadd.f32 %v4037, %v3803
  %v4039 = vadd.f32 %v4038, %v3807
  %v4040 = vadd.f32 %v4039, %v3811
  %v4041 = vadd.f32 %v4040, %v3815
  %v4042 = vadd.f32 %v4041, %v3819
  %v4043 = vadd.f32 %v4042, %v3823
  %v4044 = vadd.f32 %v4043, %v3827
  %v4045 = vadd.f32 %v4044, %v3831
  %v4046 = vadd.f32 %v4045, %v3835
  %v4047 = vadd.f32 %v4046, %v3839
  %v4048 = vadd.f32 %v4047, %v3843
  %v4049 = vadd.f32 %v4048, %v3847
  %v4050 = vadd.f32 %v4049, %v3851
  %v4051 = vadd.f32 %v4050, %v3855
  %v4052 = vadd.f32 %v4051, %v3859
  %v4053 = vadd.f32 %v4052, %v3863
  %v4054 = vadd.f32 %v4053, %v3867
  %v4055 = vadd.f32 %v4054, %v3871
  %v4056 = vadd.f32 %v4055, %v3875
  %v4057 = vadd.f32 %v4056, %v3879
  %v4058 = vadd.f32 %v4057, %v3883
  %v4059 = vadd.f32 %v4058, %v3887
  %v4060 = vadd.f32 %v4059, %v3891
  %v4061 = vadd.f32 %v4060, %v3895
  %v4062 = vadd.f32 %v4061, %v3899
  %v4063 = vadd.f32 %v4062, %v3903
  %v4064 = vadd.f32 %v4063, %v3907
  %v4065 = vadd.f32 %v4064, %v3911
  %v4066 = vrot.slane %v4065, 4
  %v4067 = vadd.f32 %v4065, %v4066
  %v4068 = vrot.slane %v4067, 2
  %v4069 = vadd.f32 %v4067, %v4068
  %v4070 = vrot.slane %v4069, 1
  %v4071 = vadd.f32 %v4069, %v4070
  %v4072 = vadd.f32 %v3724, %v3728
  %v4073 = vadd.f32 %v4072, %v3732
  %v4074 = vadd.f32 %v4073, %v3736
  %v4075 = vadd.f32 %v4074, %v3740
  %v4076 = vadd.f32 %v4075, %v3744
  %v4077 = vadd.f32 %v4076, %v3748
  %v4078 = vadd.f32 %v4077, %v3752
  %v4079 = vadd.f32 %v4078, %v3756
  %v4080 = vadd.f32 %v4079, %v3760
  %v4081 = vadd.f32 %v4080, %v3764
  %v4082 = vadd.f32 %v4081, %v3768
  %v4083 = vadd.f32 %v4082, %v3772
  %v4084 = vadd.f32 %v4083, %v3776
  %v4085 = vadd.f32 %v4084, %v3780
  %v4086 = vadd.f32 %v4085, %v3784
  %v4087 = vadd.f32 %v4086, %v3788
  %v4088 = vadd.f32 %v4087, %v3792
  %v4089 = vadd.f32 %v4088, %v3796
  %v4090 = vadd.f32 %v4089, %v3800
  %v4091 = vadd.f32 %v4090, %v3804
  %v4092 = vadd.f32 %v4091, %v3808
  %v4093 = vadd.f32 %v4092, %v3812
  %v4094 = vadd.f32 %v4093, %v3816
  %v4095 = vadd.f32 %v4094, %v3820
  %v4096 = vadd.f32 %v4095, %v3824
  %v4097 = vadd.f32 %v4096, %v3828
  %v4098 = vadd.f32 %v4097, %v3832
  %v4099 = vadd.f32 %v4098, %v3836
  %v4100 = vadd.f32 %v4099, %v3840
  %v4101 = vadd.f32 %v4100, %v3844
  %v4102 = vadd.f32 %v4101, %v3848
  %v4103 = vadd.f32 %v4102, %v3852
  %v4104 = vadd.f32 %v4103, %v3856
  %v4105 = vadd.f32 %v4104, %v3860
  %v4106 = vadd.f32 %v4105, %v3864
  %v4107 = vadd.f32 %v4106, %v3868
  %v4108 = vadd.f32 %v4107, %v3872
  %v4109 = vadd.f32 %v4108, %v3876
  %v4110 = vadd.f32 %v4109, %v3880
  %v4111 = vadd.f32 %v4110, %v3884
  %v4112 = vadd.f32 %v4111, %v3888
  %v4113 = vadd.f32 %v4112, %v3892
  %v4114 = vadd.f32 %v4113, %v3896
  %v4115 = vadd.f32 %v4114, %v3900
  %v4116 = vadd.f32 %v4115, %v3904
  %v4117 = vadd.f32 %v4116, %v3908
  %v4118 = vadd.f32 %v4117, %v3912
  %v4119 = vrot.slane %v4118, 4
  %v4120 = vadd.f32 %v4118, %v4119
  %v4121 = vrot.slane %v4120, 2
  %v4122 = vadd.f32 %v4120, %v4121
  %v4123 = vrot.slane %v4122, 1
  %v4124 = vadd.f32 %v4122, %v4123
  %v4125 = vmul.f32 %v1462, %v3529
  %v4126 = vmul.f32 %v1462, %v3530
  %v4127 = vmul.f32 %v1462, %v3531
  %v4128 = vmul.f32 %v1462, %v3532
  %v4129 = vmul.f32 %v1466, %v3533
  %v4130 = vmul.f32 %v1466, %v3534
  %v4131 = vmul.f32 %v1466, %v3535
  %v4132 = vmul.f32 %v1466, %v3536
  %v4133 = vmul.f32 %v1470, %v3537
  %v4134 = vmul.f32 %v1470, %v3538
  %v4135 = vmul.f32 %v1470, %v3539
  %v4136 = vmul.f32 %v1470, %v3540
  %v4137 = vmul.f32 %v1474, %v3541
  %v4138 = vmul.f32 %v1474, %v3542
  %v4139 = vmul.f32 %v1474, %v3543
  %v4140 = vmul.f32 %v1474, %v3544
  %v4141 = vmul.f32 %v1478, %v3545
  %v4142 = vmul.f32 %v1478, %v3546
  %v4143 = vmul.f32 %v1478, %v3547
  %v4144 = vmul.f32 %v1478, %v3548
  %v4145 = vmul.f32 %v1482, %v3549
  %v4146 = vmul.f32 %v1482, %v3550
  %v4147 = vmul.f32 %v1482, %v3551
  %v4148 = vmul.f32 %v1482, %v3552
  %v4149 = vmul.f32 %v1486, %v3553
  %v4150 = vmul.f32 %v1486, %v3554
  %v4151 = vmul.f32 %v1486, %v3555
  %v4152 = vmul.f32 %v1486, %v3556
  %v4153 = vmul.f32 %v1490, %v3557
  %v4154 = vmul.f32 %v1490, %v3558
  %v4155 = vmul.f32 %v1490, %v3559
  %v4156 = vmul.f32 %v1490, %v3560
  %v4157 = vmul.f32 %v1494, %v3561
  %v4158 = vmul.f32 %v1494, %v3562
  %v4159 = vmul.f32 %v1494, %v3563
  %v4160 = vmul.f32 %v1494, %v3564
  %v4161 = vmul.f32 %v1498, %v3565
  %v4162 = vmul.f32 %v1498, %v3566
  %v4163 = vmul.f32 %v1498, %v3567
  %v4164 = vmul.f32 %v1498, %v3568
  %v4165 = vmul.f32 %v1502, %v3569
  %v4166 = vmul.f32 %v1502, %v3570
  %v4167 = vmul.f32 %v1502, %v3571
  %v4168 = vmul.f32 %v1502, %v3572
  %v4169 = vmul.f32 %v1506, %v3573
  %v4170 = vmul.f32 %v1506, %v3574
  %v4171 = vmul.f32 %v1506, %v3575
  %v4172 = vmul.f32 %v1506, %v3576
  %v4173 = vmul.f32 %v1510, %v3577
  %v4174 = vmul.f32 %v1510, %v3578
  %v4175 = vmul.f32 %v1510, %v3579
  %v4176 = vmul.f32 %v1510, %v3580
  %v4177 = vmul.f32 %v1514, %v3581
  %v4178 = vmul.f32 %v1514, %v3582
  %v4179 = vmul.f32 %v1514, %v3583
  %v4180 = vmul.f32 %v1514, %v3584
  %v4181 = vmul.f32 %v1518, %v3585
  %v4182 = vmul.f32 %v1518, %v3586
  %v4183 = vmul.f32 %v1518, %v3587
  %v4184 = vmul.f32 %v1518, %v3588
  %v4185 = vmul.f32 %v1522, %v3589
  %v4186 = vmul.f32 %v1522, %v3590
  %v4187 = vmul.f32 %v1522, %v3591
  %v4188 = vmul.f32 %v1522, %v3592
  %v4189 = vmul.f32 %v1526, %v3593
  %v4190 = vmul.f32 %v1526, %v3594
  %v4191 = vmul.f32 %v1526, %v3595
  %v4192 = vmul.f32 %v1526, %v3596
  %v4193 = vmul.f32 %v1530, %v3597
  %v4194 = vmul.f32 %v1530, %v3598
  %v4195 = vmul.f32 %v1530, %v3599
  %v4196 = vmul.f32 %v1530, %v3600
  %v4197 = vmul.f32 %v1534, %v3601
  %v4198 = vmul.f32 %v1534, %v3602
  %v4199 = vmul.f32 %v1534, %v3603
  %v4200 = vmul.f32 %v1534, %v3604
  %v4201 = vmul.f32 %v1538, %v3605
  %v4202 = vmul.f32 %v1538, %v3606
  %v4203 = vmul.f32 %v1538, %v3607
  %v4204 = vmul.f32 %v1538, %v3608
  %v4205 = vmul.f32 %v1542, %v3609
  %v4206 = vmul.f32 %v1542, %v3610
  %v4207 = vmul.f32 %v1542, %v3611
  %v4208 = vmul.f32 %v1542, %v3612
  %v4209 = vmul.f32 %v1546, %v3613
  %v4210 = vmul.f32 %v1546, %v3614
  %v4211 = vmul.f32 %v1546, %v3615
  %v4212 = vmul.f32 %v1546, %v3616
  %v4213 = vmul.f32 %v1550, %v3617
  %v4214 = vmul.f32 %v1550, %v3618
  %v4215 = vmul.f32 %v1550, %v3619
  %v4216 = vmul.f32 %v1550, %v3620
  %v4217 = vmul.f32 %v1554, %v3621
  %v4218 = vmul.f32 %v1554, %v3622
  %v4219 = vmul.f32 %v1554, %v3623
  %v4220 = vmul.f32 %v1554, %v3624
  %v4221 = vmul.f32 %v1558, %v3625
  %v4222 = vmul.f32 %v1558, %v3626
  %v4223 = vmul.f32 %v1558, %v3627
  %v4224 = vmul.f32 %v1558, %v3628
  %v4225 = vmul.f32 %v1562, %v3629
  %v4226 = vmul.f32 %v1562, %v3630
  %v4227 = vmul.f32 %v1562, %v3631
  %v4228 = vmul.f32 %v1562, %v3632
  %v4229 = vmul.f32 %v1566, %v3633
  %v4230 = vmul.f32 %v1566, %v3634
  %v4231 = vmul.f32 %v1566, %v3635
  %v4232 = vmul.f32 %v1566, %v3636
  %v4233 = vmul.f32 %v1570, %v3637
  %v4234 = vmul.f32 %v1570, %v3638
  %v4235 = vmul.f32 %v1570, %v3639
  %v4236 = vmul.f32 %v1570, %v3640
  %v4237 = vmul.f32 %v1574, %v3641
  %v4238 = vmul.f32 %v1574, %v3642
  %v4239 = vmul.f32 %v1574, %v3643
  %v4240 = vmul.f32 %v1574, %v3644
  %v4241 = vmul.f32 %v1578, %v3645
  %v4242 = vmul.f32 %v1578, %v3646
  %v4243 = vmul.f32 %v1578, %v3647
  %v4244 = vmul.f32 %v1578, %v3648
  %v4245 = vmul.f32 %v1582, %v3649
  %v4246 = vmul.f32 %v1582, %v3650
  %v4247 = vmul.f32 %v1582, %v3651
  %v4248 = vmul.f32 %v1582, %v3652
  %v4249 = vmul.f32 %v1586, %v3653
  %v4250 = vmul.f32 %v1586, %v3654
  %v4251 = vmul.f32 %v1586, %v3655
  %v4252 = vmul.f32 %v1586, %v3656
  %v4253 = vmul.f32 %v1590, %v3657
  %v4254 = vmul.f32 %v1590, %v3658
  %v4255 = vmul.f32 %v1590, %v3659
  %v4256 = vmul.f32 %v1590, %v3660
  %v4257 = vmul.f32 %v1594, %v3661
  %v4258 = vmul.f32 %v1594, %v3662
  %v4259 = vmul.f32 %v1594, %v3663
  %v4260 = vmul.f32 %v1594, %v3664
  %v4261 = vmul.f32 %v1598, %v3665
  %v4262 = vmul.f32 %v1598, %v3666
  %v4263 = vmul.f32 %v1598, %v3667
  %v4264 = vmul.f32 %v1598, %v3668
  %v4265 = vmul.f32 %v1602, %v3669
  %v4266 = vmul.f32 %v1602, %v3670
  %v4267 = vmul.f32 %v1602, %v3671
  %v4268 = vmul.f32 %v1602, %v3672
  %v4269 = vmul.f32 %v1606, %v3673
  %v4270 = vmul.f32 %v1606, %v3674
  %v4271 = vmul.f32 %v1606, %v3675
  %v4272 = vmul.f32 %v1606, %v3676
  %v4273 = vmul.f32 %v1610, %v3677
  %v4274 = vmul.f32 %v1610, %v3678
  %v4275 = vmul.f32 %v1610, %v3679
  %v4276 = vmul.f32 %v1610, %v3680
  %v4277 = vmul.f32 %v1614, %v3681
  %v4278 = vmul.f32 %v1614, %v3682
  %v4279 = vmul.f32 %v1614, %v3683
  %v4280 = vmul.f32 %v1614, %v3684
  %v4281 = vmul.f32 %v1618, %v3685
  %v4282 = vmul.f32 %v1618, %v3686
  %v4283 = vmul.f32 %v1618, %v3687
  %v4284 = vmul.f32 %v1618, %v3688
  %v4285 = vmul.f32 %v1622, %v3689
  %v4286 = vmul.f32 %v1622, %v3690
  %v4287 = vmul.f32 %v1622, %v3691
  %v4288 = vmul.f32 %v1622, %v3692
  %v4289 = vmul.f32 %v1626, %v3693
  %v4290 = vmul.f32 %v1626, %v3694
  %v4291 = vmul.f32 %v1626, %v3695
  %v4292 = vmul.f32 %v1626, %v3696
  %v4293 = vmul.f32 %v1630, %v3697
  %v4294 = vmul.f32 %v1630, %v3698
  %v4295 = vmul.f32 %v1630, %v3699
  %v4296 = vmul.f32 %v1630, %v3700
  %v4297 = vmul.f32 %v1634, %v3701
  %v4298 = vmul.f32 %v1634, %v3702
  %v4299 = vmul.f32 %v1634, %v3703
  %v4300 = vmul.f32 %v1634, %v3704
  %v4301 = vmul.f32 %v1638, %v3705
  %v4302 = vmul.f32 %v1638, %v3706
  %v4303 = vmul.f32 %v1638, %v3707
  %v4304 = vmul.f32 %v1638, %v3708
  %v4305 = vmul.f32 %v1642, %v3709
  %v4306 = vmul.f32 %v1642, %v3710
  %v4307 = vmul.f32 %v1642, %v3711
  %v4308 = vmul.f32 %v1642, %v3712
  %v4309 = vmul.f32 %v1646, %v3713
  %v4310 = vmul.f32 %v1646, %v3714
  %v4311 = vmul.f32 %v1646, %v3715
  %v4312 = vmul.f32 %v1646, %v3716
  %v4313 = vmul.f32 %v1650, %v3717
  %v4314 = vmul.f32 %v1650, %v3718
  %v4315 = vmul.f32 %v1650, %v3719
  %v4316 = vmul.f32 %v1650, %v3720
  %v4317 = vadd.f32 %v4125, %v4129
  %v4318 = vadd.f32 %v4317, %v4133
  %v4319 = vadd.f32 %v4318, %v4137
  %v4320 = vadd.f32 %v4319, %v4141
  %v4321 = vadd.f32 %v4320, %v4145
  %v4322 = vadd.f32 %v4321, %v4149
  %v4323 = vadd.f32 %v4322, %v4153
  %v4324 = vadd.f32 %v4323, %v4157
  %v4325 = vadd.f32 %v4324, %v4161
  %v4326 = vadd.f32 %v4325, %v4165
  %v4327 = vadd.f32 %v4326, %v4169
  %v4328 = vadd.f32 %v4327, %v4173
  %v4329 = vadd.f32 %v4328, %v4177
  %v4330 = vadd.f32 %v4329, %v4181
  %v4331 = vadd.f32 %v4330, %v4185
  %v4332 = vadd.f32 %v4331, %v4189
  %v4333 = vadd.f32 %v4332, %v4193
  %v4334 = vadd.f32 %v4333, %v4197
  %v4335 = vadd.f32 %v4334, %v4201
  %v4336 = vadd.f32 %v4335, %v4205
  %v4337 = vadd.f32 %v4336, %v4209
  %v4338 = vadd.f32 %v4337, %v4213
  %v4339 = vadd.f32 %v4338, %v4217
  %v4340 = vadd.f32 %v4339, %v4221
  %v4341 = vadd.f32 %v4340, %v4225
  %v4342 = vadd.f32 %v4341, %v4229
  %v4343 = vadd.f32 %v4342, %v4233
  %v4344 = vadd.f32 %v4343, %v4237
  %v4345 = vadd.f32 %v4344, %v4241
  %v4346 = vadd.f32 %v4345, %v4245
  %v4347 = vadd.f32 %v4346, %v4249
  %v4348 = vadd.f32 %v4347, %v4253
  %v4349 = vadd.f32 %v4348, %v4257
  %v4350 = vadd.f32 %v4349, %v4261
  %v4351 = vadd.f32 %v4350, %v4265
  %v4352 = vadd.f32 %v4351, %v4269
  %v4353 = vadd.f32 %v4352, %v4273
  %v4354 = vadd.f32 %v4353, %v4277
  %v4355 = vadd.f32 %v4354, %v4281
  %v4356 = vadd.f32 %v4355, %v4285
  %v4357 = vadd.f32 %v4356, %v4289
  %v4358 = vadd.f32 %v4357, %v4293
  %v4359 = vadd.f32 %v4358, %v4297
  %v4360 = vadd.f32 %v4359, %v4301
  %v4361 = vadd.f32 %v4360, %v4305
  %v4362 = vadd.f32 %v4361, %v4309
  %v4363 = vadd.f32 %v4362, %v4313
  %v4364 = vrot.slane %v4363, 4
  %v4365 = vadd.f32 %v4363, %v4364
  %v4366 = vrot.slane %v4365, 2
  %v4367 = vadd.f32 %v4365, %v4366
  %v4368 = vrot.slane %v4367, 1
  %v4369 = vadd.f32 %v4367, %v4368
  %v4370 = vadd.f32 %v4126, %v4130
  %v4371 = vadd.f32 %v4370, %v4134
  %v4372 = vadd.f32 %v4371, %v4138
  %v4373 = vadd.f32 %v4372, %v4142
  %v4374 = vadd.f32 %v4373, %v4146
  %v4375 = vadd.f32 %v4374, %v4150
  %v4376 = vadd.f32 %v4375, %v4154
  %v4377 = vadd.f32 %v4376, %v4158
  %v4378 = vadd.f32 %v4377, %v4162
  %v4379 = vadd.f32 %v4378, %v4166
  %v4380 = vadd.f32 %v4379, %v4170
  %v4381 = vadd.f32 %v4380, %v4174
  %v4382 = vadd.f32 %v4381, %v4178
  %v4383 = vadd.f32 %v4382, %v4182
  %v4384 = vadd.f32 %v4383, %v4186
  %v4385 = vadd.f32 %v4384, %v4190
  %v4386 = vadd.f32 %v4385, %v4194
  %v4387 = vadd.f32 %v4386, %v4198
  %v4388 = vadd.f32 %v4387, %v4202
  %v4389 = vadd.f32 %v4388, %v4206
  %v4390 = vadd.f32 %v4389, %v4210
  %v4391 = vadd.f32 %v4390, %v4214
  %v4392 = vadd.f32 %v4391, %v4218
  %v4393 = vadd.f32 %v4392, %v4222
  %v4394 = vadd.f32 %v4393, %v4226
  %v4395 = vadd.f32 %v4394, %v4230
  %v4396 = vadd.f32 %v4395, %v4234
  %v4397 = vadd.f32 %v4396, %v4238
  %v4398 = vadd.f32 %v4397, %v4242
  %v4399 = vadd.f32 %v4398, %v4246
  %v4400 = vadd.f32 %v4399, %v4250
  %v4401 = vadd.f32 %v4400, %v4254
  %v4402 = vadd.f32 %v4401, %v4258
  %v4403 = vadd.f32 %v4402, %v4262
  %v4404 = vadd.f32 %v4403, %v4266
  %v4405 = vadd.f32 %v4404, %v4270
  %v4406 = vadd.f32 %v4405, %v4274
  %v4407 = vadd.f32 %v4406, %v4278
  %v4408 = vadd.f32 %v4407, %v4282
  %v4409 = vadd.f32 %v4408, %v4286
  %v4410 = vadd.f32 %v4409, %v4290
  %v4411 = vadd.f32 %v4410, %v4294
  %v4412 = vadd.f32 %v4411, %v4298
  %v4413 = vadd.f32 %v4412, %v4302
  %v4414 = vadd.f32 %v4413, %v4306
  %v4415 = vadd.f32 %v4414, %v4310
  %v4416 = vadd.f32 %v4415, %v4314
  %v4417 = vrot.slane %v4416, 4
  %v4418 = vadd.f32 %v4416, %v4417
  %v4419 = vrot.slane %v4418, 2
  %v4420 = vadd.f32 %v4418, %v4419
  %v4421 = vrot.slane %v4420, 1
  %v4422 = vadd.f32 %v4420, %v4421
  %v4423 = vadd.f32 %v4127, %v4131
  %v4424 = vadd.f32 %v4423, %v4135
  %v4425 = vadd.f32 %v4424, %v4139
  %v4426 = vadd.f32 %v4425, %v4143
  %v4427 = vadd.f32 %v4426, %v4147
  %v4428 = vadd.f32 %v4427, %v4151
  %v4429 = vadd.f32 %v4428, %v4155
  %v4430 = vadd.f32 %v4429, %v4159
  %v4431 = vadd.f32 %v4430, %v4163
  %v4432 = vadd.f32 %v4431, %v4167
  %v4433 = vadd.f32 %v4432, %v4171
  %v4434 = vadd.f32 %v4433, %v4175
  %v4435 = vadd.f32 %v4434, %v4179
  %v4436 = vadd.f32 %v4435, %v4183
  %v4437 = vadd.f32 %v4436, %v4187
  %v4438 = vadd.f32 %v4437, %v4191
  %v4439 = vadd.f32 %v4438, %v4195
  %v4440 = vadd.f32 %v4439, %v4199
  %v4441 = vadd.f32 %v4440, %v4203
  %v4442 = vadd.f32 %v4441, %v4207
  %v4443 = vadd.f32 %v4442, %v4211
  %v4444 = vadd.f32 %v4443, %v4215
  %v4445 = vadd.f32 %v4444, %v4219
  %v4446 = vadd.f32 %v4445, %v4223
  %v4447 = vadd.f32 %v4446, %v4227
  %v4448 = vadd.f32 %v4447, %v4231
  %v4449 = vadd.f32 %v4448, %v4235
  %v4450 = vadd.f32 %v4449, %v4239
  %v4451 = vadd.f32 %v4450, %v4243
  %v4452 = vadd.f32 %v4451, %v4247
  %v4453 = vadd.f32 %v4452, %v4251
  %v4454 = vadd.f32 %v4453, %v4255
  %v4455 = vadd.f32 %v4454, %v4259
  %v4456 = vadd.f32 %v4455, %v4263
  %v4457 = vadd.f32 %v4456, %v4267
  %v4458 = vadd.f32 %v4457, %v4271
  %v4459 = vadd.f32 %v4458, %v4275
  %v4460 = vadd.f32 %v4459, %v4279
  %v4461 = vadd.f32 %v4460, %v4283
  %v4462 = vadd.f32 %v4461, %v4287
  %v4463 = vadd.f32 %v4462, %v4291
  %v4464 = vadd.f32 %v4463, %v4295
  %v4465 = vadd.f32 %v4464, %v4299
  %v4466 = vadd.f32 %v4465, %v4303
  %v4467 = vadd.f32 %v4466, %v4307
  %v4468 = vadd.f32 %v4467, %v4311
  %v4469 = vadd.f32 %v4468, %v4315
  %v4470 = vrot.slane %v4469, 4
  %v4471 = vadd.f32 %v4469, %v4470
  %v4472 = vrot.slane %v4471, 2
  %v4473 = vadd.f32 %v4471, %v4472
  %v4474 = vrot.slane %v4473, 1
  %v4475 = vadd.f32 %v4473, %v4474
  %v4476 = vadd.f32 %v4128, %v4132
  %v4477 = vadd.f32 %v4476, %v4136
  %v4478 = vadd.f32 %v4477, %v4140
  %v4479 = vadd.f32 %v4478, %v4144
  %v4480 = vadd.f32 %v4479, %v4148
  %v4481 = vadd.f32 %v4480, %v4152
  %v4482 = vadd.f32 %v4481, %v4156
  %v4483 = vadd.f32 %v4482, %v4160
  %v4484 = vadd.f32 %v4483, %v4164
  %v4485 = vadd.f32 %v4484, %v4168
  %v4486 = vadd.f32 %v4485, %v4172
  %v4487 = vadd.f32 %v4486, %v4176
  %v4488 = vadd.f32 %v4487, %v4180
  %v4489 = vadd.f32 %v4488, %v4184
  %v4490 = vadd.f32 %v4489, %v4188
  %v4491 = vadd.f32 %v4490, %v4192
  %v4492 = vadd.f32 %v4491, %v4196
  %v4493 = vadd.f32 %v4492, %v4200
  %v4494 = vadd.f32 %v4493, %v4204
  %v4495 = vadd.f32 %v4494, %v4208
  %v4496 = vadd.f32 %v4495, %v4212
  %v4497 = vadd.f32 %v4496, %v4216
  %v4498 = vadd.f32 %v4497, %v4220
  %v4499 = vadd.f32 %v4498, %v4224
  %v4500 = vadd.f32 %v4499, %v4228
  %v4501 = vadd.f32 %v4500, %v4232
  %v4502 = vadd.f32 %v4501, %v4236
  %v4503 = vadd.f32 %v4502, %v4240
  %v4504 = vadd.f32 %v4503, %v4244
  %v4505 = vadd.f32 %v4504, %v4248
  %v4506 = vadd.f32 %v4505, %v4252
  %v4507 = vadd.f32 %v4506, %v4256
  %v4508 = vadd.f32 %v4507, %v4260
  %v4509 = vadd.f32 %v4508, %v4264
  %v4510 = vadd.f32 %v4509, %v4268
  %v4511 = vadd.f32 %v4510, %v4272
  %v4512 = vadd.f32 %v4511, %v4276
  %v4513 = vadd.f32 %v4512, %v4280
  %v4514 = vadd.f32 %v4513, %v4284
  %v4515 = vadd.f32 %v4514, %v4288
  %v4516 = vadd.f32 %v4515, %v4292
  %v4517 = vadd.f32 %v4516, %v4296
  %v4518 = vadd.f32 %v4517, %v4300
  %v4519 = vadd.f32 %v4518, %v4304
  %v4520 = vadd.f32 %v4519, %v4308
  %v4521 = vadd.f32 %v4520, %v4312
  %v4522 = vadd.f32 %v4521, %v4316
  %v4523 = vrot.slane %v4522, 4
  %v4524 = vadd.f32 %v4522, %v4523
  %v4525 = vrot.slane %v4524, 2
  %v4526 = vadd.f32 %v4524, %v4525
  %v4527 = vrot.slane %v4526, 1
  %v4528 = vadd.f32 %v4526, %v4527
  %v4529 = vmul.f32 %v1654, %v3529
  %v4530 = vmul.f32 %v1654, %v3530
  %v4531 = vmul.f32 %v1654, %v3531
  %v4532 = vmul.f32 %v1654, %v3532
  %v4533 = vmul.f32 %v1658, %v3533
  %v4534 = vmul.f32 %v1658, %v3534
  %v4535 = vmul.f32 %v1658, %v3535
  %v4536 = vmul.f32 %v1658, %v3536
  %v4537 = vmul.f32 %v1662, %v3537
  %v4538 = vmul.f32 %v1662, %v3538
  %v4539 = vmul.f32 %v1662, %v3539
  %v4540 = vmul.f32 %v1662, %v3540
  %v4541 = vmul.f32 %v1666, %v3541
  %v4542 = vmul.f32 %v1666, %v3542
  %v4543 = vmul.f32 %v1666, %v3543
  %v4544 = vmul.f32 %v1666, %v3544
  %v4545 = vmul.f32 %v1670, %v3545
  %v4546 = vmul.f32 %v1670, %v3546
  %v4547 = vmul.f32 %v1670, %v3547
  %v4548 = vmul.f32 %v1670, %v3548
  %v4549 = vmul.f32 %v1674, %v3549
  %v4550 = vmul.f32 %v1674, %v3550
  %v4551 = vmul.f32 %v1674, %v3551
  %v4552 = vmul.f32 %v1674, %v3552
  %v4553 = vmul.f32 %v1678, %v3553
  %v4554 = vmul.f32 %v1678, %v3554
  %v4555 = vmul.f32 %v1678, %v3555
  %v4556 = vmul.f32 %v1678, %v3556
  %v4557 = vmul.f32 %v1682, %v3557
  %v4558 = vmul.f32 %v1682, %v3558
  %v4559 = vmul.f32 %v1682, %v3559
  %v4560 = vmul.f32 %v1682, %v3560
  %v4561 = vmul.f32 %v1686, %v3561
  %v4562 = vmul.f32 %v1686, %v3562
  %v4563 = vmul.f32 %v1686, %v3563
  %v4564 = vmul.f32 %v1686, %v3564
  %v4565 = vmul.f32 %v1690, %v3565
  %v4566 = vmul.f32 %v1690, %v3566
  %v4567 = vmul.f32 %v1690, %v3567
  %v4568 = vmul.f32 %v1690, %v3568
  %v4569 = vmul.f32 %v1694, %v3569
  %v4570 = vmul.f32 %v1694, %v3570
  %v4571 = vmul.f32 %v1694, %v3571
  %v4572 = vmul.f32 %v1694, %v3572
  %v4573 = vmul.f32 %v1698, %v3573
  %v4574 = vmul.f32 %v1698, %v3574
  %v4575 = vmul.f32 %v1698, %v3575
  %v4576 = vmul.f32 %v1698, %v3576
  %v4577 = vmul.f32 %v1702, %v3577
  %v4578 = vmul.f32 %v1702, %v3578
  %v4579 = vmul.f32 %v1702, %v3579
  %v4580 = vmul.f32 %v1702, %v3580
  %v4581 = vmul.f32 %v1706, %v3581
  %v4582 = vmul.f32 %v1706, %v3582
  %v4583 = vmul.f32 %v1706, %v3583
  %v4584 = vmul.f32 %v1706, %v3584
  %v4585 = vmul.f32 %v1710, %v3585
  %v4586 = vmul.f32 %v1710, %v3586
  %v4587 = vmul.f32 %v1710, %v3587
  %v4588 = vmul.f32 %v1710, %v3588
  %v4589 = vmul.f32 %v1714, %v3589
  %v4590 = vmul.f32 %v1714, %v3590
  %v4591 = vmul.f32 %v1714, %v3591
  %v4592 = vmul.f32 %v1714, %v3592
  %v4593 = vmul.f32 %v1718, %v3593
  %v4594 = vmul.f32 %v1718, %v3594
  %v4595 = vmul.f32 %v1718, %v3595
  %v4596 = vmul.f32 %v1718, %v3596
  %v4597 = vmul.f32 %v1722, %v3597
  %v4598 = vmul.f32 %v1722, %v3598
  %v4599 = vmul.f32 %v1722, %v3599
  %v4600 = vmul.f32 %v1722, %v3600
  %v4601 = vmul.f32 %v1726, %v3601
  %v4602 = vmul.f32 %v1726, %v3602
  %v4603 = vmul.f32 %v1726, %v3603
  %v4604 = vmul.f32 %v1726, %v3604
  %v4605 = vmul.f32 %v1730, %v3605
  %v4606 = vmul.f32 %v1730, %v3606
  %v4607 = vmul.f32 %v1730, %v3607
  %v4608 = vmul.f32 %v1730, %v3608
  %v4609 = vmul.f32 %v1734, %v3609
  %v4610 = vmul.f32 %v1734, %v3610
  %v4611 = vmul.f32 %v1734, %v3611
  %v4612 = vmul.f32 %v1734, %v3612
  %v4613 = vmul.f32 %v1738, %v3613
  %v4614 = vmul.f32 %v1738, %v3614
  %v4615 = vmul.f32 %v1738, %v3615
  %v4616 = vmul.f32 %v1738, %v3616
  %v4617 = vmul.f32 %v1742, %v3617
  %v4618 = vmul.f32 %v1742, %v3618
  %v4619 = vmul.f32 %v1742, %v3619
  %v4620 = vmul.f32 %v1742, %v3620
  %v4621 = vmul.f32 %v1746, %v3621
  %v4622 = vmul.f32 %v1746, %v3622
  %v4623 = vmul.f32 %v1746, %v3623
  %v4624 = vmul.f32 %v1746, %v3624
  %v4625 = vmul.f32 %v1750, %v3625
  %v4626 = vmul.f32 %v1750, %v3626
  %v4627 = vmul.f32 %v1750, %v3627
  %v4628 = vmul.f32 %v1750, %v3628
  %v4629 = vmul.f32 %v1754, %v3629
  %v4630 = vmul.f32 %v1754, %v3630
  %v4631 = vmul.f32 %v1754, %v3631
  %v4632 = vmul.f32 %v1754, %v3632
  %v4633 = vmul.f32 %v1758, %v3633
  %v4634 = vmul.f32 %v1758, %v3634
  %v4635 = vmul.f32 %v1758, %v3635
  %v4636 = vmul.f32 %v1758, %v3636
  %v4637 = vmul.f32 %v1762, %v3637
  %v4638 = vmul.f32 %v1762, %v3638
  %v4639 = vmul.f32 %v1762, %v3639
  %v4640 = vmul.f32 %v1762, %v3640
  %v4641 = vmul.f32 %v1766, %v3641
  %v4642 = vmul.f32 %v1766, %v3642
  %v4643 = vmul.f32 %v1766, %v3643
  %v4644 = vmul.f32 %v1766, %v3644
  %v4645 = vmul.f32 %v1770, %v3645
  %v4646 = vmul.f32 %v1770, %v3646
  %v4647 = vmul.f32 %v1770, %v3647
  %v4648 = vmul.f32 %v1770, %v3648
  %v4649 = vmul.f32 %v1774, %v3649
  %v4650 = vmul.f32 %v1774, %v3650
  %v4651 = vmul.f32 %v1774, %v3651
  %v4652 = vmul.f32 %v1774, %v3652
  %v4653 = vmul.f32 %v1778, %v3653
  %v4654 = vmul.f32 %v1778, %v3654
  %v4655 = vmul.f32 %v1778, %v3655
  %v4656 = vmul.f32 %v1778, %v3656
  %v4657 = vmul.f32 %v1782, %v3657
  %v4658 = vmul.f32 %v1782, %v3658
  %v4659 = vmul.f32 %v1782, %v3659
  %v4660 = vmul.f32 %v1782, %v3660
  %v4661 = vmul.f32 %v1786, %v3661
  %v4662 = vmul.f32 %v1786, %v3662
  %v4663 = vmul.f32 %v1786, %v3663
  %v4664 = vmul.f32 %v1786, %v3664
  %v4665 = vmul.f32 %v1790, %v3665
  %v4666 = vmul.f32 %v1790, %v3666
  %v4667 = vmul.f32 %v1790, %v3667
  %v4668 = vmul.f32 %v1790, %v3668
  %v4669 = vmul.f32 %v1794, %v3669
  %v4670 = vmul.f32 %v1794, %v3670
  %v4671 = vmul.f32 %v1794, %v3671
  %v4672 = vmul.f32 %v1794, %v3672
  %v4673 = vmul.f32 %v1798, %v3673
  %v4674 = vmul.f32 %v1798, %v3674
  %v4675 = vmul.f32 %v1798, %v3675
  %v4676 = vmul.f32 %v1798, %v3676
  %v4677 = vmul.f32 %v1802, %v3677
  %v4678 = vmul.f32 %v1802, %v3678
  %v4679 = vmul.f32 %v1802, %v3679
  %v4680 = vmul.f32 %v1802, %v3680
  %v4681 = vmul.f32 %v1806, %v3681
  %v4682 = vmul.f32 %v1806, %v3682
  %v4683 = vmul.f32 %v1806, %v3683
  %v4684 = vmul.f32 %v1806, %v3684
  %v4685 = vmul.f32 %v1810, %v3685
  %v4686 = vmul.f32 %v1810, %v3686
  %v4687 = vmul.f32 %v1810, %v3687
  %v4688 = vmul.f32 %v1810, %v3688
  %v4689 = vmul.f32 %v1814, %v3689
  %v4690 = vmul.f32 %v1814, %v3690
  %v4691 = vmul.f32 %v1814, %v3691
  %v4692 = vmul.f32 %v1814, %v3692
  %v4693 = vmul.f32 %v1818, %v3693
  %v4694 = vmul.f32 %v1818, %v3694
  %v4695 = vmul.f32 %v1818, %v3695
  %v4696 = vmul.f32 %v1818, %v3696
  %v4697 = vmul.f32 %v1822, %v3697
  %v4698 = vmul.f32 %v1822, %v3698
  %v4699 = vmul.f32 %v1822, %v3699
  %v4700 = vmul.f32 %v1822, %v3700
  %v4701 = vmul.f32 %v1826, %v3701
  %v4702 = vmul.f32 %v1826, %v3702
  %v4703 = vmul.f32 %v1826, %v3703
  %v4704 = vmul.f32 %v1826, %v3704
  %v4705 = vmul.f32 %v1830, %v3705
  %v4706 = vmul.f32 %v1830, %v3706
  %v4707 = vmul.f32 %v1830, %v3707
  %v4708 = vmul.f32 %v1830, %v3708
  %v4709 = vmul.f32 %v1834, %v3709
  %v4710 = vmul.f32 %v1834, %v3710
  %v4711 = vmul.f32 %v1834, %v3711
  %v4712 = vmul.f32 %v1834, %v3712
  %v4713 = vmul.f32 %v1838, %v3713
  %v4714 = vmul.f32 %v1838, %v3714
  %v4715 = vmul.f32 %v1838, %v3715
  %v4716 = vmul.f32 %v1838, %v3716
  %v4717 = vmul.f32 %v1842, %v3717
  %v4718 = vmul.f32 %v1842, %v3718
  %v4719 = vmul.f32 %v1842, %v3719
  %v4720 = vmul.f32 %v1842, %v3720
  %v4721 = vadd.f32 %v4529, %v4533
  %v4722 = vadd.f32 %v4721, %v4537
  %v4723 = vadd.f32 %v4722, %v4541
  %v4724 = vadd.f32 %v4723, %v4545
  %v4725 = vadd.f32 %v4724, %v4549
  %v4726 = vadd.f32 %v4725, %v4553
  %v4727 = vadd.f32 %v4726, %v4557
  %v4728 = vadd.f32 %v4727, %v4561
  %v4729 = vadd.f32 %v4728, %v4565
  %v4730 = vadd.f32 %v4729, %v4569
  %v4731 = vadd.f32 %v4730, %v4573
  %v4732 = vadd.f32 %v4731, %v4577
  %v4733 = vadd.f32 %v4732, %v4581
  %v4734 = vadd.f32 %v4733, %v4585
  %v4735 = vadd.f32 %v4734, %v4589
  %v4736 = vadd.f32 %v4735, %v4593
  %v4737 = vadd.f32 %v4736, %v4597
  %v4738 = vadd.f32 %v4737, %v4601
  %v4739 = vadd.f32 %v4738, %v4605
  %v4740 = vadd.f32 %v4739, %v4609
  %v4741 = vadd.f32 %v4740, %v4613
  %v4742 = vadd.f32 %v4741, %v4617
  %v4743 = vadd.f32 %v4742, %v4621
  %v4744 = vadd.f32 %v4743, %v4625
  %v4745 = vadd.f32 %v4744, %v4629
  %v4746 = vadd.f32 %v4745, %v4633
  %v4747 = vadd.f32 %v4746, %v4637
  %v4748 = vadd.f32 %v4747, %v4641
  %v4749 = vadd.f32 %v4748, %v4645
  %v4750 = vadd.f32 %v4749, %v4649
  %v4751 = vadd.f32 %v4750, %v4653
  %v4752 = vadd.f32 %v4751, %v4657
  %v4753 = vadd.f32 %v4752, %v4661
  %v4754 = vadd.f32 %v4753, %v4665
  %v4755 = vadd.f32 %v4754, %v4669
  %v4756 = vadd.f32 %v4755, %v4673
  %v4757 = vadd.f32 %v4756, %v4677
  %v4758 = vadd.f32 %v4757, %v4681
  %v4759 = vadd.f32 %v4758, %v4685
  %v4760 = vadd.f32 %v4759, %v4689
  %v4761 = vadd.f32 %v4760, %v4693
  %v4762 = vadd.f32 %v4761, %v4697
  %v4763 = vadd.f32 %v4762, %v4701
  %v4764 = vadd.f32 %v4763, %v4705
  %v4765 = vadd.f32 %v4764, %v4709
  %v4766 = vadd.f32 %v4765, %v4713
  %v4767 = vadd.f32 %v4766, %v4717
  %v4768 = vrot.slane %v4767, 4
  %v4769 = vadd.f32 %v4767, %v4768
  %v4770 = vrot.slane %v4769, 2
  %v4771 = vadd.f32 %v4769, %v4770
  %v4772 = vrot.slane %v4771, 1
  %v4773 = vadd.f32 %v4771, %v4772
  %v4774 = vadd.f32 %v4530, %v4534
  %v4775 = vadd.f32 %v4774, %v4538
  %v4776 = vadd.f32 %v4775, %v4542
  %v4777 = vadd.f32 %v4776, %v4546
  %v4778 = vadd.f32 %v4777, %v4550
  %v4779 = vadd.f32 %v4778, %v4554
  %v4780 = vadd.f32 %v4779, %v4558
  %v4781 = vadd.f32 %v4780, %v4562
  %v4782 = vadd.f32 %v4781, %v4566
  %v4783 = vadd.f32 %v4782, %v4570
  %v4784 = vadd.f32 %v4783, %v4574
  %v4785 = vadd.f32 %v4784, %v4578
  %v4786 = vadd.f32 %v4785, %v4582
  %v4787 = vadd.f32 %v4786, %v4586
  %v4788 = vadd.f32 %v4787, %v4590
  %v4789 = vadd.f32 %v4788, %v4594
  %v4790 = vadd.f32 %v4789, %v4598
  %v4791 = vadd.f32 %v4790, %v4602
  %v4792 = vadd.f32 %v4791, %v4606
  %v4793 = vadd.f32 %v4792, %v4610
  %v4794 = vadd.f32 %v4793, %v4614
  %v4795 = vadd.f32 %v4794, %v4618
  %v4796 = vadd.f32 %v4795, %v4622
  %v4797 = vadd.f32 %v4796, %v4626
  %v4798 = vadd.f32 %v4797, %v4630
  %v4799 = vadd.f32 %v4798, %v4634
  %v4800 = vadd.f32 %v4799, %v4638
  %v4801 = vadd.f32 %v4800, %v4642
  %v4802 = vadd.f32 %v4801, %v4646
  %v4803 = vadd.f32 %v4802, %v4650
  %v4804 = vadd.f32 %v4803, %v4654
  %v4805 = vadd.f32 %v4804, %v4658
  %v4806 = vadd.f32 %v4805, %v4662
  %v4807 = vadd.f32 %v4806, %v4666
  %v4808 = vadd.f32 %v4807, %v4670
  %v4809 = vadd.f32 %v4808, %v4674
  %v4810 = vadd.f32 %v4809, %v4678
  %v4811 = vadd.f32 %v4810, %v4682
  %v4812 = vadd.f32 %v4811, %v4686
  %v4813 = vadd.f32 %v4812, %v4690
  %v4814 = vadd.f32 %v4813, %v4694
  %v4815 = vadd.f32 %v4814, %v4698
  %v4816 = vadd.f32 %v4815, %v4702
  %v4817 = vadd.f32 %v4816, %v4706
  %v4818 = vadd.f32 %v4817, %v4710
  %v4819 = vadd.f32 %v4818, %v4714
  %v4820 = vadd.f32 %v4819, %v4718
  %v4821 = vrot.slane %v4820, 4
  %v4822 = vadd.f32 %v4820, %v4821
  %v4823 = vrot.slane %v4822, 2
  %v4824 = vadd.f32 %v4822, %v4823
  %v4825 = vrot.slane %v4824, 1
  %v4826 = vadd.f32 %v4824, %v4825
  %v4827 = vadd.f32 %v4531, %v4535
  %v4828 = vadd.f32 %v4827, %v4539
  %v4829 = vadd.f32 %v4828, %v4543
  %v4830 = vadd.f32 %v4829, %v4547
  %v4831 = vadd.f32 %v4830, %v4551
  %v4832 = vadd.f32 %v4831, %v4555
  %v4833 = vadd.f32 %v4832, %v4559
  %v4834 = vadd.f32 %v4833, %v4563
  %v4835 = vadd.f32 %v4834, %v4567
  %v4836 = vadd.f32 %v4835, %v4571
  %v4837 = vadd.f32 %v4836, %v4575
  %v4838 = vadd.f32 %v4837, %v4579
  %v4839 = vadd.f32 %v4838, %v4583
  %v4840 = vadd.f32 %v4839, %v4587
  %v4841 = vadd.f32 %v4840, %v4591
  %v4842 = vadd.f32 %v4841, %v4595
  %v4843 = vadd.f32 %v4842, %v4599
  %v4844 = vadd.f32 %v4843, %v4603
  %v4845 = vadd.f32 %v4844, %v4607
  %v4846 = vadd.f32 %v4845, %v4611
  %v4847 = vadd.f32 %v4846, %v4615
  %v4848 = vadd.f32 %v4847, %v4619
  %v4849 = vadd.f32 %v4848, %v4623
  %v4850 = vadd.f32 %v4849, %v4627
  %v4851 = vadd.f32 %v4850, %v4631
  %v4852 = vadd.f32 %v4851, %v4635
  %v4853 = vadd.f32 %v4852, %v4639
  %v4854 = vadd.f32 %v4853, %v4643
  %v4855 = vadd.f32 %v4854, %v4647
  %v4856 = vadd.f32 %v4855, %v4651
  %v4857 = vadd.f32 %v4856, %v4655
  %v4858 = vadd.f32 %v4857, %v4659
  %v4859 = vadd.f32 %v4858, %v4663
  %v4860 = vadd.f32 %v4859, %v4667
  %v4861 = vadd.f32 %v4860, %v4671
  %v4862 = vadd.f32 %v4861, %v4675
  %v4863 = vadd.f32 %v4862, %v4679
  %v4864 = vadd.f32 %v4863, %v4683
  %v4865 = vadd.f32 %v4864, %v4687
  %v4866 = vadd.f32 %v4865, %v4691
  %v4867 = vadd.f32 %v4866, %v4695
  %v4868 = vadd.f32 %v4867, %v4699
  %v4869 = vadd.f32 %v4868, %v4703
  %v4870 = vadd.f32 %v4869, %v4707
  %v4871 = vadd.f32 %v4870, %v4711
  %v4872 = vadd.f32 %v4871, %v4715
  %v4873 = vadd.f32 %v4872, %v4719
  %v4874 = vrot.slane %v4873, 4
  %v4875 = vadd.f32 %v4873, %v4874
  %v4876 = vrot.slane %v4875, 2
  %v4877 = vadd.f32 %v4875, %v4876
  %v4878 = vrot.slane %v4877, 1
  %v4879 = vadd.f32 %v4877, %v4878
  %v4880 = vadd.f32 %v4532, %v4536
  %v4881 = vadd.f32 %v4880, %v4540
  %v4882 = vadd.f32 %v4881, %v4544
  %v4883 = vadd.f32 %v4882, %v4548
  %v4884 = vadd.f32 %v4883, %v4552
  %v4885 = vadd.f32 %v4884, %v4556
  %v4886 = vadd.f32 %v4885, %v4560
  %v4887 = vadd.f32 %v4886, %v4564
  %v4888 = vadd.f32 %v4887, %v4568
  %v4889 = vadd.f32 %v4888, %v4572
  %v4890 = vadd.f32 %v4889, %v4576
  %v4891 = vadd.f32 %v4890, %v4580
  %v4892 = vadd.f32 %v4891, %v4584
  %v4893 = vadd.f32 %v4892, %v4588
  %v4894 = vadd.f32 %v4893, %v4592
  %v4895 = vadd.f32 %v4894, %v4596
  %v4896 = vadd.f32 %v4895, %v4600
  %v4897 = vadd.f32 %v4896, %v4604
  %v4898 = vadd.f32 %v4897, %v4608
  %v4899 = vadd.f32 %v4898, %v4612
  %v4900 = vadd.f32 %v4899, %v4616
  %v4901 = vadd.f32 %v4900, %v4620
  %v4902 = vadd.f32 %v4901, %v4624
  %v4903 = vadd.f32 %v4902, %v4628
  %v4904 = vadd.f32 %v4903, %v4632
  %v4905 = vadd.f32 %v4904, %v4636
  %v4906 = vadd.f32 %v4905, %v4640
  %v4907 = vadd.f32 %v4906, %v4644
  %v4908 = vadd.f32 %v4907, %v4648
  %v4909 = vadd.f32 %v4908, %v4652
  %v4910 = vadd.f32 %v4909, %v4656
  %v4911 = vadd.f32 %v4910, %v4660
  %v4912 = vadd.f32 %v4911, %v4664
  %v4913 = vadd.f32 %v4912, %v4668
  %v4914 = vadd.f32 %v4913, %v4672
  %v4915 = vadd.f32 %v4914, %v4676
  %v4916 = vadd.f32 %v4915, %v4680
  %v4917 = vadd.f32 %v4916, %v4684
  %v4918 = vadd.f32 %v4917, %v4688
  %v4919 = vadd.f32 %v4918, %v4692
  %v4920 = vadd.f32 %v4919, %v4696
  %v4921 = vadd.f32 %v4920, %v4700
  %v4922 = vadd.f32 %v4921, %v4704
  %v4923 = vadd.f32 %v4922, %v4708
  %v4924 = vadd.f32 %v4923, %v4712
  %v4925 = vadd.f32 %v4924, %v4716
  %v4926 = vadd.f32 %v4925, %v4720
  %v4927 = vrot.slane %v4926, 4
  %v4928 = vadd.f32 %v4926, %v4927
  %v4929 = vrot.slane %v4928, 2
  %v4930 = vadd.f32 %v4928, %v4929
  %v4931 = vrot.slane %v4930, 1
  %v4932 = vadd.f32 %v4930, %v4931
  %vm4933 = vcmask 1040384
  %v4934 = vsel %vm4933, %v3965, %v4369
  %v4935 = vsel %vm4933, %v4018, %v4422
  %v4936 = vsel %vm4933, %v4071, %v4475
  %v4937 = vsel %vm4933, %v4124, %v4528
  %vm4938 = vcmask 1041408
  %v4939 = vsel %vm4938, %v4934, %v4773
  %v4940 = vsel %vm4938, %v4935, %v4826
  %v4941 = vsel %vm4938, %v4936, %v4879
  %v4942 = vsel %vm4938, %v4937, %v4932
  %4944 = vset.pattern.permute.xlu0 0
  %4945 = vperm.xlu0 %4944, %v1844
  %v4946 = vpop.permute.xlu0 %4945
  %v4948 = vadd.f32 %v4939, %v4946
  %v4949 = vadd.f32 %v4940, %v4946
  %v4950 = vadd.f32 %v4941, %v4946
  %v4951 = vadd.f32 %v4942, %v4946
  %v4956 = vcombine.low %v4948, %v4949
  %v4957 = vcombine.low %v4950, %v4951
  %4960 = vst [vmem:[%s5] sm:$0x77] %v4956
  %4961 = vst [vmem:[%s5 + $0x8] sm:$0x77] %v4957
  // Predicated region
  $region22: #{tpu_custom_call.1} parent=0 // pred_check
    _
  $region23: #{tpu_custom_call.1} parent=0 // pred_check_branch
    %4963 = sbr.rel (0) target = $region25
  $region24: #{tpu_custom_call.1} parent=0 // pred_region
    _
  $region25: #{tpu_custom_call.1} parent=0 // pred_fallthru
    _
  // Predicated region
  $region26: #{tpu_custom_call.1} parent=0 // pred_check
    _
  $region27: #{tpu_custom_call.1} parent=0 // pred_check_branch
    %4965 = sbr.rel (0) target = $region29
  $region28: #{tpu_custom_call.1} parent=0 // pred_region
    _
  $region29: #{tpu_custom_call.1} parent=0 // pred_fallthru
    _

</llo_original>
